<compile_context>
chip_gen: v5e
topology: v5e:2x2
jax: 0.10.0
libtpu: 0.0.40
codegen_flags: <defaults>
</compile_context>

<pallas_src>
import jax
import jax.numpy as jnp
from jax.experimental import pallas as pl
from jax.experimental.pallas import tpu as pltpu


LANE = 128
_TILE_BUDGET = 32 * 1024 * 1024   # VMEM budget for streamed tiles (leaves headroom)
_TM_CAP = 4096


def _round_up(x, m):
    return ((x + m - 1) // m) * m


def _compiler_params(n_parallel_axes):
    return pltpu.CompilerParams(
        dimension_semantics=("parallel",) * n_parallel_axes,
        vmem_limit_bytes=64 * 1024 * 1024,
    )


# ----------------------------------------------------------------------------
# Glue: im2col on bf16 NHWC activations.
# Patch columns are ordered (kh, kw, C_in); weights are reordered to match.
# ----------------------------------------------------------------------------
def _im2col_nhwc(x, k, s, p):
    N, H, W, C = x.shape
    Ho = (H + 2 * p - k) // s + 1
    Wo = (W + 2 * p - k) // s + 1
    xp = jnp.pad(x, ((0, 0), (p, p), (p, p), (0, 0)))
    cols = []
    for kh in range(k):
        for kw in range(k):
            cols.append(xp[:, kh:kh + s * Ho:s, kw:kw + s * Wo:s, :])  # (N,Ho,Wo,C)
    patches = jnp.concatenate(cols, axis=-1)                 # (N, Ho, Wo, k*k*C)
    return patches.reshape(N * Ho * Wo, k * k * C), Ho, Wo


def _weight_to_gemm(w):
    """(Co, Ci, kh, kw) -> bf16 (k*k*Ci, Co_p) with Co padded to a lane multiple."""
    Co, Ci, k, _ = w.shape
    wm = w.transpose(0, 2, 3, 1).reshape(Co, k * k * Ci).T   # cols ordered (kh, kw, Ci)
    Co_p = _round_up(max(Co, LANE), LANE)
    if Co_p != Co:
        wm = jnp.pad(wm, ((0, 0), (0, Co_p - Co)))
    return wm.astype(jnp.bfloat16), Co_p


def _pad_chan(v, co_p):
    co = v.shape[0]
    return jnp.pad(v.astype(jnp.float32), (0, co_p - co)).reshape(1, co_p)


def _tiles(m, kd, co_p, out_bytes):
    """Adaptive (TM, Mp, TN, Tn): biggest M tile that fits the VMEM budget."""
    w_bytes = 2 * kd * co_p * 2                       # resident weight (double-buffered)
    per_row = 2 * (kd * 2 + co_p * out_bytes)         # double-buffered patches + output
    tm_max = (_TILE_BUDGET - w_bytes) // max(per_row, 1)
    tm_max = max(16, min(tm_max, _TM_CAP))
    tm = min(tm_max, _round_up(m, 16))
    tm = max(16, (tm // 16) * 16)                     # bf16 sublane packing
    mp = _round_up(m, tm)
    t_m = mp // tm
    # v7x megacore: if only one M tile, split the lane dim so both TCs get work.
    t_n = 2 if (t_m == 1 and co_p % 256 == 0) else 1
    return tm, mp, co_p // t_n, t_n


# ----------------------------------------------------------------------------
# Pallas kernels
# ----------------------------------------------------------------------------
def _gemm_bias_lrelu_kernel(p_ref, w_ref, b_ref, o_ref):
    """(TM, Kd)bf16 @ (Kd, TN)bf16 -> f32 acc, + bias, LeakyReLU(0.2), store bf16."""
    y = jnp.dot(p_ref[...], w_ref[...], preferred_element_type=jnp.float32)
    y = y + b_ref[...]
    o_ref[...] = jnp.where(y >= 0, y, 0.2 * y).astype(o_ref.dtype)


def _gemm_stats_kernel(p_ref, w_ref, y_ref, s_ref):
    """Pre-bias GEMM; store y (bf16) and per-tile (sum, sumsq) per channel (f32).

    Zero-padded patch rows yield exactly-zero GEMM rows, so no masking is
    needed; the conv bias is dropped because it cancels in train-mode BN.
    """
    y = jnp.dot(p_ref[...], w_ref[...], preferred_element_type=jnp.float32)
    y_ref[...] = y.astype(y_ref.dtype)
    s_ref[0, 0:1, :] = jnp.sum(y, axis=0, keepdims=True)
    s_ref[0, 1:2, :] = jnp.sum(y * y, axis=0, keepdims=True)


def _bn_lrelu_kernel(y_ref, scale_ref, shift_ref, o_ref):
    """y * scale + shift (per channel), then LeakyReLU(0.2); bf16 out."""
    yhat = y_ref[...].astype(jnp.float32) * scale_ref[...] + shift_ref[...]
    o_ref[...] = jnp.where(yhat >= 0, yhat, 0.2 * yhat).astype(o_ref.dtype)


# ----------------------------------------------------------------------------
# Layer wrappers (NHWC in / NHWC out, bf16 activations between layers)
# ----------------------------------------------------------------------------
def conv2d_lrelu(x, w, b, *, stride, padding):
    Co, _, k, _ = w.shape
    N = x.shape[0]
    patches, Ho, Wo = _im2col_nhwc(x.astype(jnp.bfloat16), k, stride, padding)
    M, Kd = patches.shape
    wm, Co_p = _weight_to_gemm(w)
    bm = _pad_chan(b, Co_p)

    TM, Mp, TN, Tn = _tiles(M, Kd, Co_p, out_bytes=2)
    if Mp != M:
        patches = jnp.pad(patches, ((0, Mp - M), (0, 0)))
    Tm = Mp // TM

    out = pl.pallas_call(
        _gemm_bias_lrelu_kernel,
        out_shape=jax.ShapeDtypeStruct((Mp, Co_p), jnp.bfloat16),
        grid=(Tm, Tn),
        in_specs=[
            pl.BlockSpec((TM, Kd), lambda i, j: (i, 0)),
            pl.BlockSpec((Kd, TN), lambda i, j: (0, j)),
            pl.BlockSpec((1, TN), lambda i, j: (0, j)),
        ],
        out_specs=pl.BlockSpec((TM, TN), lambda i, j: (i, j)),
        compiler_params=_compiler_params(2),
    )(patches, wm, bm)

    return out[:M, :Co].reshape(N, Ho, Wo, Co)


def conv2d_bn_lrelu(x, w, gamma, beta, *, stride, padding, eps=1e-5):
    # Conv bias intentionally not applied: it cancels exactly in training-mode
    # BatchNorm normalization (shift = beta - mean*gamma*inv covers it).
    Co, _, k, _ = w.shape
    N = x.shape[0]
    patches, Ho, Wo = _im2col_nhwc(x.astype(jnp.bfloat16), k, stride, padding)
    M, Kd = patches.shape
    wm, Co_p = _weight_to_gemm(w)

    TM, Mp, TN, Tn = _tiles(M, Kd, Co_p, out_bytes=2)
    if Mp != M:
        patches = jnp.pad(patches, ((0, Mp - M), (0, 0)))
    Tm = Mp // TM

    # ---- pass 1: tiled pre-bias GEMM, per-tile (sum, sumsq) partial stats ----
    y, part = pl.pallas_call(
        _gemm_stats_kernel,
        out_shape=(
            jax.ShapeDtypeStruct((Mp, Co_p), jnp.bfloat16),
            jax.ShapeDtypeStruct((Tm, 2, Co_p), jnp.float32),
        ),
        grid=(Tm, Tn),
        in_specs=[
            pl.BlockSpec((TM, Kd), lambda i, j: (i, 0)),
            pl.BlockSpec((Kd, TN), lambda i, j: (0, j)),
        ],
        out_specs=(
            pl.BlockSpec((TM, TN), lambda i, j: (i, j)),
            pl.BlockSpec((1, 2, TN), lambda i, j: (i, 0, j)),
        ),
        compiler_params=_compiler_params(2),
    )(patches, wm)

    # ---- tiny per-channel reduction (plain JAX, O(Co)) ----
    ssum = jnp.sum(part[:, 0, :], axis=0)
    ssq = jnp.sum(part[:, 1, :], axis=0)
    mean = ssum / M
    var = jnp.maximum(ssq / M - mean * mean, 0.0)   # biased var == PyTorch BN training mode
    inv = jax.lax.rsqrt(var + eps)
    g = jnp.pad(gamma.astype(jnp.float32), (0, Co_p - Co))
    be = jnp.pad(beta.astype(jnp.float32), (0, Co_p - Co))
    scale = (g * inv).reshape(1, Co_p)
    shift = (be - mean * g * inv).reshape(1, Co_p)

    # ---- pass 2: tiled normalize + LeakyReLU (decoupled, larger row tile) ----
    pass2_bytes = Mp * Co_p * 2 * 2 * 2   # (in + out) bf16, double-buffered
    TM2 = Mp if pass2_bytes <= _TILE_BUDGET else TM
    T2 = Mp // TM2
    out = pl.pallas_call(
        _bn_lrelu_kernel,
        out_shape=jax.ShapeDtypeStruct((Mp, Co_p), jnp.bfloat16),
        grid=(T2,),
        in_specs=[
            pl.BlockSpec((TM2, Co_p), lambda i: (i, 0)),
            pl.BlockSpec((1, Co_p), lambda i: (0, 0)),
            pl.BlockSpec((1, Co_p), lambda i: (0, 0)),
        ],
        out_specs=pl.BlockSpec((TM2, Co_p), lambda i: (i, 0)),
        compiler_params=_compiler_params(1),
    )(y, scale, shift)

    return out[:M, :Co].reshape(N, Ho, Wo, Co)


def final_conv_sigmoid(x, w, b, *, stride, padding):
    # Final conv has M = N and C_out = 1 (1x1 spatial output): a Pallas launch
    # with masked single-lane stores is pure overhead, so run it as an XLA
    # bf16 dot (f32 accumulation) + sigmoid, output kept in f32.
    Co, _, k, _ = w.shape
    N = x.shape[0]
    patches, Ho, Wo = _im2col_nhwc(x.astype(jnp.bfloat16), k, stride, padding)
    wm = w.transpose(0, 2, 3, 1).reshape(Co, -1).T.astype(jnp.bfloat16)
    y = jnp.dot(patches, wm, preferred_element_type=jnp.float32)
    y = y + b.reshape(1, Co).astype(jnp.float32)
    return jax.nn.sigmoid(y).reshape(N, Ho, Wo, Co)


# ----------------------------------------------------------------------------
# Parameters (deterministic; weights / BN gamma ~ normal(0, 0.2) like the
# PyTorch module's init loop; BN beta zero as in PyTorch defaults)
# ----------------------------------------------------------------------------
def init_params(key, in_channels, fd):
    ks = jax.random.split(key, 13)

    def nrm(k, shape, std=0.2):
        return std * jax.random.normal(k, shape, jnp.float32)

    p = {}
    p["w1"], p["b1"] = nrm(ks[0], (fd, in_channels, 4, 4)), nrm(ks[1], (fd,), 0.02)
    p["w2"], p["b2"] = nrm(ks[2], (fd * 2, fd, 4, 4)), nrm(ks[3], (fd * 2,), 0.02)
    p["g2"], p["be2"] = nrm(ks[4], (fd * 2,)), jnp.zeros((fd * 2,), jnp.float32)
    p["w3"], p["b3"] = nrm(ks[5], (fd * 4, fd * 2, 4, 4)), nrm(ks[6], (fd * 4,), 0.02)
    p["g3"], p["be3"] = nrm(ks[7], (fd * 4,)), jnp.zeros((fd * 4,), jnp.float32)
    p["w4"], p["b4"] = nrm(ks[8], (fd * 8, fd * 4, 4, 4)), nrm(ks[9], (fd * 8,), 0.02)
    p["g4"], p["be4"] = nrm(ks[10], (fd * 8,)), jnp.zeros((fd * 8,), jnp.float32)
    p["w5"], p["b5"] = nrm(ks[11], (1, fd * 8, 4, 4)), nrm(ks[12], (1,), 0.02)
    return p


def discriminator_forward(params, x_nchw):
    x = x_nchw.transpose(0, 2, 3, 1)  # NCHW -> NHWC once at the module boundary
    h = conv2d_lrelu(x, params["w1"], params["b1"], stride=2, padding=1)
    # b2/b3/b4 exist in the module but cancel exactly under train-mode BN.
    h = conv2d_bn_lrelu(h, params["w2"], params["g2"], params["be2"],
                        stride=2, padding=1)
    h = conv2d_bn_lrelu(h, params["w3"], params["g3"], params["be3"],
                        stride=2, padding=1)
    h = conv2d_bn_lrelu(h, params["w4"], params["g4"], params["be4"],
                        stride=2, padding=1)
    h = final_conv_sigmoid(h, params["w5"], params["b5"], stride=2, padding=0)
    return h.transpose(0, 3, 1, 2)    # back to NCHW: (N, 1, 1, 1)


if __name__ == "__main__":
    key = jax.random.PRNGKey(0)
    k_param, k_in = jax.random.split(key)

    # 64x64 input -> 1x1 output, as the DCGAN discriminator architecture implies.
    N, IN_C, FD, H, W = 2, 3, 8, 64, 64
    params = init_params(k_param, IN_C, FD)
    x = jax.random.normal(k_in, (N, IN_C, H, W), jnp.float32)

    fwd = jax.jit(discriminator_forward)
    out = jax.block_until_ready(fwd(params, x))

    assert out.shape == (N, 1, 1, 1), out.shape
    assert out.dtype == jnp.float32
    assert bool(jnp.all(jnp.isfinite(out)))
    assert bool(jnp.all((out >= 0.0) & (out <= 1.0)))  # sigmoid range
    print("KERNEL_OK")
</pallas_src>

<mosaic_0001>
module attributes {stable_mosaic.version = 11 : i64} {
  func.func @_gemm_bias_lrelu_kernel(%arg0: i32, %arg1: i32, %arg2: memref<2048x48xbf16, #tpu.memory_space<vmem>>, %arg3: memref<48x128xbf16, #tpu.memory_space<vmem>>, %arg4: memref<1x128xf32, #tpu.memory_space<vmem>>, %arg5: memref<2048x128xbf16, #tpu.memory_space<vmem>>) attributes {dimension_semantics = [#tpu.dimension_semantics<parallel>, #tpu.dimension_semantics<parallel>], iteration_bounds = array<i64: 1, 1>, scalar_prefetch = 0 : i64, scratch_operands = 0 : i64, tpu.core_type = #tpu.core_type<tc>, window_params = [{transform_indices = @transform_0, window_bounds = array<i64: 2048, 48>}, {transform_indices = @transform_1, window_bounds = array<i64: 48, 128>}, {transform_indices = @transform_2, window_bounds = array<i64: 1, 128>}, {transform_indices = @transform_3, window_bounds = array<i64: 2048, 128>}]} {
    %c0 = arith.constant 0 : index
    %c0_0 = arith.constant 0 : index
    %0 = vector.load %arg2[%c0, %c0_0] : memref<2048x48xbf16, #tpu.memory_space<vmem>>, vector<2048x48xbf16>
    %c0_1 = arith.constant 0 : index
    %c0_2 = arith.constant 0 : index
    %1 = vector.load %arg3[%c0_1, %c0_2] : memref<48x128xbf16, #tpu.memory_space<vmem>>, vector<48x128xbf16>
    %cst = arith.constant dense<0.000000e+00> : vector<2048x128xf32>
    %2 = tpu.matmul %0, %1, %cst {dimension_numbers = #tpu.dot_dimension_numbers<[1], [0], [0], [1], [0, 0, 1, 1], [], []>} : vector<2048x48xbf16>, vector<48x128xbf16>, vector<2048x128xf32> -> vector<2048x128xf32>
    %c0_3 = arith.constant 0 : index
    %c0_4 = arith.constant 0 : index
    %3 = vector.load %arg4[%c0_3, %c0_4] : memref<1x128xf32, #tpu.memory_space<vmem>>, vector<1x128xf32>
    %4 = vector.broadcast %3 : vector<1x128xf32> to vector<2048x128xf32>
    %5 = arith.addf %2, %4 : vector<2048x128xf32>
    %cst_5 = arith.constant 0.000000e+00 : f32
    %6 = vector.broadcast %cst_5 : f32 to vector<2048x128xf32>
    %7 = arith.cmpf oge, %5, %6 : vector<2048x128xf32>
    %cst_6 = arith.constant 2.000000e-01 : f32
    %8 = vector.broadcast %cst_6 : f32 to vector<2048x128xf32>
    %9 = arith.mulf %8, %5 : vector<2048x128xf32>
    %10 = arith.select %7, %5, %9 : vector<2048x128xi1>, vector<2048x128xf32>
    %11 = arith.truncf %10 : vector<2048x128xf32> to vector<2048x128xbf16>
    %c0_7 = arith.constant 0 : index
    %c0_8 = arith.constant 0 : index
    %12 = vector.load %arg5[%c0_7, %c0_8] : memref<2048x128xbf16, #tpu.memory_space<vmem>>, vector<2048x128xbf16>
    tpu.vector_store %arg5[%c0_7, %c0_8], %11 {strides = array<i32>} : memref<2048x128xbf16, #tpu.memory_space<vmem>>, vector<2048x128xbf16>,
    return
  }
  func.func @transform_0(%arg0: i32, %arg1: i32) -> (i32, i32) {
    %c0_i32 = arith.constant 0 : i32
    %c0_i32_0 = arith.constant 0 : i32
    return %arg0, %c0_i32 : i32, i32
  }
  func.func @transform_1(%arg0: i32, %arg1: i32) -> (i32, i32) {
    %c0_i32 = arith.constant 0 : i32
    %c0_i32_0 = arith.constant 0 : i32
    return %c0_i32, %arg1 : i32, i32
  }
  func.func @transform_2(%arg0: i32, %arg1: i32) -> (i32, i32) {
    %c0_i32 = arith.constant 0 : i32
    %c0_i32_0 = arith.constant 0 : i32
    return %c0_i32, %arg1 : i32, i32
  }
  func.func @transform_3(%arg0: i32, %arg1: i32) -> (i32, i32) {
    %c0_i32 = arith.constant 0 : i32
    return %arg0, %arg1 : i32, i32
  }
}

module attributes {stable_mosaic.version = 11 : i64} {
  func.func @_gemm_stats_kernel(%arg0: i32, %arg1: i32, %arg2: memref<512x128xbf16, #tpu.memory_space<vmem>>, %arg3: memref<128x128xbf16, #tpu.memory_space<vmem>>, %arg4: memref<512x128xbf16, #tpu.memory_space<vmem>>, %arg5: memref<1x2x128xf32, #tpu.memory_space<vmem>>) attributes {dimension_semantics = [#tpu.dimension_semantics<parallel>, #tpu.dimension_semantics<parallel>], iteration_bounds = array<i64: 1, 1>, scalar_prefetch = 0 : i64, scratch_operands = 0 : i64, tpu.core_type = #tpu.core_type<tc>, window_params = [{transform_indices = @transform_0, window_bounds = array<i64: 512, 128>}, {transform_indices = @transform_1, window_bounds = array<i64: 128, 128>}, {transform_indices = @transform_2, window_bounds = array<i64: 512, 128>}, {transform_indices = @transform_3, window_bounds = array<i64: 1, 2, 128>}]} {
    %c0 = arith.constant 0 : index
    %c0_0 = arith.constant 0 : index
    %0 = vector.load %arg2[%c0, %c0_0] : memref<512x128xbf16, #tpu.memory_space<vmem>>, vector<512x128xbf16>
    %c0_1 = arith.constant 0 : index
    %c0_2 = arith.constant 0 : index
    %1 = vector.load %arg3[%c0_1, %c0_2] : memref<128x128xbf16, #tpu.memory_space<vmem>>, vector<128x128xbf16>
    %cst = arith.constant dense<0.000000e+00> : vector<512x128xf32>
    %2 = tpu.matmul %0, %1, %cst {dimension_numbers = #tpu.dot_dimension_numbers<[1], [0], [0], [1], [0, 0, 1, 1], [], []>} : vector<512x128xbf16>, vector<128x128xbf16>, vector<512x128xf32> -> vector<512x128xf32>
    %3 = arith.truncf %2 : vector<512x128xf32> to vector<512x128xbf16>
    %c0_3 = arith.constant 0 : index
    %c0_4 = arith.constant 0 : index
    %4 = vector.load %arg4[%c0_3, %c0_4] : memref<512x128xbf16, #tpu.memory_space<vmem>>, vector<512x128xbf16>
    tpu.vector_store %arg4[%c0_3, %c0_4], %3 {strides = array<i32>} : memref<512x128xbf16, #tpu.memory_space<vmem>>, vector<512x128xbf16>,
    %cst_5 = arith.constant dense<0.000000e+00> : vector<128xf32>
    %5 = vector.multi_reduction <add>, %2, %cst_5 [0] : vector<512x128xf32> to vector<128xf32>
    %6 = vector.shape_cast %5 : vector<128xf32> to vector<1x128xf32>
    %c0_6 = arith.constant 0 : index
    %c0_7 = arith.constant 0 : index
    %c0_8 = arith.constant 0 : index
    %7 = vector.load %arg5[%c0_6, %c0_7, %c0_8] : memref<1x2x128xf32, #tpu.memory_space<vmem>>, vector<1x1x128xf32>
    %8 = vector.shape_cast %7 : vector<1x1x128xf32> to vector<1x128xf32>
    %9 = vector.shape_cast %6 : vector<1x128xf32> to vector<1x1x128xf32>
    tpu.vector_store %arg5[%c0_6, %c0_7, %c0_8], %9 {strides = array<i32>} : memref<1x2x128xf32, #tpu.memory_space<vmem>>, vector<1x1x128xf32>,
    %10 = arith.mulf %2, %2 : vector<512x128xf32>
    %cst_9 = arith.constant dense<0.000000e+00> : vector<128xf32>
    %11 = vector.multi_reduction <add>, %10, %cst_9 [0] : vector<512x128xf32> to vector<128xf32>
    %12 = vector.shape_cast %11 : vector<128xf32> to vector<1x128xf32>
    %c0_10 = arith.constant 0 : index
    %c1 = arith.constant 1 : index
    %c0_11 = arith.constant 0 : index
    %13 = vector.load %arg5[%c0_10, %c1, %c0_11] : memref<1x2x128xf32, #tpu.memory_space<vmem>>, vector<1x1x128xf32>
    %14 = vector.shape_cast %13 : vector<1x1x128xf32> to vector<1x128xf32>
    %15 = vector.shape_cast %12 : vector<1x128xf32> to vector<1x1x128xf32>
    tpu.vector_store %arg5[%c0_10, %c1, %c0_11], %15 {strides = array<i32>} : memref<1x2x128xf32, #tpu.memory_space<vmem>>, vector<1x1x128xf32>,
    return
  }
  func.func @transform_0(%arg0: i32, %arg1: i32) -> (i32, i32) {
    %c0_i32 = arith.constant 0 : i32
    %c0_i32_0 = arith.constant 0 : i32
    return %arg0, %c0_i32 : i32, i32
  }
  func.func @transform_1(%arg0: i32, %arg1: i32) -> (i32, i32) {
    %c0_i32 = arith.constant 0 : i32
    %c0_i32_0 = arith.constant 0 : i32
    return %c0_i32, %arg1 : i32, i32
  }
  func.func @transform_2(%arg0: i32, %arg1: i32) -> (i32, i32) {
    %c0_i32 = arith.constant 0 : i32
    return %arg0, %arg1 : i32, i32
  }
  func.func @transform_3(%arg0: i32, %arg1: i32) -> (i32, i32, i32) {
    %c0_i32 = arith.constant 0 : i32
    %c0_i32_0 = arith.constant 0 : i32
    return %arg0, %c0_i32, %arg1 : i32, i32, i32
  }
}

module attributes {stable_mosaic.version = 11 : i64} {
  func.func @_bn_lrelu_kernel(%arg0: i32, %arg1: memref<512x128xbf16, #tpu.memory_space<vmem>>, %arg2: memref<1x128xf32, #tpu.memory_space<vmem>>, %arg3: memref<1x128xf32, #tpu.memory_space<vmem>>, %arg4: memref<512x128xbf16, #tpu.memory_space<vmem>>) attributes {dimension_semantics = [#tpu.dimension_semantics<parallel>], iteration_bounds = array<i64: 1>, scalar_prefetch = 0 : i64, scratch_operands = 0 : i64, tpu.core_type = #tpu.core_type<tc>, window_params = [{transform_indices = @transform_0, window_bounds = array<i64: 512, 128>}, {pipeline_mode = #tpu.pipeline_mode<synchronous>, transform_indices = @transform_1, window_bounds = array<i64: 1, 128>}, {pipeline_mode = #tpu.pipeline_mode<synchronous>, transform_indices = @transform_2, window_bounds = array<i64: 1, 128>}, {transform_indices = @transform_3, window_bounds = array<i64: 512, 128>}]} {
    %c0 = arith.constant 0 : index
    %c0_0 = arith.constant 0 : index
    %0 = vector.load %arg1[%c0, %c0_0] : memref<512x128xbf16, #tpu.memory_space<vmem>>, vector<512x128xbf16>
    %1 = arith.extf %0 : vector<512x128xbf16> to vector<512x128xf32>
    %c0_1 = arith.constant 0 : index
    %c0_2 = arith.constant 0 : index
    %2 = vector.load %arg2[%c0_1, %c0_2] : memref<1x128xf32, #tpu.memory_space<vmem>>, vector<1x128xf32>
    %3 = vector.broadcast %2 : vector<1x128xf32> to vector<512x128xf32>
    %4 = arith.mulf %1, %3 : vector<512x128xf32>
    %c0_3 = arith.constant 0 : index
    %c0_4 = arith.constant 0 : index
    %5 = vector.load %arg3[%c0_3, %c0_4] : memref<1x128xf32, #tpu.memory_space<vmem>>, vector<1x128xf32>
    %6 = vector.broadcast %5 : vector<1x128xf32> to vector<512x128xf32>
    %7 = arith.addf %4, %6 : vector<512x128xf32>
    %cst = arith.constant 0.000000e+00 : f32
    %8 = vector.broadcast %cst : f32 to vector<512x128xf32>
    %9 = arith.cmpf oge, %7, %8 : vector<512x128xf32>
    %cst_5 = arith.constant 2.000000e-01 : f32
    %10 = vector.broadcast %cst_5 : f32 to vector<512x128xf32>
    %11 = arith.mulf %10, %7 : vector<512x128xf32>
    %12 = arith.select %9, %7, %11 : vector<512x128xi1>, vector<512x128xf32>
    %13 = arith.truncf %12 : vector<512x128xf32> to vector<512x128xbf16>
    %c0_6 = arith.constant 0 : index
    %c0_7 = arith.constant 0 : index
    %14 = vector.load %arg4[%c0_6, %c0_7] : memref<512x128xbf16, #tpu.memory_space<vmem>>, vector<512x128xbf16>
    tpu.vector_store %arg4[%c0_6, %c0_7], %13 {strides = array<i32>} : memref<512x128xbf16, #tpu.memory_space<vmem>>, vector<512x128xbf16>,
    return
  }
  func.func @transform_0(%arg0: i32) -> (i32, i32) {
    %c0_i32 = arith.constant 0 : i32
    %c0_i32_0 = arith.constant 0 : i32
    return %arg0, %c0_i32 : i32, i32
  }
  func.func @transform_1(%arg0: i32) -> (i32, i32) {
    %c0_i32 = arith.constant 0 : i32
    %c0_i32_0 = arith.constant 0 : i32
    %c0_i32_1 = arith.constant 0 : i32
    return %c0_i32, %c0_i32_0 : i32, i32
  }
  func.func @transform_2(%arg0: i32) -> (i32, i32) {
    %c0_i32 = arith.constant 0 : i32
    %c0_i32_0 = arith.constant 0 : i32
    %c0_i32_1 = arith.constant 0 : i32
    return %c0_i32, %c0_i32_0 : i32, i32
  }
  func.func @transform_3(%arg0: i32) -> (i32, i32) {
    %c0_i32 = arith.constant 0 : i32
    %c0_i32_0 = arith.constant 0 : i32
    return %arg0, %c0_i32 : i32, i32
  }
}

module attributes {stable_mosaic.version = 11 : i64} {
  func.func @_gemm_stats_kernel(%arg0: i32, %arg1: i32, %arg2: memref<128x256xbf16, #tpu.memory_space<vmem>>, %arg3: memref<256x128xbf16, #tpu.memory_space<vmem>>, %arg4: memref<128x128xbf16, #tpu.memory_space<vmem>>, %arg5: memref<1x2x128xf32, #tpu.memory_space<vmem>>) attributes {dimension_semantics = [#tpu.dimension_semantics<parallel>, #tpu.dimension_semantics<parallel>], iteration_bounds = array<i64: 1, 1>, scalar_prefetch = 0 : i64, scratch_operands = 0 : i64, tpu.core_type = #tpu.core_type<tc>, window_params = [{transform_indices = @transform_0, window_bounds = array<i64: 128, 256>}, {transform_indices = @transform_1, window_bounds = array<i64: 256, 128>}, {transform_indices = @transform_2, window_bounds = array<i64: 128, 128>}, {transform_indices = @transform_3, window_bounds = array<i64: 1, 2, 128>}]} {
    %c0 = arith.constant 0 : index
    %c0_0 = arith.constant 0 : index
    %0 = vector.load %arg2[%c0, %c0_0] : memref<128x256xbf16, #tpu.memory_space<vmem>>, vector<128x256xbf16>
    %c0_1 = arith.constant 0 : index
    %c0_2 = arith.constant 0 : index
    %1 = vector.load %arg3[%c0_1, %c0_2] : memref<256x128xbf16, #tpu.memory_space<vmem>>, vector<256x128xbf16>
    %cst = arith.constant dense<0.000000e+00> : vector<128x128xf32>
    %2 = tpu.matmul %0, %1, %cst {dimension_numbers = #tpu.dot_dimension_numbers<[1], [0], [0], [1], [0, 0, 1, 1], [], []>} : vector<128x256xbf16>, vector<256x128xbf16>, vector<128x128xf32> -> vector<128x128xf32>
    %3 = arith.truncf %2 : vector<128x128xf32> to vector<128x128xbf16>
    %c0_3 = arith.constant 0 : index
    %c0_4 = arith.constant 0 : index
    %4 = vector.load %arg4[%c0_3, %c0_4] : memref<128x128xbf16, #tpu.memory_space<vmem>>, vector<128x128xbf16>
    tpu.vector_store %arg4[%c0_3, %c0_4], %3 {strides = array<i32>} : memref<128x128xbf16, #tpu.memory_space<vmem>>, vector<128x128xbf16>,
    %cst_5 = arith.constant dense<0.000000e+00> : vector<128xf32>
    %5 = vector.multi_reduction <add>, %2, %cst_5 [0] : vector<128x128xf32> to vector<128xf32>
    %6 = vector.shape_cast %5 : vector<128xf32> to vector<1x128xf32>
    %c0_6 = arith.constant 0 : index
    %c0_7 = arith.constant 0 : index
    %c0_8 = arith.constant 0 : index
    %7 = vector.load %arg5[%c0_6, %c0_7, %c0_8] : memref<1x2x128xf32, #tpu.memory_space<vmem>>, vector<1x1x128xf32>
    %8 = vector.shape_cast %7 : vector<1x1x128xf32> to vector<1x128xf32>
    %9 = vector.shape_cast %6 : vector<1x128xf32> to vector<1x1x128xf32>
    tpu.vector_store %arg5[%c0_6, %c0_7, %c0_8], %9 {strides = array<i32>} : memref<1x2x128xf32, #tpu.memory_space<vmem>>, vector<1x1x128xf32>,
    %10 = arith.mulf %2, %2 : vector<128x128xf32>
    %cst_9 = arith.constant dense<0.000000e+00> : vector<128xf32>
    %11 = vector.multi_reduction <add>, %10, %cst_9 [0] : vector<128x128xf32> to vector<128xf32>
    %12 = vector.shape_cast %11 : vector<128xf32> to vector<1x128xf32>
    %c0_10 = arith.constant 0 : index
    %c1 = arith.constant 1 : index
    %c0_11 = arith.constant 0 : index
    %13 = vector.load %arg5[%c0_10, %c1, %c0_11] : memref<1x2x128xf32, #tpu.memory_space<vmem>>, vector<1x1x128xf32>
    %14 = vector.shape_cast %13 : vector<1x1x128xf32> to vector<1x128xf32>
    %15 = vector.shape_cast %12 : vector<1x128xf32> to vector<1x1x128xf32>
    tpu.vector_store %arg5[%c0_10, %c1, %c0_11], %15 {strides = array<i32>} : memref<1x2x128xf32, #tpu.memory_space<vmem>>, vector<1x1x128xf32>,
    return
  }
  func.func @transform_0(%arg0: i32, %arg1: i32) -> (i32, i32) {
    %c0_i32 = arith.constant 0 : i32
    %c0_i32_0 = arith.constant 0 : i32
    return %arg0, %c0_i32 : i32, i32
  }
  func.func @transform_1(%arg0: i32, %arg1: i32) -> (i32, i32) {
    %c0_i32 = arith.constant 0 : i32
    %c0_i32_0 = arith.constant 0 : i32
    return %c0_i32, %arg1 : i32, i32
  }
  func.func @transform_2(%arg0: i32, %arg1: i32) -> (i32, i32) {
    %c0_i32 = arith.constant 0 : i32
    return %arg0, %arg1 : i32, i32
  }
  func.func @transform_3(%arg0: i32, %arg1: i32) -> (i32, i32, i32) {
    %c0_i32 = arith.constant 0 : i32
    %c0_i32_0 = arith.constant 0 : i32
    return %arg0, %c0_i32, %arg1 : i32, i32, i32
  }
}

module attributes {stable_mosaic.version = 11 : i64} {
  func.func @_bn_lrelu_kernel(%arg0: i32, %arg1: memref<128x128xbf16, #tpu.memory_space<vmem>>, %arg2: memref<1x128xf32, #tpu.memory_space<vmem>>, %arg3: memref<1x128xf32, #tpu.memory_space<vmem>>, %arg4: memref<128x128xbf16, #tpu.memory_space<vmem>>) attributes {dimension_semantics = [#tpu.dimension_semantics<parallel>], iteration_bounds = array<i64: 1>, scalar_prefetch = 0 : i64, scratch_operands = 0 : i64, tpu.core_type = #tpu.core_type<tc>, window_params = [{transform_indices = @transform_0, window_bounds = array<i64: 128, 128>}, {pipeline_mode = #tpu.pipeline_mode<synchronous>, transform_indices = @transform_1, window_bounds = array<i64: 1, 128>}, {pipeline_mode = #tpu.pipeline_mode<synchronous>, transform_indices = @transform_2, window_bounds = array<i64: 1, 128>}, {transform_indices = @transform_3, window_bounds = array<i64: 128, 128>}]} {
    %c0 = arith.constant 0 : index
    %c0_0 = arith.constant 0 : index
    %0 = vector.load %arg1[%c0, %c0_0] : memref<128x128xbf16, #tpu.memory_space<vmem>>, vector<128x128xbf16>
    %1 = arith.extf %0 : vector<128x128xbf16> to vector<128x128xf32>
    %c0_1 = arith.constant 0 : index
    %c0_2 = arith.constant 0 : index
    %2 = vector.load %arg2[%c0_1, %c0_2] : memref<1x128xf32, #tpu.memory_space<vmem>>, vector<1x128xf32>
    %3 = vector.broadcast %2 : vector<1x128xf32> to vector<128x128xf32>
    %4 = arith.mulf %1, %3 : vector<128x128xf32>
    %c0_3 = arith.constant 0 : index
    %c0_4 = arith.constant 0 : index
    %5 = vector.load %arg3[%c0_3, %c0_4] : memref<1x128xf32, #tpu.memory_space<vmem>>, vector<1x128xf32>
    %6 = vector.broadcast %5 : vector<1x128xf32> to vector<128x128xf32>
    %7 = arith.addf %4, %6 : vector<128x128xf32>
    %cst = arith.constant 0.000000e+00 : f32
    %8 = vector.broadcast %cst : f32 to vector<128x128xf32>
    %9 = arith.cmpf oge, %7, %8 : vector<128x128xf32>
    %cst_5 = arith.constant 2.000000e-01 : f32
    %10 = vector.broadcast %cst_5 : f32 to vector<128x128xf32>
    %11 = arith.mulf %10, %7 : vector<128x128xf32>
    %12 = arith.select %9, %7, %11 : vector<128x128xi1>, vector<128x128xf32>
    %13 = arith.truncf %12 : vector<128x128xf32> to vector<128x128xbf16>
    %c0_6 = arith.constant 0 : index
    %c0_7 = arith.constant 0 : index
    %14 = vector.load %arg4[%c0_6, %c0_7] : memref<128x128xbf16, #tpu.memory_space<vmem>>, vector<128x128xbf16>
    tpu.vector_store %arg4[%c0_6, %c0_7], %13 {strides = array<i32>} : memref<128x128xbf16, #tpu.memory_space<vmem>>, vector<128x128xbf16>,
    return
  }
  func.func @transform_0(%arg0: i32) -> (i32, i32) {
    %c0_i32 = arith.constant 0 : i32
    %c0_i32_0 = arith.constant 0 : i32
    return %arg0, %c0_i32 : i32, i32
  }
  func.func @transform_1(%arg0: i32) -> (i32, i32) {
    %c0_i32 = arith.constant 0 : i32
    %c0_i32_0 = arith.constant 0 : i32
    %c0_i32_1 = arith.constant 0 : i32
    return %c0_i32, %c0_i32_0 : i32, i32
  }
  func.func @transform_2(%arg0: i32) -> (i32, i32) {
    %c0_i32 = arith.constant 0 : i32
    %c0_i32_0 = arith.constant 0 : i32
    %c0_i32_1 = arith.constant 0 : i32
    return %c0_i32, %c0_i32_0 : i32, i32
  }
  func.func @transform_3(%arg0: i32) -> (i32, i32) {
    %c0_i32 = arith.constant 0 : i32
    %c0_i32_0 = arith.constant 0 : i32
    return %arg0, %c0_i32 : i32, i32
  }
}

module attributes {stable_mosaic.version = 11 : i64} {
  func.func @_gemm_stats_kernel(%arg0: i32, %arg1: i32, %arg2: memref<32x512xbf16, #tpu.memory_space<vmem>>, %arg3: memref<512x128xbf16, #tpu.memory_space<vmem>>, %arg4: memref<32x128xbf16, #tpu.memory_space<vmem>>, %arg5: memref<1x2x128xf32, #tpu.memory_space<vmem>>) attributes {dimension_semantics = [#tpu.dimension_semantics<parallel>, #tpu.dimension_semantics<parallel>], iteration_bounds = array<i64: 1, 1>, scalar_prefetch = 0 : i64, scratch_operands = 0 : i64, tpu.core_type = #tpu.core_type<tc>, window_params = [{transform_indices = @transform_0, window_bounds = array<i64: 32, 512>}, {transform_indices = @transform_1, window_bounds = array<i64: 512, 128>}, {transform_indices = @transform_2, window_bounds = array<i64: 32, 128>}, {transform_indices = @transform_3, window_bounds = array<i64: 1, 2, 128>}]} {
    %c0 = arith.constant 0 : index
    %c0_0 = arith.constant 0 : index
    %0 = vector.load %arg2[%c0, %c0_0] : memref<32x512xbf16, #tpu.memory_space<vmem>>, vector<32x512xbf16>
    %c0_1 = arith.constant 0 : index
    %c0_2 = arith.constant 0 : index
    %1 = vector.load %arg3[%c0_1, %c0_2] : memref<512x128xbf16, #tpu.memory_space<vmem>>, vector<512x128xbf16>
    %cst = arith.constant dense<0.000000e+00> : vector<32x128xf32>
    %2 = tpu.matmul %0, %1, %cst {dimension_numbers = #tpu.dot_dimension_numbers<[1], [0], [0], [1], [0, 0, 1, 1], [], []>} : vector<32x512xbf16>, vector<512x128xbf16>, vector<32x128xf32> -> vector<32x128xf32>
    %3 = arith.truncf %2 : vector<32x128xf32> to vector<32x128xbf16>
    %c0_3 = arith.constant 0 : index
    %c0_4 = arith.constant 0 : index
    %4 = vector.load %arg4[%c0_3, %c0_4] : memref<32x128xbf16, #tpu.memory_space<vmem>>, vector<32x128xbf16>
    tpu.vector_store %arg4[%c0_3, %c0_4], %3 {strides = array<i32>} : memref<32x128xbf16, #tpu.memory_space<vmem>>, vector<32x128xbf16>,
    %cst_5 = arith.constant dense<0.000000e+00> : vector<128xf32>
    %5 = vector.multi_reduction <add>, %2, %cst_5 [0] : vector<32x128xf32> to vector<128xf32>
    %6 = vector.shape_cast %5 : vector<128xf32> to vector<1x128xf32>
    %c0_6 = arith.constant 0 : index
    %c0_7 = arith.constant 0 : index
    %c0_8 = arith.constant 0 : index
    %7 = vector.load %arg5[%c0_6, %c0_7, %c0_8] : memref<1x2x128xf32, #tpu.memory_space<vmem>>, vector<1x1x128xf32>
    %8 = vector.shape_cast %7 : vector<1x1x128xf32> to vector<1x128xf32>
    %9 = vector.shape_cast %6 : vector<1x128xf32> to vector<1x1x128xf32>
    tpu.vector_store %arg5[%c0_6, %c0_7, %c0_8], %9 {strides = array<i32>} : memref<1x2x128xf32, #tpu.memory_space<vmem>>, vector<1x1x128xf32>,
    %10 = arith.mulf %2, %2 : vector<32x128xf32>
    %cst_9 = arith.constant dense<0.000000e+00> : vector<128xf32>
    %11 = vector.multi_reduction <add>, %10, %cst_9 [0] : vector<32x128xf32> to vector<128xf32>
    %12 = vector.shape_cast %11 : vector<128xf32> to vector<1x128xf32>
    %c0_10 = arith.constant 0 : index
    %c1 = arith.constant 1 : index
    %c0_11 = arith.constant 0 : index
    %13 = vector.load %arg5[%c0_10, %c1, %c0_11] : memref<1x2x128xf32, #tpu.memory_space<vmem>>, vector<1x1x128xf32>
    %14 = vector.shape_cast %13 : vector<1x1x128xf32> to vector<1x128xf32>
    %15 = vector.shape_cast %12 : vector<1x128xf32> to vector<1x1x128xf32>
    tpu.vector_store %arg5[%c0_10, %c1, %c0_11], %15 {strides = array<i32>} : memref<1x2x128xf32, #tpu.memory_space<vmem>>, vector<1x1x128xf32>,
    return
  }
  func.func @transform_0(%arg0: i32, %arg1: i32) -> (i32, i32) {
    %c0_i32 = arith.constant 0 : i32
    %c0_i32_0 = arith.constant 0 : i32
    return %arg0, %c0_i32 : i32, i32
  }
  func.func @transform_1(%arg0: i32, %arg1: i32) -> (i32, i32) {
    %c0_i32 = arith.constant 0 : i32
    %c0_i32_0 = arith.constant 0 : i32
    return %c0_i32, %arg1 : i32, i32
  }
  func.func @transform_2(%arg0: i32, %arg1: i32) -> (i32, i32) {
    %c0_i32 = arith.constant 0 : i32
    return %arg0, %arg1 : i32, i32
  }
  func.func @transform_3(%arg0: i32, %arg1: i32) -> (i32, i32, i32) {
    %c0_i32 = arith.constant 0 : i32
    %c0_i32_0 = arith.constant 0 : i32
    return %arg0, %c0_i32, %arg1 : i32, i32, i32
  }
}

module attributes {stable_mosaic.version = 11 : i64} {
  func.func @_bn_lrelu_kernel(%arg0: i32, %arg1: memref<32x128xbf16, #tpu.memory_space<vmem>>, %arg2: memref<1x128xf32, #tpu.memory_space<vmem>>, %arg3: memref<1x128xf32, #tpu.memory_space<vmem>>, %arg4: memref<32x128xbf16, #tpu.memory_space<vmem>>) attributes {dimension_semantics = [#tpu.dimension_semantics<parallel>], iteration_bounds = array<i64: 1>, scalar_prefetch = 0 : i64, scratch_operands = 0 : i64, tpu.core_type = #tpu.core_type<tc>, window_params = [{transform_indices = @transform_0, window_bounds = array<i64: 32, 128>}, {pipeline_mode = #tpu.pipeline_mode<synchronous>, transform_indices = @transform_1, window_bounds = array<i64: 1, 128>}, {pipeline_mode = #tpu.pipeline_mode<synchronous>, transform_indices = @transform_2, window_bounds = array<i64: 1, 128>}, {transform_indices = @transform_3, window_bounds = array<i64: 32, 128>}]} {
    %c0 = arith.constant 0 : index
    %c0_0 = arith.constant 0 : index
    %0 = vector.load %arg1[%c0, %c0_0] : memref<32x128xbf16, #tpu.memory_space<vmem>>, vector<32x128xbf16>
    %1 = arith.extf %0 : vector<32x128xbf16> to vector<32x128xf32>
    %c0_1 = arith.constant 0 : index
    %c0_2 = arith.constant 0 : index
    %2 = vector.load %arg2[%c0_1, %c0_2] : memref<1x128xf32, #tpu.memory_space<vmem>>, vector<1x128xf32>
    %3 = vector.broadcast %2 : vector<1x128xf32> to vector<32x128xf32>
    %4 = arith.mulf %1, %3 : vector<32x128xf32>
    %c0_3 = arith.constant 0 : index
    %c0_4 = arith.constant 0 : index
    %5 = vector.load %arg3[%c0_3, %c0_4] : memref<1x128xf32, #tpu.memory_space<vmem>>, vector<1x128xf32>
    %6 = vector.broadcast %5 : vector<1x128xf32> to vector<32x128xf32>
    %7 = arith.addf %4, %6 : vector<32x128xf32>
    %cst = arith.constant 0.000000e+00 : f32
    %8 = vector.broadcast %cst : f32 to vector<32x128xf32>
    %9 = arith.cmpf oge, %7, %8 : vector<32x128xf32>
    %cst_5 = arith.constant 2.000000e-01 : f32
    %10 = vector.broadcast %cst_5 : f32 to vector<32x128xf32>
    %11 = arith.mulf %10, %7 : vector<32x128xf32>
    %12 = arith.select %9, %7, %11 : vector<32x128xi1>, vector<32x128xf32>
    %13 = arith.truncf %12 : vector<32x128xf32> to vector<32x128xbf16>
    %c0_6 = arith.constant 0 : index
    %c0_7 = arith.constant 0 : index
    %14 = vector.load %arg4[%c0_6, %c0_7] : memref<32x128xbf16, #tpu.memory_space<vmem>>, vector<32x128xbf16>
    tpu.vector_store %arg4[%c0_6, %c0_7], %13 {strides = array<i32>} : memref<32x128xbf16, #tpu.memory_space<vmem>>, vector<32x128xbf16>,
    return
  }
  func.func @transform_0(%arg0: i32) -> (i32, i32) {
    %c0_i32 = arith.constant 0 : i32
    %c0_i32_0 = arith.constant 0 : i32
    return %arg0, %c0_i32 : i32, i32
  }
  func.func @transform_1(%arg0: i32) -> (i32, i32) {
    %c0_i32 = arith.constant 0 : i32
    %c0_i32_0 = arith.constant 0 : i32
    %c0_i32_1 = arith.constant 0 : i32
    return %c0_i32, %c0_i32_0 : i32, i32
  }
  func.func @transform_2(%arg0: i32) -> (i32, i32) {
    %c0_i32 = arith.constant 0 : i32
    %c0_i32_0 = arith.constant 0 : i32
    %c0_i32_1 = arith.constant 0 : i32
    return %c0_i32, %c0_i32_0 : i32, i32
  }
  func.func @transform_3(%arg0: i32) -> (i32, i32) {
    %c0_i32 = arith.constant 0 : i32
    %c0_i32_0 = arith.constant 0 : i32
    return %arg0, %c0_i32 : i32, i32
  }
}

</mosaic_0001>

<llo_original>
// kernel: discriminator_forward.7
$region0: #{discriminator_forward.7}
  #allocation0 [shape = 'u32[]', space=smem, size = 0x4, offset = 0x4, fixed_abs, tag = 'smem constant byte address 0x4 - core index']
  #allocation1 [shape = 'u32[72,128]{1,0:T(1,128)}', space=vmem, size = 0x9000, scoped, tag = 'internal scratch']
  %s0 = inlined_call_operand.vmem [shape: bf16[2048,48], index: 0, kind: input, shape index: {}]
  %s1 = inlined_call_operand.vmem [shape: bf16[48,128], index: 1, kind: input, shape index: {}]
  %s2 = inlined_call_operand.vmem [shape: f32[1,128], index: 2, kind: input, shape index: {}]
  %s3 = inlined_call_operand.vmem [shape: bf16[2048,128], index: 3, kind: output, shape index: {}]
  %s4 = sld [smem:[#allocation0]]
  $region22: #{discriminator_forward.7} parent=0
    _
  %s6 = ssub.s32 1, %s4
  %s7 = scalar_select 0, %s6, %s4
  // Predicated region
  $region2: #{discriminator_forward.7} parent=0 // pred_check
    _
  $region3: #{discriminator_forward.7} parent=0 // pred_check_branch
    %9 = sbr.rel (0) target = $region5
  $region4: #{discriminator_forward.7} parent=0 // pred_region
    _
  $region5: #{discriminator_forward.7} parent=0 // pred_fallthru
    _
  // Predicated region
  $region6: #{discriminator_forward.7} parent=0 // pred_check
    _
  $region7: #{discriminator_forward.7} parent=0 // pred_check_branch
    %11 = sbr.rel (0) target = $region9
  $region8: #{discriminator_forward.7} parent=0 // pred_region
    _
  $region9: #{discriminator_forward.7} parent=0 // pred_fallthru
    _
  // Predicated region
  $region10: #{discriminator_forward.7} parent=0 // pred_check
    _
  $region11: #{discriminator_forward.7} parent=0 // pred_check_branch
    %13 = sbr.rel (0) target = $region13
  $region12: #{discriminator_forward.7} parent=0 // pred_region
    _
  $region13: #{discriminator_forward.7} parent=0 // pred_fallthru
    _
  %v15 = vld [vmem:[%s0] sm:$0xf]
  %v16 = vld [vmem:[%s0 + $0x4] sm:$0xf]
  %v17 = vld [vmem:[%s0 + $0x8] sm:$0xf]
  %v18 = vld [vmem:[%s0 + $0xc] sm:$0xf]
  %v19 = vld [vmem:[%s0 + $0x10] sm:$0xf]
  %v20 = vld [vmem:[%s0 + $0x14] sm:$0xf]
  %v21 = vld [vmem:[%s0 + $0x18] sm:$0xf]
  %v22 = vld [vmem:[%s0 + $0x1c] sm:$0xf]
  %v23 = vld [vmem:[%s0 + $0x20] sm:$0xf]
  %v24 = vld [vmem:[%s0 + $0x24] sm:$0xf]
  %v25 = vld [vmem:[%s0 + $0x28] sm:$0xf]
  %v26 = vld [vmem:[%s0 + $0x2c] sm:$0xf]
  %v27 = vld [vmem:[%s0 + $0x30] sm:$0xf]
  %v28 = vld [vmem:[%s0 + $0x34] sm:$0xf]
  %v29 = vld [vmem:[%s0 + $0x38] sm:$0xf]
  %v30 = vld [vmem:[%s0 + $0x3c] sm:$0xf]
  %v31 = vld [vmem:[%s0 + $0x40] sm:$0xf]
  %v32 = vld [vmem:[%s0 + $0x44] sm:$0xf]
  %v33 = vld [vmem:[%s0 + $0x48] sm:$0xf]
  %v34 = vld [vmem:[%s0 + $0x4c] sm:$0xf]
  %v35 = vld [vmem:[%s0 + $0x50] sm:$0xf]
  %v36 = vld [vmem:[%s0 + $0x54] sm:$0xf]
  %v37 = vld [vmem:[%s0 + $0x58] sm:$0xf]
  %v38 = vld [vmem:[%s0 + $0x5c] sm:$0xf]
  %v39 = vld [vmem:[%s0 + $0x60] sm:$0xf]
  %v40 = vld [vmem:[%s0 + $0x64] sm:$0xf]
  %v41 = vld [vmem:[%s0 + $0x68] sm:$0xf]
  %v42 = vld [vmem:[%s0 + $0x6c] sm:$0xf]
  %v43 = vld [vmem:[%s0 + $0x70] sm:$0xf]
  %v44 = vld [vmem:[%s0 + $0x74] sm:$0xf]
  %v45 = vld [vmem:[%s0 + $0x78] sm:$0xf]
  %v46 = vld [vmem:[%s0 + $0x7c] sm:$0xf]
  %v47 = vld [vmem:[%s0 + $0x80] sm:$0xf]
  %v48 = vld [vmem:[%s0 + $0x84] sm:$0xf]
  %v49 = vld [vmem:[%s0 + $0x88] sm:$0xf]
  %v50 = vld [vmem:[%s0 + $0x8c] sm:$0xf]
  %v51 = vld [vmem:[%s0 + $0x90] sm:$0xf]
  %v52 = vld [vmem:[%s0 + $0x94] sm:$0xf]
  %v53 = vld [vmem:[%s0 + $0x98] sm:$0xf]
  %v54 = vld [vmem:[%s0 + $0x9c] sm:$0xf]
  %v55 = vld [vmem:[%s0 + $0xa0] sm:$0xf]
  %v56 = vld [vmem:[%s0 + $0xa4] sm:$0xf]
  %v57 = vld [vmem:[%s0 + $0xa8] sm:$0xf]
  %v58 = vld [vmem:[%s0 + $0xac] sm:$0xf]
  %v59 = vld [vmem:[%s0 + $0xb0] sm:$0xf]
  %v60 = vld [vmem:[%s0 + $0xb4] sm:$0xf]
  %v61 = vld [vmem:[%s0 + $0xb8] sm:$0xf]
  %v62 = vld [vmem:[%s0 + $0xbc] sm:$0xf]
  %v63 = vld [vmem:[%s0 + $0xc0] sm:$0xf]
  %v64 = vld [vmem:[%s0 + $0xc4] sm:$0xf]
  %v65 = vld [vmem:[%s0 + $0xc8] sm:$0xf]
  %v66 = vld [vmem:[%s0 + $0xcc] sm:$0xf]
  %v67 = vld [vmem:[%s0 + $0xd0] sm:$0xf]
  %v68 = vld [vmem:[%s0 + $0xd4] sm:$0xf]
  %v69 = vld [vmem:[%s0 + $0xd8] sm:$0xf]
  %v70 = vld [vmem:[%s0 + $0xdc] sm:$0xf]
  %v71 = vld [vmem:[%s0 + $0xe0] sm:$0xf]
  %v72 = vld [vmem:[%s0 + $0xe4] sm:$0xf]
  %v73 = vld [vmem:[%s0 + $0xe8] sm:$0xf]
  %v74 = vld [vmem:[%s0 + $0xec] sm:$0xf]
  %v75 = vld [vmem:[%s0 + $0xf0] sm:$0xf]
  %v76 = vld [vmem:[%s0 + $0xf4] sm:$0xf]
  %v77 = vld [vmem:[%s0 + $0xf8] sm:$0xf]
  %v78 = vld [vmem:[%s0 + $0xfc] sm:$0xf]
  %v79 = vld [vmem:[%s0 + $0x100] sm:$0xf]
  %v80 = vld [vmem:[%s0 + $0x104] sm:$0xf]
  %v81 = vld [vmem:[%s0 + $0x108] sm:$0xf]
  %v82 = vld [vmem:[%s0 + $0x10c] sm:$0xf]
  %v83 = vld [vmem:[%s0 + $0x110] sm:$0xf]
  %v84 = vld [vmem:[%s0 + $0x114] sm:$0xf]
  %v85 = vld [vmem:[%s0 + $0x118] sm:$0xf]
  %v86 = vld [vmem:[%s0 + $0x11c] sm:$0xf]
  %v87 = vld [vmem:[%s0 + $0x120] sm:$0xf]
  %v88 = vld [vmem:[%s0 + $0x124] sm:$0xf]
  %v89 = vld [vmem:[%s0 + $0x128] sm:$0xf]
  %v90 = vld [vmem:[%s0 + $0x12c] sm:$0xf]
  %v91 = vld [vmem:[%s0 + $0x130] sm:$0xf]
  %v92 = vld [vmem:[%s0 + $0x134] sm:$0xf]
  %v93 = vld [vmem:[%s0 + $0x138] sm:$0xf]
  %v94 = vld [vmem:[%s0 + $0x13c] sm:$0xf]
  %v95 = vld [vmem:[%s0 + $0x140] sm:$0xf]
  %v96 = vld [vmem:[%s0 + $0x144] sm:$0xf]
  %v97 = vld [vmem:[%s0 + $0x148] sm:$0xf]
  %v98 = vld [vmem:[%s0 + $0x14c] sm:$0xf]
  %v99 = vld [vmem:[%s0 + $0x150] sm:$0xf]
  %v100 = vld [vmem:[%s0 + $0x154] sm:$0xf]
  %v101 = vld [vmem:[%s0 + $0x158] sm:$0xf]
  %v102 = vld [vmem:[%s0 + $0x15c] sm:$0xf]
  %v103 = vld [vmem:[%s0 + $0x160] sm:$0xf]
  %v104 = vld [vmem:[%s0 + $0x164] sm:$0xf]
  %v105 = vld [vmem:[%s0 + $0x168] sm:$0xf]
  %v106 = vld [vmem:[%s0 + $0x16c] sm:$0xf]
  %v107 = vld [vmem:[%s0 + $0x170] sm:$0xf]
  %v108 = vld [vmem:[%s0 + $0x174] sm:$0xf]
  %v109 = vld [vmem:[%s0 + $0x178] sm:$0xf]
  %v110 = vld [vmem:[%s0 + $0x17c] sm:$0xf]
  %v111 = vld [vmem:[%s0 + $0x180] sm:$0xf]
  %v112 = vld [vmem:[%s0 + $0x184] sm:$0xf]
  %v113 = vld [vmem:[%s0 + $0x188] sm:$0xf]
  %v114 = vld [vmem:[%s0 + $0x18c] sm:$0xf]
  %v115 = vld [vmem:[%s0 + $0x190] sm:$0xf]
  %v116 = vld [vmem:[%s0 + $0x194] sm:$0xf]
  %v117 = vld [vmem:[%s0 + $0x198] sm:$0xf]
  %v118 = vld [vmem:[%s0 + $0x19c] sm:$0xf]
  %v119 = vld [vmem:[%s0 + $0x1a0] sm:$0xf]
  %v120 = vld [vmem:[%s0 + $0x1a4] sm:$0xf]
  %v121 = vld [vmem:[%s0 + $0x1a8] sm:$0xf]
  %v122 = vld [vmem:[%s0 + $0x1ac] sm:$0xf]
  %v123 = vld [vmem:[%s0 + $0x1b0] sm:$0xf]
  %v124 = vld [vmem:[%s0 + $0x1b4] sm:$0xf]
  %v125 = vld [vmem:[%s0 + $0x1b8] sm:$0xf]
  %v126 = vld [vmem:[%s0 + $0x1bc] sm:$0xf]
  %v127 = vld [vmem:[%s0 + $0x1c0] sm:$0xf]
  %v128 = vld [vmem:[%s0 + $0x1c4] sm:$0xf]
  %v129 = vld [vmem:[%s0 + $0x1c8] sm:$0xf]
  %v130 = vld [vmem:[%s0 + $0x1cc] sm:$0xf]
  %v131 = vld [vmem:[%s0 + $0x1d0] sm:$0xf]
  %v132 = vld [vmem:[%s0 + $0x1d4] sm:$0xf]
  %v133 = vld [vmem:[%s0 + $0x1d8] sm:$0xf]
  %v134 = vld [vmem:[%s0 + $0x1dc] sm:$0xf]
  %v135 = vld [vmem:[%s0 + $0x1e0] sm:$0xf]
  %v136 = vld [vmem:[%s0 + $0x1e4] sm:$0xf]
  %v137 = vld [vmem:[%s0 + $0x1e8] sm:$0xf]
  %v138 = vld [vmem:[%s0 + $0x1ec] sm:$0xf]
  %v139 = vld [vmem:[%s0 + $0x1f0] sm:$0xf]
  %v140 = vld [vmem:[%s0 + $0x1f4] sm:$0xf]
  %v141 = vld [vmem:[%s0 + $0x1f8] sm:$0xf]
  %v142 = vld [vmem:[%s0 + $0x1fc] sm:$0xf]
  %v143 = vld [vmem:[%s0 + $0x200] sm:$0xf]
  %v144 = vld [vmem:[%s0 + $0x204] sm:$0xf]
  %v145 = vld [vmem:[%s0 + $0x208] sm:$0xf]
  %v146 = vld [vmem:[%s0 + $0x20c] sm:$0xf]
  %v147 = vld [vmem:[%s0 + $0x210] sm:$0xf]
  %v148 = vld [vmem:[%s0 + $0x214] sm:$0xf]
  %v149 = vld [vmem:[%s0 + $0x218] sm:$0xf]
  %v150 = vld [vmem:[%s0 + $0x21c] sm:$0xf]
  %v151 = vld [vmem:[%s0 + $0x220] sm:$0xf]
  %v152 = vld [vmem:[%s0 + $0x224] sm:$0xf]
  %v153 = vld [vmem:[%s0 + $0x228] sm:$0xf]
  %v154 = vld [vmem:[%s0 + $0x22c] sm:$0xf]
  %v155 = vld [vmem:[%s0 + $0x230] sm:$0xf]
  %v156 = vld [vmem:[%s0 + $0x234] sm:$0xf]
  %v157 = vld [vmem:[%s0 + $0x238] sm:$0xf]
  %v158 = vld [vmem:[%s0 + $0x23c] sm:$0xf]
  %v159 = vld [vmem:[%s0 + $0x240] sm:$0xf]
  %v160 = vld [vmem:[%s0 + $0x244] sm:$0xf]
  %v161 = vld [vmem:[%s0 + $0x248] sm:$0xf]
  %v162 = vld [vmem:[%s0 + $0x24c] sm:$0xf]
  %v163 = vld [vmem:[%s0 + $0x250] sm:$0xf]
  %v164 = vld [vmem:[%s0 + $0x254] sm:$0xf]
  %v165 = vld [vmem:[%s0 + $0x258] sm:$0xf]
  %v166 = vld [vmem:[%s0 + $0x25c] sm:$0xf]
  %v167 = vld [vmem:[%s0 + $0x260] sm:$0xf]
  %v168 = vld [vmem:[%s0 + $0x264] sm:$0xf]
  %v169 = vld [vmem:[%s0 + $0x268] sm:$0xf]
  %v170 = vld [vmem:[%s0 + $0x26c] sm:$0xf]
  %v171 = vld [vmem:[%s0 + $0x270] sm:$0xf]
  %v172 = vld [vmem:[%s0 + $0x274] sm:$0xf]
  %v173 = vld [vmem:[%s0 + $0x278] sm:$0xf]
  %v174 = vld [vmem:[%s0 + $0x27c] sm:$0xf]
  %v175 = vld [vmem:[%s0 + $0x280] sm:$0xf]
  %v176 = vld [vmem:[%s0 + $0x284] sm:$0xf]
  %v177 = vld [vmem:[%s0 + $0x288] sm:$0xf]
  %v178 = vld [vmem:[%s0 + $0x28c] sm:$0xf]
  %v179 = vld [vmem:[%s0 + $0x290] sm:$0xf]
  %v180 = vld [vmem:[%s0 + $0x294] sm:$0xf]
  %v181 = vld [vmem:[%s0 + $0x298] sm:$0xf]
  %v182 = vld [vmem:[%s0 + $0x29c] sm:$0xf]
  %v183 = vld [vmem:[%s0 + $0x2a0] sm:$0xf]
  %v184 = vld [vmem:[%s0 + $0x2a4] sm:$0xf]
  %v185 = vld [vmem:[%s0 + $0x2a8] sm:$0xf]
  %v186 = vld [vmem:[%s0 + $0x2ac] sm:$0xf]
  %v187 = vld [vmem:[%s0 + $0x2b0] sm:$0xf]
  %v188 = vld [vmem:[%s0 + $0x2b4] sm:$0xf]
  %v189 = vld [vmem:[%s0 + $0x2b8] sm:$0xf]
  %v190 = vld [vmem:[%s0 + $0x2bc] sm:$0xf]
  %v191 = vld [vmem:[%s0 + $0x2c0] sm:$0xf]
  %v192 = vld [vmem:[%s0 + $0x2c4] sm:$0xf]
  %v193 = vld [vmem:[%s0 + $0x2c8] sm:$0xf]
  %v194 = vld [vmem:[%s0 + $0x2cc] sm:$0xf]
  %v195 = vld [vmem:[%s0 + $0x2d0] sm:$0xf]
  %v196 = vld [vmem:[%s0 + $0x2d4] sm:$0xf]
  %v197 = vld [vmem:[%s0 + $0x2d8] sm:$0xf]
  %v198 = vld [vmem:[%s0 + $0x2dc] sm:$0xf]
  %v199 = vld [vmem:[%s0 + $0x2e0] sm:$0xf]
  %v200 = vld [vmem:[%s0 + $0x2e4] sm:$0xf]
  %v201 = vld [vmem:[%s0 + $0x2e8] sm:$0xf]
  %v202 = vld [vmem:[%s0 + $0x2ec] sm:$0xf]
  %v203 = vld [vmem:[%s0 + $0x2f0] sm:$0xf]
  %v204 = vld [vmem:[%s0 + $0x2f4] sm:$0xf]
  %v205 = vld [vmem:[%s0 + $0x2f8] sm:$0xf]
  %v206 = vld [vmem:[%s0 + $0x2fc] sm:$0xf]
  %v207 = vld [vmem:[%s0 + $0x300] sm:$0xf]
  %v208 = vld [vmem:[%s0 + $0x304] sm:$0xf]
  %v209 = vld [vmem:[%s0 + $0x308] sm:$0xf]
  %v210 = vld [vmem:[%s0 + $0x30c] sm:$0xf]
  %v211 = vld [vmem:[%s0 + $0x310] sm:$0xf]
  %v212 = vld [vmem:[%s0 + $0x314] sm:$0xf]
  %v213 = vld [vmem:[%s0 + $0x318] sm:$0xf]
  %v214 = vld [vmem:[%s0 + $0x31c] sm:$0xf]
  %v215 = vld [vmem:[%s0 + $0x320] sm:$0xf]
  %v216 = vld [vmem:[%s0 + $0x324] sm:$0xf]
  %v217 = vld [vmem:[%s0 + $0x328] sm:$0xf]
  %v218 = vld [vmem:[%s0 + $0x32c] sm:$0xf]
  %v219 = vld [vmem:[%s0 + $0x330] sm:$0xf]
  %v220 = vld [vmem:[%s0 + $0x334] sm:$0xf]
  %v221 = vld [vmem:[%s0 + $0x338] sm:$0xf]
  %v222 = vld [vmem:[%s0 + $0x33c] sm:$0xf]
  %v223 = vld [vmem:[%s0 + $0x340] sm:$0xf]
  %v224 = vld [vmem:[%s0 + $0x344] sm:$0xf]
  %v225 = vld [vmem:[%s0 + $0x348] sm:$0xf]
  %v226 = vld [vmem:[%s0 + $0x34c] sm:$0xf]
  %v227 = vld [vmem:[%s0 + $0x350] sm:$0xf]
  %v228 = vld [vmem:[%s0 + $0x354] sm:$0xf]
  %v229 = vld [vmem:[%s0 + $0x358] sm:$0xf]
  %v230 = vld [vmem:[%s0 + $0x35c] sm:$0xf]
  %v231 = vld [vmem:[%s0 + $0x360] sm:$0xf]
  %v232 = vld [vmem:[%s0 + $0x364] sm:$0xf]
  %v233 = vld [vmem:[%s0 + $0x368] sm:$0xf]
  %v234 = vld [vmem:[%s0 + $0x36c] sm:$0xf]
  %v235 = vld [vmem:[%s0 + $0x370] sm:$0xf]
  %v236 = vld [vmem:[%s0 + $0x374] sm:$0xf]
  %v237 = vld [vmem:[%s0 + $0x378] sm:$0xf]
  %v238 = vld [vmem:[%s0 + $0x37c] sm:$0xf]
  %v239 = vld [vmem:[%s0 + $0x380] sm:$0xf]
  %v240 = vld [vmem:[%s0 + $0x384] sm:$0xf]
  %v241 = vld [vmem:[%s0 + $0x388] sm:$0xf]
  %v242 = vld [vmem:[%s0 + $0x38c] sm:$0xf]
  %v243 = vld [vmem:[%s0 + $0x390] sm:$0xf]
  %v244 = vld [vmem:[%s0 + $0x394] sm:$0xf]
  %v245 = vld [vmem:[%s0 + $0x398] sm:$0xf]
  %v246 = vld [vmem:[%s0 + $0x39c] sm:$0xf]
  %v247 = vld [vmem:[%s0 + $0x3a0] sm:$0xf]
  %v248 = vld [vmem:[%s0 + $0x3a4] sm:$0xf]
  %v249 = vld [vmem:[%s0 + $0x3a8] sm:$0xf]
  %v250 = vld [vmem:[%s0 + $0x3ac] sm:$0xf]
  %v251 = vld [vmem:[%s0 + $0x3b0] sm:$0xf]
  %v252 = vld [vmem:[%s0 + $0x3b4] sm:$0xf]
  %v253 = vld [vmem:[%s0 + $0x3b8] sm:$0xf]
  %v254 = vld [vmem:[%s0 + $0x3bc] sm:$0xf]
  %v255 = vld [vmem:[%s0 + $0x3c0] sm:$0xf]
  %v256 = vld [vmem:[%s0 + $0x3c4] sm:$0xf]
  %v257 = vld [vmem:[%s0 + $0x3c8] sm:$0xf]
  %v258 = vld [vmem:[%s0 + $0x3cc] sm:$0xf]
  %v259 = vld [vmem:[%s0 + $0x3d0] sm:$0xf]
  %v260 = vld [vmem:[%s0 + $0x3d4] sm:$0xf]
  %v261 = vld [vmem:[%s0 + $0x3d8] sm:$0xf]
  %v262 = vld [vmem:[%s0 + $0x3dc] sm:$0xf]
  %v263 = vld [vmem:[%s0 + $0x3e0] sm:$0xf]
  %v264 = vld [vmem:[%s0 + $0x3e4] sm:$0xf]
  %v265 = vld [vmem:[%s0 + $0x3e8] sm:$0xf]
  %v266 = vld [vmem:[%s0 + $0x3ec] sm:$0xf]
  %v267 = vld [vmem:[%s0 + $0x3f0] sm:$0xf]
  %v268 = vld [vmem:[%s0 + $0x3f4] sm:$0xf]
  %v269 = vld [vmem:[%s0 + $0x3f8] sm:$0xf]
  %v270 = vld [vmem:[%s0 + $0x3fc] sm:$0xf]
  %v271 = vld [vmem:[%s1] sm:$0xf]
  %v272 = vld [vmem:[%s1 + $0x4] sm:$0xf]
  %v273 = vld [vmem:[%s1 + $0x8] sm:$0xf]
  %v274 = vld [vmem:[%s1 + $0xc] sm:$0xf]
  %v275 = vld [vmem:[%s1 + $0x10] sm:$0xf]
  %v276 = vld [vmem:[%s1 + $0x14] sm:$0xf]
  %v277 = vld [vmem:[%s2] sm:$0x1]
  %v279 = vperm.slane %v277, 0
  %v537 = vunpack.c.l.b16 %v15
  %v538 = vunpack.c.l.b16 %v16
  %v539 = vunpack.c.l.b16 %v17
  %v540 = vunpack.c.l.b16 %v18
  %v541 = vunpack.c.l.b16 %v19
  %v542 = vunpack.c.l.b16 %v20
  %v543 = vunpack.c.l.b16 %v21
  %v544 = vunpack.c.l.b16 %v22
  %v545 = vunpack.c.l.b16 %v23
  %v546 = vunpack.c.l.b16 %v24
  %v547 = vunpack.c.l.b16 %v25
  %v548 = vunpack.c.l.b16 %v26
  %v549 = vunpack.c.l.b16 %v27
  %v550 = vunpack.c.l.b16 %v28
  %v551 = vunpack.c.l.b16 %v29
  %v552 = vunpack.c.l.b16 %v30
  %v553 = vunpack.c.l.b16 %v31
  %v554 = vunpack.c.l.b16 %v32
  %v555 = vunpack.c.l.b16 %v33
  %v556 = vunpack.c.l.b16 %v34
  %v557 = vunpack.c.l.b16 %v35
  %v558 = vunpack.c.l.b16 %v36
  %v559 = vunpack.c.l.b16 %v37
  %v560 = vunpack.c.l.b16 %v38
  %v561 = vunpack.c.l.b16 %v39
  %v562 = vunpack.c.l.b16 %v40
  %v563 = vunpack.c.l.b16 %v41
  %v564 = vunpack.c.l.b16 %v42
  %v565 = vunpack.c.l.b16 %v43
  %v566 = vunpack.c.l.b16 %v44
  %v567 = vunpack.c.l.b16 %v45
  %v568 = vunpack.c.l.b16 %v46
  %v569 = vunpack.c.l.b16 %v47
  %v570 = vunpack.c.l.b16 %v48
  %v571 = vunpack.c.l.b16 %v49
  %v572 = vunpack.c.l.b16 %v50
  %v573 = vunpack.c.l.b16 %v51
  %v574 = vunpack.c.l.b16 %v52
  %v575 = vunpack.c.l.b16 %v53
  %v576 = vunpack.c.l.b16 %v54
  %v577 = vunpack.c.l.b16 %v55
  %v578 = vunpack.c.l.b16 %v56
  %v579 = vunpack.c.l.b16 %v57
  %v580 = vunpack.c.l.b16 %v58
  %v581 = vunpack.c.l.b16 %v59
  %v582 = vunpack.c.l.b16 %v60
  %v583 = vunpack.c.l.b16 %v61
  %v584 = vunpack.c.l.b16 %v62
  %v585 = vunpack.c.l.b16 %v63
  %v586 = vunpack.c.l.b16 %v64
  %v587 = vunpack.c.l.b16 %v65
  %v588 = vunpack.c.l.b16 %v66
  %v589 = vunpack.c.l.b16 %v67
  %v590 = vunpack.c.l.b16 %v68
  %v591 = vunpack.c.l.b16 %v69
  %v592 = vunpack.c.l.b16 %v70
  %v593 = vunpack.c.l.b16 %v71
  %v594 = vunpack.c.l.b16 %v72
  %v595 = vunpack.c.l.b16 %v73
  %v596 = vunpack.c.l.b16 %v74
  %v597 = vunpack.c.l.b16 %v75
  %v598 = vunpack.c.l.b16 %v76
  %v599 = vunpack.c.l.b16 %v77
  %v600 = vunpack.c.l.b16 %v78
  %v601 = vunpack.c.l.b16 %v79
  %v602 = vunpack.c.l.b16 %v80
  %v603 = vunpack.c.l.b16 %v81
  %v604 = vunpack.c.l.b16 %v82
  %v605 = vunpack.c.l.b16 %v83
  %v606 = vunpack.c.l.b16 %v84
  %v607 = vunpack.c.l.b16 %v85
  %v608 = vunpack.c.l.b16 %v86
  %v609 = vunpack.c.l.b16 %v87
  %v610 = vunpack.c.l.b16 %v88
  %v611 = vunpack.c.l.b16 %v89
  %v612 = vunpack.c.l.b16 %v90
  %v613 = vunpack.c.l.b16 %v91
  %v614 = vunpack.c.l.b16 %v92
  %v615 = vunpack.c.l.b16 %v93
  %v616 = vunpack.c.l.b16 %v94
  %v617 = vunpack.c.l.b16 %v95
  %v618 = vunpack.c.l.b16 %v96
  %v619 = vunpack.c.l.b16 %v97
  %v620 = vunpack.c.l.b16 %v98
  %v621 = vunpack.c.l.b16 %v99
  %v622 = vunpack.c.l.b16 %v100
  %v623 = vunpack.c.l.b16 %v101
  %v624 = vunpack.c.l.b16 %v102
  %v625 = vunpack.c.l.b16 %v103
  %v626 = vunpack.c.l.b16 %v104
  %v627 = vunpack.c.l.b16 %v105
  %v628 = vunpack.c.l.b16 %v106
  %v629 = vunpack.c.l.b16 %v107
  %v630 = vunpack.c.l.b16 %v108
  %v631 = vunpack.c.l.b16 %v109
  %v632 = vunpack.c.l.b16 %v110
  %v633 = vunpack.c.l.b16 %v111
  %v634 = vunpack.c.l.b16 %v112
  %v635 = vunpack.c.l.b16 %v113
  %v636 = vunpack.c.l.b16 %v114
  %v637 = vunpack.c.l.b16 %v115
  %v638 = vunpack.c.l.b16 %v116
  %v639 = vunpack.c.l.b16 %v117
  %v640 = vunpack.c.l.b16 %v118
  %v641 = vunpack.c.l.b16 %v119
  %v642 = vunpack.c.l.b16 %v120
  %v643 = vunpack.c.l.b16 %v121
  %v644 = vunpack.c.l.b16 %v122
  %v645 = vunpack.c.l.b16 %v123
  %v646 = vunpack.c.l.b16 %v124
  %v647 = vunpack.c.l.b16 %v125
  %v648 = vunpack.c.l.b16 %v126
  %v649 = vunpack.c.l.b16 %v127
  %v650 = vunpack.c.l.b16 %v128
  %v651 = vunpack.c.l.b16 %v129
  %v652 = vunpack.c.l.b16 %v130
  %v653 = vunpack.c.l.b16 %v131
  %v654 = vunpack.c.l.b16 %v132
  %v655 = vunpack.c.l.b16 %v133
  %v656 = vunpack.c.l.b16 %v134
  %v657 = vunpack.c.l.b16 %v135
  %v658 = vunpack.c.l.b16 %v136
  %v659 = vunpack.c.l.b16 %v137
  %v660 = vunpack.c.l.b16 %v138
  %v661 = vunpack.c.l.b16 %v139
  %v662 = vunpack.c.l.b16 %v140
  %v663 = vunpack.c.l.b16 %v141
  %v664 = vunpack.c.l.b16 %v142
  %v665 = vunpack.c.l.b16 %v143
  %v666 = vunpack.c.l.b16 %v144
  %v667 = vunpack.c.l.b16 %v145
  %v668 = vunpack.c.l.b16 %v146
  %v669 = vunpack.c.l.b16 %v147
  %v670 = vunpack.c.l.b16 %v148
  %v671 = vunpack.c.l.b16 %v149
  %v672 = vunpack.c.l.b16 %v150
  %v673 = vunpack.c.l.b16 %v151
  %v674 = vunpack.c.l.b16 %v152
  %v675 = vunpack.c.l.b16 %v153
  %v676 = vunpack.c.l.b16 %v154
  %v677 = vunpack.c.l.b16 %v155
  %v678 = vunpack.c.l.b16 %v156
  %v679 = vunpack.c.l.b16 %v157
  %v680 = vunpack.c.l.b16 %v158
  %v681 = vunpack.c.l.b16 %v159
  %v682 = vunpack.c.l.b16 %v160
  %v683 = vunpack.c.l.b16 %v161
  %v684 = vunpack.c.l.b16 %v162
  %v685 = vunpack.c.l.b16 %v163
  %v686 = vunpack.c.l.b16 %v164
  %v687 = vunpack.c.l.b16 %v165
  %v688 = vunpack.c.l.b16 %v166
  %v689 = vunpack.c.l.b16 %v167
  %v690 = vunpack.c.l.b16 %v168
  %v691 = vunpack.c.l.b16 %v169
  %v692 = vunpack.c.l.b16 %v170
  %v693 = vunpack.c.l.b16 %v171
  %v694 = vunpack.c.l.b16 %v172
  %v695 = vunpack.c.l.b16 %v173
  %v696 = vunpack.c.l.b16 %v174
  %v697 = vunpack.c.l.b16 %v175
  %v698 = vunpack.c.l.b16 %v176
  %v699 = vunpack.c.l.b16 %v177
  %v700 = vunpack.c.l.b16 %v178
  %v701 = vunpack.c.l.b16 %v179
  %v702 = vunpack.c.l.b16 %v180
  %v703 = vunpack.c.l.b16 %v181
  %v704 = vunpack.c.l.b16 %v182
  %v705 = vunpack.c.l.b16 %v183
  %v706 = vunpack.c.l.b16 %v184
  %v707 = vunpack.c.l.b16 %v185
  %v708 = vunpack.c.l.b16 %v186
  %v709 = vunpack.c.l.b16 %v187
  %v710 = vunpack.c.l.b16 %v188
  %v711 = vunpack.c.l.b16 %v189
  %v712 = vunpack.c.l.b16 %v190
  %v713 = vunpack.c.l.b16 %v191
  %v714 = vunpack.c.l.b16 %v192
  %v715 = vunpack.c.l.b16 %v193
  %v716 = vunpack.c.l.b16 %v194
  %v717 = vunpack.c.l.b16 %v195
  %v718 = vunpack.c.l.b16 %v196
  %v719 = vunpack.c.l.b16 %v197
  %v720 = vunpack.c.l.b16 %v198
  %v721 = vunpack.c.l.b16 %v199
  %v722 = vunpack.c.l.b16 %v200
  %v723 = vunpack.c.l.b16 %v201
  %v724 = vunpack.c.l.b16 %v202
  %v725 = vunpack.c.l.b16 %v203
  %v726 = vunpack.c.l.b16 %v204
  %v727 = vunpack.c.l.b16 %v205
  %v728 = vunpack.c.l.b16 %v206
  %v729 = vunpack.c.l.b16 %v207
  %v730 = vunpack.c.l.b16 %v208
  %v731 = vunpack.c.l.b16 %v209
  %v732 = vunpack.c.l.b16 %v210
  %v733 = vunpack.c.l.b16 %v211
  %v734 = vunpack.c.l.b16 %v212
  %v735 = vunpack.c.l.b16 %v213
  %v736 = vunpack.c.l.b16 %v214
  %v737 = vunpack.c.l.b16 %v215
  %v738 = vunpack.c.l.b16 %v216
  %v739 = vunpack.c.l.b16 %v217
  %v740 = vunpack.c.l.b16 %v218
  %v741 = vunpack.c.l.b16 %v219
  %v742 = vunpack.c.l.b16 %v220
  %v743 = vunpack.c.l.b16 %v221
  %v744 = vunpack.c.l.b16 %v222
  %v745 = vunpack.c.l.b16 %v223
  %v746 = vunpack.c.l.b16 %v224
  %v747 = vunpack.c.l.b16 %v225
  %v748 = vunpack.c.l.b16 %v226
  %v749 = vunpack.c.l.b16 %v227
  %v750 = vunpack.c.l.b16 %v228
  %v751 = vunpack.c.l.b16 %v229
  %v752 = vunpack.c.l.b16 %v230
  %v753 = vunpack.c.l.b16 %v231
  %v754 = vunpack.c.l.b16 %v232
  %v755 = vunpack.c.l.b16 %v233
  %v756 = vunpack.c.l.b16 %v234
  %v757 = vunpack.c.l.b16 %v235
  %v758 = vunpack.c.l.b16 %v236
  %v759 = vunpack.c.l.b16 %v237
  %v760 = vunpack.c.l.b16 %v238
  %v761 = vunpack.c.l.b16 %v239
  %v762 = vunpack.c.l.b16 %v240
  %v763 = vunpack.c.l.b16 %v241
  %v764 = vunpack.c.l.b16 %v242
  %v765 = vunpack.c.l.b16 %v243
  %v766 = vunpack.c.l.b16 %v244
  %v767 = vunpack.c.l.b16 %v245
  %v768 = vunpack.c.l.b16 %v246
  %v769 = vunpack.c.l.b16 %v247
  %v770 = vunpack.c.l.b16 %v248
  %v771 = vunpack.c.l.b16 %v249
  %v772 = vunpack.c.l.b16 %v250
  %v773 = vunpack.c.l.b16 %v251
  %v774 = vunpack.c.l.b16 %v252
  %v775 = vunpack.c.l.b16 %v253
  %v776 = vunpack.c.l.b16 %v254
  %v777 = vunpack.c.l.b16 %v255
  %v778 = vunpack.c.l.b16 %v256
  %v779 = vunpack.c.l.b16 %v257
  %v780 = vunpack.c.l.b16 %v258
  %v781 = vunpack.c.l.b16 %v259
  %v782 = vunpack.c.l.b16 %v260
  %v783 = vunpack.c.l.b16 %v261
  %v784 = vunpack.c.l.b16 %v262
  %v785 = vunpack.c.l.b16 %v263
  %v786 = vunpack.c.l.b16 %v264
  %v787 = vunpack.c.l.b16 %v265
  %v788 = vunpack.c.l.b16 %v266
  %v789 = vunpack.c.l.b16 %v267
  %v790 = vunpack.c.l.b16 %v268
  %v791 = vunpack.c.l.b16 %v269
  %v792 = vunpack.c.l.b16 %v270
  %v793 = vpack.c.b16 %v538, %v537
  %v794 = vpack.c.b16 %v540, %v539
  %v795 = vpack.c.b16 %v542, %v541
  %v796 = vpack.c.b16 %v544, %v543
  %v797 = vpack.c.b16 %v546, %v545
  %v798 = vpack.c.b16 %v548, %v547
  %v799 = vpack.c.b16 %v550, %v549
  %v800 = vpack.c.b16 %v552, %v551
  %v801 = vpack.c.b16 %v554, %v553
  %v802 = vpack.c.b16 %v556, %v555
  %v803 = vpack.c.b16 %v558, %v557
  %v804 = vpack.c.b16 %v560, %v559
  %v805 = vpack.c.b16 %v562, %v561
  %v806 = vpack.c.b16 %v564, %v563
  %v807 = vpack.c.b16 %v566, %v565
  %v808 = vpack.c.b16 %v568, %v567
  %v809 = vpack.c.b16 %v570, %v569
  %v810 = vpack.c.b16 %v572, %v571
  %v811 = vpack.c.b16 %v574, %v573
  %v812 = vpack.c.b16 %v576, %v575
  %v813 = vpack.c.b16 %v578, %v577
  %v814 = vpack.c.b16 %v580, %v579
  %v815 = vpack.c.b16 %v582, %v581
  %v816 = vpack.c.b16 %v584, %v583
  %v817 = vpack.c.b16 %v586, %v585
  %v818 = vpack.c.b16 %v588, %v587
  %v819 = vpack.c.b16 %v590, %v589
  %v820 = vpack.c.b16 %v592, %v591
  %v821 = vpack.c.b16 %v594, %v593
  %v822 = vpack.c.b16 %v596, %v595
  %v823 = vpack.c.b16 %v598, %v597
  %v824 = vpack.c.b16 %v600, %v599
  %v825 = vpack.c.b16 %v602, %v601
  %v826 = vpack.c.b16 %v604, %v603
  %v827 = vpack.c.b16 %v606, %v605
  %v828 = vpack.c.b16 %v608, %v607
  %v829 = vpack.c.b16 %v610, %v609
  %v830 = vpack.c.b16 %v612, %v611
  %v831 = vpack.c.b16 %v614, %v613
  %v832 = vpack.c.b16 %v616, %v615
  %v833 = vpack.c.b16 %v618, %v617
  %v834 = vpack.c.b16 %v620, %v619
  %v835 = vpack.c.b16 %v622, %v621
  %v836 = vpack.c.b16 %v624, %v623
  %v837 = vpack.c.b16 %v626, %v625
  %v838 = vpack.c.b16 %v628, %v627
  %v839 = vpack.c.b16 %v630, %v629
  %v840 = vpack.c.b16 %v632, %v631
  %v841 = vpack.c.b16 %v634, %v633
  %v842 = vpack.c.b16 %v636, %v635
  %v843 = vpack.c.b16 %v638, %v637
  %v844 = vpack.c.b16 %v640, %v639
  %v845 = vpack.c.b16 %v642, %v641
  %v846 = vpack.c.b16 %v644, %v643
  %v847 = vpack.c.b16 %v646, %v645
  %v848 = vpack.c.b16 %v648, %v647
  %v849 = vpack.c.b16 %v650, %v649
  %v850 = vpack.c.b16 %v652, %v651
  %v851 = vpack.c.b16 %v654, %v653
  %v852 = vpack.c.b16 %v656, %v655
  %v853 = vpack.c.b16 %v658, %v657
  %v854 = vpack.c.b16 %v660, %v659
  %v855 = vpack.c.b16 %v662, %v661
  %v856 = vpack.c.b16 %v664, %v663
  %v857 = vpack.c.b16 %v666, %v665
  %v858 = vpack.c.b16 %v668, %v667
  %v859 = vpack.c.b16 %v670, %v669
  %v860 = vpack.c.b16 %v672, %v671
  %v861 = vpack.c.b16 %v674, %v673
  %v862 = vpack.c.b16 %v676, %v675
  %v863 = vpack.c.b16 %v678, %v677
  %v864 = vpack.c.b16 %v680, %v679
  %v865 = vpack.c.b16 %v682, %v681
  %v866 = vpack.c.b16 %v684, %v683
  %v867 = vpack.c.b16 %v686, %v685
  %v868 = vpack.c.b16 %v688, %v687
  %v869 = vpack.c.b16 %v690, %v689
  %v870 = vpack.c.b16 %v692, %v691
  %v871 = vpack.c.b16 %v694, %v693
  %v872 = vpack.c.b16 %v696, %v695
  %v873 = vpack.c.b16 %v698, %v697
  %v874 = vpack.c.b16 %v700, %v699
  %v875 = vpack.c.b16 %v702, %v701
  %v876 = vpack.c.b16 %v704, %v703
  %v877 = vpack.c.b16 %v706, %v705
  %v878 = vpack.c.b16 %v708, %v707
  %v879 = vpack.c.b16 %v710, %v709
  %v880 = vpack.c.b16 %v712, %v711
  %v881 = vpack.c.b16 %v714, %v713
  %v882 = vpack.c.b16 %v716, %v715
  %v883 = vpack.c.b16 %v718, %v717
  %v884 = vpack.c.b16 %v720, %v719
  %v885 = vpack.c.b16 %v722, %v721
  %v886 = vpack.c.b16 %v724, %v723
  %v887 = vpack.c.b16 %v726, %v725
  %v888 = vpack.c.b16 %v728, %v727
  %v889 = vpack.c.b16 %v730, %v729
  %v890 = vpack.c.b16 %v732, %v731
  %v891 = vpack.c.b16 %v734, %v733
  %v892 = vpack.c.b16 %v736, %v735
  %v893 = vpack.c.b16 %v738, %v737
  %v894 = vpack.c.b16 %v740, %v739
  %v895 = vpack.c.b16 %v742, %v741
  %v896 = vpack.c.b16 %v744, %v743
  %v897 = vpack.c.b16 %v746, %v745
  %v898 = vpack.c.b16 %v748, %v747
  %v899 = vpack.c.b16 %v750, %v749
  %v900 = vpack.c.b16 %v752, %v751
  %v901 = vpack.c.b16 %v754, %v753
  %v902 = vpack.c.b16 %v756, %v755
  %v903 = vpack.c.b16 %v758, %v757
  %v904 = vpack.c.b16 %v760, %v759
  %v905 = vpack.c.b16 %v762, %v761
  %v906 = vpack.c.b16 %v764, %v763
  %v907 = vpack.c.b16 %v766, %v765
  %v908 = vpack.c.b16 %v768, %v767
  %v909 = vpack.c.b16 %v770, %v769
  %v910 = vpack.c.b16 %v772, %v771
  %v911 = vpack.c.b16 %v774, %v773
  %v912 = vpack.c.b16 %v776, %v775
  %v913 = vpack.c.b16 %v778, %v777
  %v914 = vpack.c.b16 %v780, %v779
  %v915 = vpack.c.b16 %v782, %v781
  %v916 = vpack.c.b16 %v784, %v783
  %v917 = vpack.c.b16 %v786, %v785
  %v918 = vpack.c.b16 %v788, %v787
  %v919 = vpack.c.b16 %v790, %v789
  %v920 = vpack.c.b16 %v792, %v791
  %v927 = vunpack.c.l.b16 %v271
  %v928 = vunpack.c.l.b16 %v272
  %v929 = vunpack.c.l.b16 %v273
  %v930 = vunpack.c.l.b16 %v274
  %v931 = vunpack.c.l.b16 %v275
  %v932 = vunpack.c.l.b16 %v276
  %v933 = vpack.c.b16 %v928, %v927
  %v934 = vpack.c.b16 %v930, %v929
  %v935 = vpack.c.b16 %v932, %v931
  %vm939 = vcmask 392192
  %v941 = vsel %vm939, %v793, 0
  %v944 = vsel %vm939, %v794, 0
  %v947 = vsel %vm939, %v795, 0
  %v950 = vsel %vm939, %v796, 0
  %v953 = vsel %vm939, %v797, 0
  %v956 = vsel %vm939, %v798, 0
  %v959 = vsel %vm939, %v799, 0
  %v962 = vsel %vm939, %v800, 0
  %v965 = vsel %vm939, %v801, 0
  %v968 = vsel %vm939, %v802, 0
  %v971 = vsel %vm939, %v803, 0
  %v974 = vsel %vm939, %v804, 0
  %v977 = vsel %vm939, %v805, 0
  %v980 = vsel %vm939, %v806, 0
  %v983 = vsel %vm939, %v807, 0
  %v986 = vsel %vm939, %v808, 0
  %v989 = vsel %vm939, %v809, 0
  %v992 = vsel %vm939, %v810, 0
  %v995 = vsel %vm939, %v811, 0
  %v998 = vsel %vm939, %v812, 0
  %v1001 = vsel %vm939, %v813, 0
  %v1004 = vsel %vm939, %v814, 0
  %v1007 = vsel %vm939, %v815, 0
  %v1010 = vsel %vm939, %v816, 0
  %v1013 = vsel %vm939, %v817, 0
  %v1016 = vsel %vm939, %v818, 0
  %v1019 = vsel %vm939, %v819, 0
  %v1022 = vsel %vm939, %v820, 0
  %v1025 = vsel %vm939, %v821, 0
  %v1028 = vsel %vm939, %v822, 0
  %v1031 = vsel %vm939, %v823, 0
  %v1034 = vsel %vm939, %v824, 0
  %v1037 = vsel %vm939, %v825, 0
  %v1040 = vsel %vm939, %v826, 0
  %v1043 = vsel %vm939, %v827, 0
  %v1046 = vsel %vm939, %v828, 0
  %v1049 = vsel %vm939, %v829, 0
  %v1052 = vsel %vm939, %v830, 0
  %v1055 = vsel %vm939, %v831, 0
  %v1058 = vsel %vm939, %v832, 0
  %v1061 = vsel %vm939, %v833, 0
  %v1064 = vsel %vm939, %v834, 0
  %v1067 = vsel %vm939, %v835, 0
  %v1070 = vsel %vm939, %v836, 0
  %v1073 = vsel %vm939, %v837, 0
  %v1076 = vsel %vm939, %v838, 0
  %v1079 = vsel %vm939, %v839, 0
  %v1082 = vsel %vm939, %v840, 0
  %v1085 = vsel %vm939, %v841, 0
  %v1088 = vsel %vm939, %v842, 0
  %v1091 = vsel %vm939, %v843, 0
  %v1094 = vsel %vm939, %v844, 0
  %v1097 = vsel %vm939, %v845, 0
  %v1100 = vsel %vm939, %v846, 0
  %v1103 = vsel %vm939, %v847, 0
  %v1106 = vsel %vm939, %v848, 0
  %v1109 = vsel %vm939, %v849, 0
  %v1112 = vsel %vm939, %v850, 0
  %v1115 = vsel %vm939, %v851, 0
  %v1118 = vsel %vm939, %v852, 0
  %v1121 = vsel %vm939, %v853, 0
  %v1124 = vsel %vm939, %v854, 0
  %v1127 = vsel %vm939, %v855, 0
  %v1130 = vsel %vm939, %v856, 0
  %v1133 = vsel %vm939, %v857, 0
  %v1136 = vsel %vm939, %v858, 0
  %v1139 = vsel %vm939, %v859, 0
  %v1142 = vsel %vm939, %v860, 0
  %v1145 = vsel %vm939, %v861, 0
  %v1148 = vsel %vm939, %v862, 0
  %v1151 = vsel %vm939, %v863, 0
  %v1154 = vsel %vm939, %v864, 0
  %v1157 = vsel %vm939, %v865, 0
  %v1160 = vsel %vm939, %v866, 0
  %v1163 = vsel %vm939, %v867, 0
  %v1166 = vsel %vm939, %v868, 0
  %v1169 = vsel %vm939, %v869, 0
  %v1172 = vsel %vm939, %v870, 0
  %v1175 = vsel %vm939, %v871, 0
  %v1178 = vsel %vm939, %v872, 0
  %v1181 = vsel %vm939, %v873, 0
  %v1184 = vsel %vm939, %v874, 0
  %v1187 = vsel %vm939, %v875, 0
  %v1190 = vsel %vm939, %v876, 0
  %v1193 = vsel %vm939, %v877, 0
  %v1196 = vsel %vm939, %v878, 0
  %v1199 = vsel %vm939, %v879, 0
  %v1202 = vsel %vm939, %v880, 0
  %v1205 = vsel %vm939, %v881, 0
  %v1208 = vsel %vm939, %v882, 0
  %v1211 = vsel %vm939, %v883, 0
  %v1214 = vsel %vm939, %v884, 0
  %v1217 = vsel %vm939, %v885, 0
  %v1220 = vsel %vm939, %v886, 0
  %v1223 = vsel %vm939, %v887, 0
  %v1226 = vsel %vm939, %v888, 0
  %v1229 = vsel %vm939, %v889, 0
  %v1232 = vsel %vm939, %v890, 0
  %v1235 = vsel %vm939, %v891, 0
  %v1238 = vsel %vm939, %v892, 0
  %v1241 = vsel %vm939, %v893, 0
  %v1244 = vsel %vm939, %v894, 0
  %v1247 = vsel %vm939, %v895, 0
  %v1250 = vsel %vm939, %v896, 0
  %v1253 = vsel %vm939, %v897, 0
  %v1256 = vsel %vm939, %v898, 0
  %v1259 = vsel %vm939, %v899, 0
  %v1262 = vsel %vm939, %v900, 0
  %v1265 = vsel %vm939, %v901, 0
  %v1268 = vsel %vm939, %v902, 0
  %v1271 = vsel %vm939, %v903, 0
  %v1274 = vsel %vm939, %v904, 0
  %v1277 = vsel %vm939, %v905, 0
  %v1280 = vsel %vm939, %v906, 0
  %v1283 = vsel %vm939, %v907, 0
  %v1286 = vsel %vm939, %v908, 0
  %v1289 = vsel %vm939, %v909, 0
  %v1292 = vsel %vm939, %v910, 0
  %v1295 = vsel %vm939, %v911, 0
  %v1298 = vsel %vm939, %v912, 0
  %v1301 = vsel %vm939, %v913, 0
  %v1304 = vsel %vm939, %v914, 0
  %v1307 = vsel %vm939, %v915, 0
  %v1310 = vsel %vm939, %v916, 0
  %v1313 = vsel %vm939, %v917, 0
  %v1316 = vsel %vm939, %v918, 0
  %v1319 = vsel %vm939, %v919, 0
  %v1322 = vsel %vm939, %v920, 0
  %1324 = vmatpush.bf16.msra.mxu0 0
  %1325 = vmatpush.bf16.msra.mxu0 0
  %1326 = vmatpush.bf16.msra.mxu0 0
  %1327 = vmatpush.bf16.msra.mxu0 0
  %1328 = vmatpush.bf16.msra.mxu0 0
  %1329 = vmatpush.bf16.msra.mxu0 %v935
  %1330 = vmatpush.bf16.msra.mxu0 %v934
  %1331 = vmatpush.bf16.msra.mxu0 %v933
  %1332 = vmatmul.bf16.gmra.mxu0 %v941
  %v1333 = vpop.f32.mrf.mxu0
  %v1334 = vadd.f32 %v279, %v1333
  %v1335 = vpop.f32.mrf.mxu0
  %v1336 = vadd.f32 %v279, %v1335
  %1337 = vmatmul.bf16.gmra.mxu0 %v944
  %v1338 = vpop.f32.mrf.mxu0
  %v1339 = vadd.f32 %v279, %v1338
  %v1340 = vpop.f32.mrf.mxu0
  %v1341 = vadd.f32 %v279, %v1340
  %1342 = vmatmul.bf16.gmra.mxu0 %v947
  %v1343 = vpop.f32.mrf.mxu0
  %v1344 = vadd.f32 %v279, %v1343
  %v1345 = vpop.f32.mrf.mxu0
  %v1346 = vadd.f32 %v279, %v1345
  %1347 = vmatmul.bf16.gmra.mxu0 %v950
  %v1348 = vpop.f32.mrf.mxu0
  %v1349 = vadd.f32 %v279, %v1348
  %v1350 = vpop.f32.mrf.mxu0
  %v1351 = vadd.f32 %v279, %v1350
  %1352 = vmatmul.bf16.gmra.mxu0 %v953
  %v1353 = vpop.f32.mrf.mxu0
  %v1354 = vadd.f32 %v279, %v1353
  %v1355 = vpop.f32.mrf.mxu0
  %v1356 = vadd.f32 %v279, %v1355
  %1357 = vmatmul.bf16.gmra.mxu0 %v956
  %v1358 = vpop.f32.mrf.mxu0
  %v1359 = vadd.f32 %v279, %v1358
  %v1360 = vpop.f32.mrf.mxu0
  %v1361 = vadd.f32 %v279, %v1360
  %1362 = vmatmul.bf16.gmra.mxu0 %v959
  %v1363 = vpop.f32.mrf.mxu0
  %v1364 = vadd.f32 %v279, %v1363
  %v1365 = vpop.f32.mrf.mxu0
  %v1366 = vadd.f32 %v279, %v1365
  %1367 = vmatmul.bf16.gmra.mxu0 %v962
  %v1368 = vpop.f32.mrf.mxu0
  %v1369 = vadd.f32 %v279, %v1368
  %v1370 = vpop.f32.mrf.mxu0
  %v1371 = vadd.f32 %v279, %v1370
  %1372 = vmatmul.bf16.gmra.mxu0 %v965
  %v1373 = vpop.f32.mrf.mxu0
  %v1374 = vadd.f32 %v279, %v1373
  %v1375 = vpop.f32.mrf.mxu0
  %v1376 = vadd.f32 %v279, %v1375
  %1377 = vmatmul.bf16.gmra.mxu0 %v968
  %v1378 = vpop.f32.mrf.mxu0
  %v1379 = vadd.f32 %v279, %v1378
  %v1380 = vpop.f32.mrf.mxu0
  %v1381 = vadd.f32 %v279, %v1380
  %1382 = vmatmul.bf16.gmra.mxu0 %v971
  %v1383 = vpop.f32.mrf.mxu0
  %v1384 = vadd.f32 %v279, %v1383
  %v1385 = vpop.f32.mrf.mxu0
  %v1386 = vadd.f32 %v279, %v1385
  %1387 = vmatmul.bf16.gmra.mxu0 %v974
  %v1388 = vpop.f32.mrf.mxu0
  %v1389 = vadd.f32 %v279, %v1388
  %v1390 = vpop.f32.mrf.mxu0
  %v1391 = vadd.f32 %v279, %v1390
  %1392 = vmatmul.bf16.gmra.mxu0 %v977
  %v1393 = vpop.f32.mrf.mxu0
  %v1394 = vadd.f32 %v279, %v1393
  %v1395 = vpop.f32.mrf.mxu0
  %v1396 = vadd.f32 %v279, %v1395
  %1397 = vmatmul.bf16.gmra.mxu0 %v980
  %v1398 = vpop.f32.mrf.mxu0
  %v1399 = vadd.f32 %v279, %v1398
  %v1400 = vpop.f32.mrf.mxu0
  %v1401 = vadd.f32 %v279, %v1400
  %1402 = vmatmul.bf16.gmra.mxu0 %v983
  %v1403 = vpop.f32.mrf.mxu0
  %v1404 = vadd.f32 %v279, %v1403
  %v1405 = vpop.f32.mrf.mxu0
  %v1406 = vadd.f32 %v279, %v1405
  %1407 = vmatmul.bf16.gmra.mxu0 %v986
  %v1408 = vpop.f32.mrf.mxu0
  %v1409 = vadd.f32 %v279, %v1408
  %v1410 = vpop.f32.mrf.mxu0
  %v1411 = vadd.f32 %v279, %v1410
  %1412 = vmatmul.bf16.gmra.mxu0 %v989
  %v1413 = vpop.f32.mrf.mxu0
  %v1414 = vadd.f32 %v279, %v1413
  %v1415 = vpop.f32.mrf.mxu0
  %v1416 = vadd.f32 %v279, %v1415
  %1417 = vmatmul.bf16.gmra.mxu0 %v992
  %v1418 = vpop.f32.mrf.mxu0
  %v1419 = vadd.f32 %v279, %v1418
  %v1420 = vpop.f32.mrf.mxu0
  %v1421 = vadd.f32 %v279, %v1420
  %1422 = vmatmul.bf16.gmra.mxu0 %v995
  %v1423 = vpop.f32.mrf.mxu0
  %v1424 = vadd.f32 %v279, %v1423
  %v1425 = vpop.f32.mrf.mxu0
  %v1426 = vadd.f32 %v279, %v1425
  %1427 = vmatmul.bf16.gmra.mxu0 %v998
  %v1428 = vpop.f32.mrf.mxu0
  %v1429 = vadd.f32 %v279, %v1428
  %v1430 = vpop.f32.mrf.mxu0
  %v1431 = vadd.f32 %v279, %v1430
  %1432 = vmatmul.bf16.gmra.mxu0 %v1001
  %v1433 = vpop.f32.mrf.mxu0
  %v1434 = vadd.f32 %v279, %v1433
  %v1435 = vpop.f32.mrf.mxu0
  %v1436 = vadd.f32 %v279, %v1435
  %1437 = vmatmul.bf16.gmra.mxu0 %v1004
  %v1438 = vpop.f32.mrf.mxu0
  %v1439 = vadd.f32 %v279, %v1438
  %v1440 = vpop.f32.mrf.mxu0
  %v1441 = vadd.f32 %v279, %v1440
  %1442 = vmatmul.bf16.gmra.mxu0 %v1007
  %v1443 = vpop.f32.mrf.mxu0
  %v1444 = vadd.f32 %v279, %v1443
  %v1445 = vpop.f32.mrf.mxu0
  %v1446 = vadd.f32 %v279, %v1445
  %1447 = vmatmul.bf16.gmra.mxu0 %v1010
  %v1448 = vpop.f32.mrf.mxu0
  %v1449 = vadd.f32 %v279, %v1448
  %v1450 = vpop.f32.mrf.mxu0
  %v1451 = vadd.f32 %v279, %v1450
  %1452 = vmatmul.bf16.gmra.mxu0 %v1013
  %v1453 = vpop.f32.mrf.mxu0
  %v1454 = vadd.f32 %v279, %v1453
  %v1455 = vpop.f32.mrf.mxu0
  %v1456 = vadd.f32 %v279, %v1455
  %1457 = vmatmul.bf16.gmra.mxu0 %v1016
  %v1458 = vpop.f32.mrf.mxu0
  %v1459 = vadd.f32 %v279, %v1458
  %v1460 = vpop.f32.mrf.mxu0
  %v1461 = vadd.f32 %v279, %v1460
  %1462 = vmatmul.bf16.gmra.mxu0 %v1019
  %v1463 = vpop.f32.mrf.mxu0
  %v1464 = vadd.f32 %v279, %v1463
  %v1465 = vpop.f32.mrf.mxu0
  %v1466 = vadd.f32 %v279, %v1465
  %1467 = vmatmul.bf16.gmra.mxu0 %v1022
  %v1468 = vpop.f32.mrf.mxu0
  %v1469 = vadd.f32 %v279, %v1468
  %v1470 = vpop.f32.mrf.mxu0
  %v1471 = vadd.f32 %v279, %v1470
  %1472 = vmatmul.bf16.gmra.mxu0 %v1025
  %v1473 = vpop.f32.mrf.mxu0
  %v1474 = vadd.f32 %v279, %v1473
  %v1475 = vpop.f32.mrf.mxu0
  %v1476 = vadd.f32 %v279, %v1475
  %1477 = vmatmul.bf16.gmra.mxu0 %v1028
  %v1478 = vpop.f32.mrf.mxu0
  %v1479 = vadd.f32 %v279, %v1478
  %v1480 = vpop.f32.mrf.mxu0
  %v1481 = vadd.f32 %v279, %v1480
  %1482 = vmatmul.bf16.gmra.mxu0 %v1031
  %v1483 = vpop.f32.mrf.mxu0
  %v1484 = vadd.f32 %v279, %v1483
  %v1485 = vpop.f32.mrf.mxu0
  %v1486 = vadd.f32 %v279, %v1485
  %1487 = vmatmul.bf16.gmra.mxu0 %v1034
  %v1488 = vpop.f32.mrf.mxu0
  %v1489 = vadd.f32 %v279, %v1488
  %v1490 = vpop.f32.mrf.mxu0
  %v1491 = vadd.f32 %v279, %v1490
  %1492 = vmatmul.bf16.gmra.mxu0 %v1037
  %v1493 = vpop.f32.mrf.mxu0
  %v1494 = vadd.f32 %v279, %v1493
  %v1495 = vpop.f32.mrf.mxu0
  %v1496 = vadd.f32 %v279, %v1495
  %1497 = vmatmul.bf16.gmra.mxu0 %v1040
  %v1498 = vpop.f32.mrf.mxu0
  %v1499 = vadd.f32 %v279, %v1498
  %v1500 = vpop.f32.mrf.mxu0
  %v1501 = vadd.f32 %v279, %v1500
  %1502 = vmatmul.bf16.gmra.mxu0 %v1043
  %v1503 = vpop.f32.mrf.mxu0
  %v1504 = vadd.f32 %v279, %v1503
  %v1505 = vpop.f32.mrf.mxu0
  %v1506 = vadd.f32 %v279, %v1505
  %1507 = vmatmul.bf16.gmra.mxu0 %v1046
  %v1508 = vpop.f32.mrf.mxu0
  %v1509 = vadd.f32 %v279, %v1508
  %v1510 = vpop.f32.mrf.mxu0
  %v1511 = vadd.f32 %v279, %v1510
  %1512 = vmatmul.bf16.gmra.mxu0 %v1049
  %v1513 = vpop.f32.mrf.mxu0
  %v1514 = vadd.f32 %v279, %v1513
  %v1515 = vpop.f32.mrf.mxu0
  %v1516 = vadd.f32 %v279, %v1515
  %1517 = vmatmul.bf16.gmra.mxu0 %v1052
  %v1518 = vpop.f32.mrf.mxu0
  %v1519 = vadd.f32 %v279, %v1518
  %v1520 = vpop.f32.mrf.mxu0
  %v1521 = vadd.f32 %v279, %v1520
  %1522 = vmatmul.bf16.gmra.mxu0 %v1055
  %v1523 = vpop.f32.mrf.mxu0
  %v1524 = vadd.f32 %v279, %v1523
  %v1525 = vpop.f32.mrf.mxu0
  %v1526 = vadd.f32 %v279, %v1525
  %1527 = vmatmul.bf16.gmra.mxu0 %v1058
  %v1528 = vpop.f32.mrf.mxu0
  %v1529 = vadd.f32 %v279, %v1528
  %v1530 = vpop.f32.mrf.mxu0
  %v1531 = vadd.f32 %v279, %v1530
  %1532 = vmatmul.bf16.gmra.mxu0 %v1061
  %v1533 = vpop.f32.mrf.mxu0
  %v1534 = vadd.f32 %v279, %v1533
  %v1535 = vpop.f32.mrf.mxu0
  %v1536 = vadd.f32 %v279, %v1535
  %1537 = vmatmul.bf16.gmra.mxu0 %v1064
  %v1538 = vpop.f32.mrf.mxu0
  %v1539 = vadd.f32 %v279, %v1538
  %v1540 = vpop.f32.mrf.mxu0
  %v1541 = vadd.f32 %v279, %v1540
  %1542 = vmatmul.bf16.gmra.mxu0 %v1067
  %v1543 = vpop.f32.mrf.mxu0
  %v1544 = vadd.f32 %v279, %v1543
  %v1545 = vpop.f32.mrf.mxu0
  %v1546 = vadd.f32 %v279, %v1545
  %1547 = vmatmul.bf16.gmra.mxu0 %v1070
  %v1548 = vpop.f32.mrf.mxu0
  %v1549 = vadd.f32 %v279, %v1548
  %v1550 = vpop.f32.mrf.mxu0
  %v1551 = vadd.f32 %v279, %v1550
  %1552 = vmatmul.bf16.gmra.mxu0 %v1073
  %v1553 = vpop.f32.mrf.mxu0
  %v1554 = vadd.f32 %v279, %v1553
  %v1555 = vpop.f32.mrf.mxu0
  %v1556 = vadd.f32 %v279, %v1555
  %1557 = vmatmul.bf16.gmra.mxu0 %v1076
  %v1558 = vpop.f32.mrf.mxu0
  %v1559 = vadd.f32 %v279, %v1558
  %v1560 = vpop.f32.mrf.mxu0
  %v1561 = vadd.f32 %v279, %v1560
  %1562 = vmatmul.bf16.gmra.mxu0 %v1079
  %v1563 = vpop.f32.mrf.mxu0
  %v1564 = vadd.f32 %v279, %v1563
  %v1565 = vpop.f32.mrf.mxu0
  %v1566 = vadd.f32 %v279, %v1565
  %1567 = vmatmul.bf16.gmra.mxu0 %v1082
  %v1568 = vpop.f32.mrf.mxu0
  %v1569 = vadd.f32 %v279, %v1568
  %v1570 = vpop.f32.mrf.mxu0
  %v1571 = vadd.f32 %v279, %v1570
  %1572 = vmatmul.bf16.gmra.mxu0 %v1085
  %v1573 = vpop.f32.mrf.mxu0
  %v1574 = vadd.f32 %v279, %v1573
  %v1575 = vpop.f32.mrf.mxu0
  %v1576 = vadd.f32 %v279, %v1575
  %1577 = vmatmul.bf16.gmra.mxu0 %v1088
  %v1578 = vpop.f32.mrf.mxu0
  %v1579 = vadd.f32 %v279, %v1578
  %v1580 = vpop.f32.mrf.mxu0
  %v1581 = vadd.f32 %v279, %v1580
  %1582 = vmatmul.bf16.gmra.mxu0 %v1091
  %v1583 = vpop.f32.mrf.mxu0
  %v1584 = vadd.f32 %v279, %v1583
  %v1585 = vpop.f32.mrf.mxu0
  %v1586 = vadd.f32 %v279, %v1585
  %1587 = vmatmul.bf16.gmra.mxu0 %v1094
  %v1588 = vpop.f32.mrf.mxu0
  %v1589 = vadd.f32 %v279, %v1588
  %v1590 = vpop.f32.mrf.mxu0
  %v1591 = vadd.f32 %v279, %v1590
  %1592 = vmatmul.bf16.gmra.mxu0 %v1097
  %v1593 = vpop.f32.mrf.mxu0
  %v1594 = vadd.f32 %v279, %v1593
  %v1595 = vpop.f32.mrf.mxu0
  %v1596 = vadd.f32 %v279, %v1595
  %1597 = vmatmul.bf16.gmra.mxu0 %v1100
  %v1598 = vpop.f32.mrf.mxu0
  %v1599 = vadd.f32 %v279, %v1598
  %v1600 = vpop.f32.mrf.mxu0
  %v1601 = vadd.f32 %v279, %v1600
  %1602 = vmatmul.bf16.gmra.mxu0 %v1103
  %v1603 = vpop.f32.mrf.mxu0
  %v1604 = vadd.f32 %v279, %v1603
  %v1605 = vpop.f32.mrf.mxu0
  %v1606 = vadd.f32 %v279, %v1605
  %1607 = vmatmul.bf16.gmra.mxu0 %v1106
  %v1608 = vpop.f32.mrf.mxu0
  %v1609 = vadd.f32 %v279, %v1608
  %v1610 = vpop.f32.mrf.mxu0
  %v1611 = vadd.f32 %v279, %v1610
  %1612 = vmatmul.bf16.gmra.mxu0 %v1109
  %v1613 = vpop.f32.mrf.mxu0
  %v1614 = vadd.f32 %v279, %v1613
  %v1615 = vpop.f32.mrf.mxu0
  %v1616 = vadd.f32 %v279, %v1615
  %1617 = vmatmul.bf16.gmra.mxu0 %v1112
  %v1618 = vpop.f32.mrf.mxu0
  %v1619 = vadd.f32 %v279, %v1618
  %v1620 = vpop.f32.mrf.mxu0
  %v1621 = vadd.f32 %v279, %v1620
  %1622 = vmatmul.bf16.gmra.mxu0 %v1115
  %v1623 = vpop.f32.mrf.mxu0
  %v1624 = vadd.f32 %v279, %v1623
  %v1625 = vpop.f32.mrf.mxu0
  %v1626 = vadd.f32 %v279, %v1625
  %1627 = vmatmul.bf16.gmra.mxu0 %v1118
  %v1628 = vpop.f32.mrf.mxu0
  %v1629 = vadd.f32 %v279, %v1628
  %v1630 = vpop.f32.mrf.mxu0
  %v1631 = vadd.f32 %v279, %v1630
  %1632 = vmatmul.bf16.gmra.mxu0 %v1121
  %v1633 = vpop.f32.mrf.mxu0
  %v1634 = vadd.f32 %v279, %v1633
  %v1635 = vpop.f32.mrf.mxu0
  %v1636 = vadd.f32 %v279, %v1635
  %1637 = vmatmul.bf16.gmra.mxu0 %v1124
  %v1638 = vpop.f32.mrf.mxu0
  %v1639 = vadd.f32 %v279, %v1638
  %v1640 = vpop.f32.mrf.mxu0
  %v1641 = vadd.f32 %v279, %v1640
  %1642 = vmatmul.bf16.gmra.mxu0 %v1127
  %v1643 = vpop.f32.mrf.mxu0
  %v1644 = vadd.f32 %v279, %v1643
  %v1645 = vpop.f32.mrf.mxu0
  %v1646 = vadd.f32 %v279, %v1645
  %1647 = vmatmul.bf16.gmra.mxu0 %v1130
  %v1648 = vpop.f32.mrf.mxu0
  %v1649 = vadd.f32 %v279, %v1648
  %v1650 = vpop.f32.mrf.mxu0
  %v1651 = vadd.f32 %v279, %v1650
  %1652 = vmatmul.bf16.gmra.mxu0 %v1133
  %v1653 = vpop.f32.mrf.mxu0
  %v1654 = vadd.f32 %v279, %v1653
  %v1655 = vpop.f32.mrf.mxu0
  %v1656 = vadd.f32 %v279, %v1655
  %1657 = vmatmul.bf16.gmra.mxu0 %v1136
  %v1658 = vpop.f32.mrf.mxu0
  %v1659 = vadd.f32 %v279, %v1658
  %v1660 = vpop.f32.mrf.mxu0
  %v1661 = vadd.f32 %v279, %v1660
  %1662 = vmatmul.bf16.gmra.mxu0 %v1139
  %v1663 = vpop.f32.mrf.mxu0
  %v1664 = vadd.f32 %v279, %v1663
  %v1665 = vpop.f32.mrf.mxu0
  %v1666 = vadd.f32 %v279, %v1665
  %1667 = vmatmul.bf16.gmra.mxu0 %v1142
  %v1668 = vpop.f32.mrf.mxu0
  %v1669 = vadd.f32 %v279, %v1668
  %v1670 = vpop.f32.mrf.mxu0
  %v1671 = vadd.f32 %v279, %v1670
  %1672 = vmatmul.bf16.gmra.mxu0 %v1145
  %v1673 = vpop.f32.mrf.mxu0
  %v1674 = vadd.f32 %v279, %v1673
  %v1675 = vpop.f32.mrf.mxu0
  %v1676 = vadd.f32 %v279, %v1675
  %1677 = vmatmul.bf16.gmra.mxu0 %v1148
  %v1678 = vpop.f32.mrf.mxu0
  %v1679 = vadd.f32 %v279, %v1678
  %v1680 = vpop.f32.mrf.mxu0
  %v1681 = vadd.f32 %v279, %v1680
  %1682 = vmatmul.bf16.gmra.mxu0 %v1151
  %v1683 = vpop.f32.mrf.mxu0
  %v1684 = vadd.f32 %v279, %v1683
  %v1685 = vpop.f32.mrf.mxu0
  %v1686 = vadd.f32 %v279, %v1685
  %1687 = vmatmul.bf16.gmra.mxu0 %v1154
  %v1688 = vpop.f32.mrf.mxu0
  %v1689 = vadd.f32 %v279, %v1688
  %v1690 = vpop.f32.mrf.mxu0
  %v1691 = vadd.f32 %v279, %v1690
  %1692 = vmatmul.bf16.gmra.mxu0 %v1157
  %v1693 = vpop.f32.mrf.mxu0
  %v1694 = vadd.f32 %v279, %v1693
  %v1695 = vpop.f32.mrf.mxu0
  %v1696 = vadd.f32 %v279, %v1695
  %1697 = vmatmul.bf16.gmra.mxu0 %v1160
  %v1698 = vpop.f32.mrf.mxu0
  %v1699 = vadd.f32 %v279, %v1698
  %v1700 = vpop.f32.mrf.mxu0
  %v1701 = vadd.f32 %v279, %v1700
  %1702 = vmatmul.bf16.gmra.mxu0 %v1163
  %v1703 = vpop.f32.mrf.mxu0
  %v1704 = vadd.f32 %v279, %v1703
  %v1705 = vpop.f32.mrf.mxu0
  %v1706 = vadd.f32 %v279, %v1705
  %1707 = vmatmul.bf16.gmra.mxu0 %v1166
  %v1708 = vpop.f32.mrf.mxu0
  %v1709 = vadd.f32 %v279, %v1708
  %v1710 = vpop.f32.mrf.mxu0
  %v1711 = vadd.f32 %v279, %v1710
  %1712 = vmatmul.bf16.gmra.mxu0 %v1169
  %v1713 = vpop.f32.mrf.mxu0
  %v1714 = vadd.f32 %v279, %v1713
  %v1715 = vpop.f32.mrf.mxu0
  %v1716 = vadd.f32 %v279, %v1715
  %1717 = vmatmul.bf16.gmra.mxu0 %v1172
  %v1718 = vpop.f32.mrf.mxu0
  %v1719 = vadd.f32 %v279, %v1718
  %v1720 = vpop.f32.mrf.mxu0
  %v1721 = vadd.f32 %v279, %v1720
  %1722 = vmatmul.bf16.gmra.mxu0 %v1175
  %v1723 = vpop.f32.mrf.mxu0
  %v1724 = vadd.f32 %v279, %v1723
  %v1725 = vpop.f32.mrf.mxu0
  %v1726 = vadd.f32 %v279, %v1725
  %1727 = vmatmul.bf16.gmra.mxu0 %v1178
  %v1728 = vpop.f32.mrf.mxu0
  %v1729 = vadd.f32 %v279, %v1728
  %v1730 = vpop.f32.mrf.mxu0
  %v1731 = vadd.f32 %v279, %v1730
  %1732 = vmatmul.bf16.gmra.mxu0 %v1181
  %v1733 = vpop.f32.mrf.mxu0
  %v1734 = vadd.f32 %v279, %v1733
  %v1735 = vpop.f32.mrf.mxu0
  %v1736 = vadd.f32 %v279, %v1735
  %1737 = vmatmul.bf16.gmra.mxu0 %v1184
  %v1738 = vpop.f32.mrf.mxu0
  %v1739 = vadd.f32 %v279, %v1738
  %v1740 = vpop.f32.mrf.mxu0
  %v1741 = vadd.f32 %v279, %v1740
  %1742 = vmatmul.bf16.gmra.mxu0 %v1187
  %v1743 = vpop.f32.mrf.mxu0
  %v1744 = vadd.f32 %v279, %v1743
  %v1745 = vpop.f32.mrf.mxu0
  %v1746 = vadd.f32 %v279, %v1745
  %1747 = vmatmul.bf16.gmra.mxu0 %v1190
  %v1748 = vpop.f32.mrf.mxu0
  %v1749 = vadd.f32 %v279, %v1748
  %v1750 = vpop.f32.mrf.mxu0
  %v1751 = vadd.f32 %v279, %v1750
  %1752 = vmatmul.bf16.gmra.mxu0 %v1193
  %v1753 = vpop.f32.mrf.mxu0
  %v1754 = vadd.f32 %v279, %v1753
  %v1755 = vpop.f32.mrf.mxu0
  %v1756 = vadd.f32 %v279, %v1755
  %1757 = vmatmul.bf16.gmra.mxu0 %v1196
  %v1758 = vpop.f32.mrf.mxu0
  %v1759 = vadd.f32 %v279, %v1758
  %v1760 = vpop.f32.mrf.mxu0
  %v1761 = vadd.f32 %v279, %v1760
  %1762 = vmatmul.bf16.gmra.mxu0 %v1199
  %v1763 = vpop.f32.mrf.mxu0
  %v1764 = vadd.f32 %v279, %v1763
  %v1765 = vpop.f32.mrf.mxu0
  %v1766 = vadd.f32 %v279, %v1765
  %1767 = vmatmul.bf16.gmra.mxu0 %v1202
  %v1768 = vpop.f32.mrf.mxu0
  %v1769 = vadd.f32 %v279, %v1768
  %v1770 = vpop.f32.mrf.mxu0
  %v1771 = vadd.f32 %v279, %v1770
  %1772 = vmatmul.bf16.gmra.mxu0 %v1205
  %v1773 = vpop.f32.mrf.mxu0
  %v1774 = vadd.f32 %v279, %v1773
  %v1775 = vpop.f32.mrf.mxu0
  %v1776 = vadd.f32 %v279, %v1775
  %1777 = vmatmul.bf16.gmra.mxu0 %v1208
  %v1778 = vpop.f32.mrf.mxu0
  %v1779 = vadd.f32 %v279, %v1778
  %v1780 = vpop.f32.mrf.mxu0
  %v1781 = vadd.f32 %v279, %v1780
  %1782 = vmatmul.bf16.gmra.mxu0 %v1211
  %v1783 = vpop.f32.mrf.mxu0
  %v1784 = vadd.f32 %v279, %v1783
  %v1785 = vpop.f32.mrf.mxu0
  %v1786 = vadd.f32 %v279, %v1785
  %1787 = vmatmul.bf16.gmra.mxu0 %v1214
  %v1788 = vpop.f32.mrf.mxu0
  %v1789 = vadd.f32 %v279, %v1788
  %v1790 = vpop.f32.mrf.mxu0
  %v1791 = vadd.f32 %v279, %v1790
  %1792 = vmatmul.bf16.gmra.mxu0 %v1217
  %v1793 = vpop.f32.mrf.mxu0
  %v1794 = vadd.f32 %v279, %v1793
  %v1795 = vpop.f32.mrf.mxu0
  %v1796 = vadd.f32 %v279, %v1795
  %1797 = vmatmul.bf16.gmra.mxu0 %v1220
  %v1798 = vpop.f32.mrf.mxu0
  %v1799 = vadd.f32 %v279, %v1798
  %v1800 = vpop.f32.mrf.mxu0
  %v1801 = vadd.f32 %v279, %v1800
  %1802 = vmatmul.bf16.gmra.mxu0 %v1223
  %v1803 = vpop.f32.mrf.mxu0
  %v1804 = vadd.f32 %v279, %v1803
  %v1805 = vpop.f32.mrf.mxu0
  %v1806 = vadd.f32 %v279, %v1805
  %1807 = vmatmul.bf16.gmra.mxu0 %v1226
  %v1808 = vpop.f32.mrf.mxu0
  %v1809 = vadd.f32 %v279, %v1808
  %v1810 = vpop.f32.mrf.mxu0
  %v1811 = vadd.f32 %v279, %v1810
  %1812 = vmatmul.bf16.gmra.mxu0 %v1229
  %v1813 = vpop.f32.mrf.mxu0
  %v1814 = vadd.f32 %v279, %v1813
  %v1815 = vpop.f32.mrf.mxu0
  %v1816 = vadd.f32 %v279, %v1815
  %1817 = vmatmul.bf16.gmra.mxu0 %v1232
  %v1818 = vpop.f32.mrf.mxu0
  %v1819 = vadd.f32 %v279, %v1818
  %v1820 = vpop.f32.mrf.mxu0
  %v1821 = vadd.f32 %v279, %v1820
  %1822 = vmatmul.bf16.gmra.mxu0 %v1235
  %v1823 = vpop.f32.mrf.mxu0
  %v1824 = vadd.f32 %v279, %v1823
  %v1825 = vpop.f32.mrf.mxu0
  %v1826 = vadd.f32 %v279, %v1825
  %1827 = vmatmul.bf16.gmra.mxu0 %v1238
  %v1828 = vpop.f32.mrf.mxu0
  %v1829 = vadd.f32 %v279, %v1828
  %v1830 = vpop.f32.mrf.mxu0
  %v1831 = vadd.f32 %v279, %v1830
  %1832 = vmatmul.bf16.gmra.mxu0 %v1241
  %v1833 = vpop.f32.mrf.mxu0
  %v1834 = vadd.f32 %v279, %v1833
  %v1835 = vpop.f32.mrf.mxu0
  %v1836 = vadd.f32 %v279, %v1835
  %1837 = vmatmul.bf16.gmra.mxu0 %v1244
  %v1838 = vpop.f32.mrf.mxu0
  %v1839 = vadd.f32 %v279, %v1838
  %v1840 = vpop.f32.mrf.mxu0
  %v1841 = vadd.f32 %v279, %v1840
  %1842 = vmatmul.bf16.gmra.mxu0 %v1247
  %v1843 = vpop.f32.mrf.mxu0
  %v1844 = vadd.f32 %v279, %v1843
  %v1845 = vpop.f32.mrf.mxu0
  %v1846 = vadd.f32 %v279, %v1845
  %1847 = vmatmul.bf16.gmra.mxu0 %v1250
  %v1848 = vpop.f32.mrf.mxu0
  %v1849 = vadd.f32 %v279, %v1848
  %v1850 = vpop.f32.mrf.mxu0
  %v1851 = vadd.f32 %v279, %v1850
  %1852 = vmatmul.bf16.gmra.mxu0 %v1253
  %v1853 = vpop.f32.mrf.mxu0
  %v1854 = vadd.f32 %v279, %v1853
  %v1855 = vpop.f32.mrf.mxu0
  %v1856 = vadd.f32 %v279, %v1855
  %1857 = vmatmul.bf16.gmra.mxu0 %v1256
  %v1858 = vpop.f32.mrf.mxu0
  %v1859 = vadd.f32 %v279, %v1858
  %v1860 = vpop.f32.mrf.mxu0
  %v1861 = vadd.f32 %v279, %v1860
  %1862 = vmatmul.bf16.gmra.mxu0 %v1259
  %v1863 = vpop.f32.mrf.mxu0
  %v1864 = vadd.f32 %v279, %v1863
  %v1865 = vpop.f32.mrf.mxu0
  %v1866 = vadd.f32 %v279, %v1865
  %1867 = vmatmul.bf16.gmra.mxu0 %v1262
  %v1868 = vpop.f32.mrf.mxu0
  %v1869 = vadd.f32 %v279, %v1868
  %v1870 = vpop.f32.mrf.mxu0
  %v1871 = vadd.f32 %v279, %v1870
  %1872 = vmatmul.bf16.gmra.mxu0 %v1265
  %v1873 = vpop.f32.mrf.mxu0
  %v1874 = vadd.f32 %v279, %v1873
  %v1875 = vpop.f32.mrf.mxu0
  %v1876 = vadd.f32 %v279, %v1875
  %1877 = vmatmul.bf16.gmra.mxu0 %v1268
  %v1878 = vpop.f32.mrf.mxu0
  %v1879 = vadd.f32 %v279, %v1878
  %v1880 = vpop.f32.mrf.mxu0
  %v1881 = vadd.f32 %v279, %v1880
  %1882 = vmatmul.bf16.gmra.mxu0 %v1271
  %v1883 = vpop.f32.mrf.mxu0
  %v1884 = vadd.f32 %v279, %v1883
  %v1885 = vpop.f32.mrf.mxu0
  %v1886 = vadd.f32 %v279, %v1885
  %1887 = vmatmul.bf16.gmra.mxu0 %v1274
  %v1888 = vpop.f32.mrf.mxu0
  %v1889 = vadd.f32 %v279, %v1888
  %v1890 = vpop.f32.mrf.mxu0
  %v1891 = vadd.f32 %v279, %v1890
  %1892 = vmatmul.bf16.gmra.mxu0 %v1277
  %v1893 = vpop.f32.mrf.mxu0
  %v1894 = vadd.f32 %v279, %v1893
  %v1895 = vpop.f32.mrf.mxu0
  %v1896 = vadd.f32 %v279, %v1895
  %1897 = vmatmul.bf16.gmra.mxu0 %v1280
  %v1898 = vpop.f32.mrf.mxu0
  %v1899 = vadd.f32 %v279, %v1898
  %v1900 = vpop.f32.mrf.mxu0
  %v1901 = vadd.f32 %v279, %v1900
  %1902 = vmatmul.bf16.gmra.mxu0 %v1283
  %v1903 = vpop.f32.mrf.mxu0
  %v1904 = vadd.f32 %v279, %v1903
  %v1905 = vpop.f32.mrf.mxu0
  %v1906 = vadd.f32 %v279, %v1905
  %1907 = vmatmul.bf16.gmra.mxu0 %v1286
  %v1908 = vpop.f32.mrf.mxu0
  %v1909 = vadd.f32 %v279, %v1908
  %v1910 = vpop.f32.mrf.mxu0
  %v1911 = vadd.f32 %v279, %v1910
  %1912 = vmatmul.bf16.gmra.mxu0 %v1289
  %v1913 = vpop.f32.mrf.mxu0
  %v1914 = vadd.f32 %v279, %v1913
  %v1915 = vpop.f32.mrf.mxu0
  %v1916 = vadd.f32 %v279, %v1915
  %1917 = vmatmul.bf16.gmra.mxu0 %v1292
  %v1918 = vpop.f32.mrf.mxu0
  %v1919 = vadd.f32 %v279, %v1918
  %v1920 = vpop.f32.mrf.mxu0
  %v1921 = vadd.f32 %v279, %v1920
  %1922 = vmatmul.bf16.gmra.mxu0 %v1295
  %v1923 = vpop.f32.mrf.mxu0
  %v1924 = vadd.f32 %v279, %v1923
  %v1925 = vpop.f32.mrf.mxu0
  %v1926 = vadd.f32 %v279, %v1925
  %1927 = vmatmul.bf16.gmra.mxu0 %v1298
  %v1928 = vpop.f32.mrf.mxu0
  %v1929 = vadd.f32 %v279, %v1928
  %v1930 = vpop.f32.mrf.mxu0
  %v1931 = vadd.f32 %v279, %v1930
  %1932 = vmatmul.bf16.gmra.mxu0 %v1301
  %v1933 = vpop.f32.mrf.mxu0
  %v1934 = vadd.f32 %v279, %v1933
  %v1935 = vpop.f32.mrf.mxu0
  %v1936 = vadd.f32 %v279, %v1935
  %1937 = vmatmul.bf16.gmra.mxu0 %v1304
  %v1938 = vpop.f32.mrf.mxu0
  %v1939 = vadd.f32 %v279, %v1938
  %v1940 = vpop.f32.mrf.mxu0
  %v1941 = vadd.f32 %v279, %v1940
  %1942 = vmatmul.bf16.gmra.mxu0 %v1307
  %v1943 = vpop.f32.mrf.mxu0
  %v1944 = vadd.f32 %v279, %v1943
  %v1945 = vpop.f32.mrf.mxu0
  %v1946 = vadd.f32 %v279, %v1945
  %1947 = vmatmul.bf16.gmra.mxu0 %v1310
  %v1948 = vpop.f32.mrf.mxu0
  %v1949 = vadd.f32 %v279, %v1948
  %v1950 = vpop.f32.mrf.mxu0
  %v1951 = vadd.f32 %v279, %v1950
  %1952 = vmatmul.bf16.gmra.mxu0 %v1313
  %v1953 = vpop.f32.mrf.mxu0
  %v1954 = vadd.f32 %v279, %v1953
  %v1955 = vpop.f32.mrf.mxu0
  %v1956 = vadd.f32 %v279, %v1955
  %1957 = vmatmul.bf16.gmra.mxu0 %v1316
  %v1958 = vpop.f32.mrf.mxu0
  %v1959 = vadd.f32 %v279, %v1958
  %v1960 = vpop.f32.mrf.mxu0
  %v1961 = vadd.f32 %v279, %v1960
  %1962 = vmatmul.bf16.gmra.mxu0 %v1319
  %v1963 = vpop.f32.mrf.mxu0
  %v1964 = vadd.f32 %v279, %v1963
  %v1965 = vpop.f32.mrf.mxu0
  %v1966 = vadd.f32 %v279, %v1965
  %1967 = vmatmul.bf16.gmra.mxu0 %v1322
  %v1968 = vpop.f32.mrf.mxu0
  %v1969 = vadd.f32 %v279, %v1968
  %v1970 = vpop.f32.mrf.mxu0
  %v1971 = vadd.f32 %v279, %v1970
  %1972 = vdwg.mxu0
  %vm1973 = vcmp.ge.f32.partialorder %v1334, 0.0
  %vm1974 = vcmp.ge.f32.partialorder %v1336, 0.0
  %vm1975 = vcmp.ge.f32.partialorder %v1339, 0.0
  %vm1976 = vcmp.ge.f32.partialorder %v1341, 0.0
  %vm1977 = vcmp.ge.f32.partialorder %v1344, 0.0
  %vm1978 = vcmp.ge.f32.partialorder %v1346, 0.0
  %vm1979 = vcmp.ge.f32.partialorder %v1349, 0.0
  %vm1980 = vcmp.ge.f32.partialorder %v1351, 0.0
  %vm1981 = vcmp.ge.f32.partialorder %v1354, 0.0
  %vm1982 = vcmp.ge.f32.partialorder %v1356, 0.0
  %vm1983 = vcmp.ge.f32.partialorder %v1359, 0.0
  %vm1984 = vcmp.ge.f32.partialorder %v1361, 0.0
  %vm1985 = vcmp.ge.f32.partialorder %v1364, 0.0
  %vm1986 = vcmp.ge.f32.partialorder %v1366, 0.0
  %vm1987 = vcmp.ge.f32.partialorder %v1369, 0.0
  %vm1988 = vcmp.ge.f32.partialorder %v1371, 0.0
  %vm1989 = vcmp.ge.f32.partialorder %v1374, 0.0
  %vm1990 = vcmp.ge.f32.partialorder %v1376, 0.0
  %vm1991 = vcmp.ge.f32.partialorder %v1379, 0.0
  %vm1992 = vcmp.ge.f32.partialorder %v1381, 0.0
  %vm1993 = vcmp.ge.f32.partialorder %v1384, 0.0
  %vm1994 = vcmp.ge.f32.partialorder %v1386, 0.0
  %vm1995 = vcmp.ge.f32.partialorder %v1389, 0.0
  %vm1996 = vcmp.ge.f32.partialorder %v1391, 0.0
  %vm1997 = vcmp.ge.f32.partialorder %v1394, 0.0
  %vm1998 = vcmp.ge.f32.partialorder %v1396, 0.0
  %vm1999 = vcmp.ge.f32.partialorder %v1399, 0.0
  %vm2000 = vcmp.ge.f32.partialorder %v1401, 0.0
  %vm2001 = vcmp.ge.f32.partialorder %v1404, 0.0
  %vm2002 = vcmp.ge.f32.partialorder %v1406, 0.0
  %vm2003 = vcmp.ge.f32.partialorder %v1409, 0.0
  %vm2004 = vcmp.ge.f32.partialorder %v1411, 0.0
  %vm2005 = vcmp.ge.f32.partialorder %v1414, 0.0
  %vm2006 = vcmp.ge.f32.partialorder %v1416, 0.0
  %vm2007 = vcmp.ge.f32.partialorder %v1419, 0.0
  %vm2008 = vcmp.ge.f32.partialorder %v1421, 0.0
  %vm2009 = vcmp.ge.f32.partialorder %v1424, 0.0
  %vm2010 = vcmp.ge.f32.partialorder %v1426, 0.0
  %vm2011 = vcmp.ge.f32.partialorder %v1429, 0.0
  %vm2012 = vcmp.ge.f32.partialorder %v1431, 0.0
  %vm2013 = vcmp.ge.f32.partialorder %v1434, 0.0
  %vm2014 = vcmp.ge.f32.partialorder %v1436, 0.0
  %vm2015 = vcmp.ge.f32.partialorder %v1439, 0.0
  %vm2016 = vcmp.ge.f32.partialorder %v1441, 0.0
  %vm2017 = vcmp.ge.f32.partialorder %v1444, 0.0
  %vm2018 = vcmp.ge.f32.partialorder %v1446, 0.0
  %vm2019 = vcmp.ge.f32.partialorder %v1449, 0.0
  %vm2020 = vcmp.ge.f32.partialorder %v1451, 0.0
  %vm2021 = vcmp.ge.f32.partialorder %v1454, 0.0
  %vm2022 = vcmp.ge.f32.partialorder %v1456, 0.0
  %vm2023 = vcmp.ge.f32.partialorder %v1459, 0.0
  %vm2024 = vcmp.ge.f32.partialorder %v1461, 0.0
  %vm2025 = vcmp.ge.f32.partialorder %v1464, 0.0
  %vm2026 = vcmp.ge.f32.partialorder %v1466, 0.0
  %vm2027 = vcmp.ge.f32.partialorder %v1469, 0.0
  %vm2028 = vcmp.ge.f32.partialorder %v1471, 0.0
  %vm2029 = vcmp.ge.f32.partialorder %v1474, 0.0
  %vm2030 = vcmp.ge.f32.partialorder %v1476, 0.0
  %vm2031 = vcmp.ge.f32.partialorder %v1479, 0.0
  %vm2032 = vcmp.ge.f32.partialorder %v1481, 0.0
  %vm2033 = vcmp.ge.f32.partialorder %v1484, 0.0
  %vm2034 = vcmp.ge.f32.partialorder %v1486, 0.0
  %vm2035 = vcmp.ge.f32.partialorder %v1489, 0.0
  %vm2036 = vcmp.ge.f32.partialorder %v1491, 0.0
  %vm2037 = vcmp.ge.f32.partialorder %v1494, 0.0
  %vm2038 = vcmp.ge.f32.partialorder %v1496, 0.0
  %vm2039 = vcmp.ge.f32.partialorder %v1499, 0.0
  %vm2040 = vcmp.ge.f32.partialorder %v1501, 0.0
  %vm2041 = vcmp.ge.f32.partialorder %v1504, 0.0
  %vm2042 = vcmp.ge.f32.partialorder %v1506, 0.0
  %vm2043 = vcmp.ge.f32.partialorder %v1509, 0.0
  %vm2044 = vcmp.ge.f32.partialorder %v1511, 0.0
  %vm2045 = vcmp.ge.f32.partialorder %v1514, 0.0
  %vm2046 = vcmp.ge.f32.partialorder %v1516, 0.0
  %vm2047 = vcmp.ge.f32.partialorder %v1519, 0.0
  %vm2048 = vcmp.ge.f32.partialorder %v1521, 0.0
  %vm2049 = vcmp.ge.f32.partialorder %v1524, 0.0
  %vm2050 = vcmp.ge.f32.partialorder %v1526, 0.0
  %vm2051 = vcmp.ge.f32.partialorder %v1529, 0.0
  %vm2052 = vcmp.ge.f32.partialorder %v1531, 0.0
  %vm2053 = vcmp.ge.f32.partialorder %v1534, 0.0
  %vm2054 = vcmp.ge.f32.partialorder %v1536, 0.0
  %vm2055 = vcmp.ge.f32.partialorder %v1539, 0.0
  %vm2056 = vcmp.ge.f32.partialorder %v1541, 0.0
  %vm2057 = vcmp.ge.f32.partialorder %v1544, 0.0
  %vm2058 = vcmp.ge.f32.partialorder %v1546, 0.0
  %vm2059 = vcmp.ge.f32.partialorder %v1549, 0.0
  %vm2060 = vcmp.ge.f32.partialorder %v1551, 0.0
  %vm2061 = vcmp.ge.f32.partialorder %v1554, 0.0
  %vm2062 = vcmp.ge.f32.partialorder %v1556, 0.0
  %vm2063 = vcmp.ge.f32.partialorder %v1559, 0.0
  %vm2064 = vcmp.ge.f32.partialorder %v1561, 0.0
  %vm2065 = vcmp.ge.f32.partialorder %v1564, 0.0
  %vm2066 = vcmp.ge.f32.partialorder %v1566, 0.0
  %vm2067 = vcmp.ge.f32.partialorder %v1569, 0.0
  %vm2068 = vcmp.ge.f32.partialorder %v1571, 0.0
  %vm2069 = vcmp.ge.f32.partialorder %v1574, 0.0
  %vm2070 = vcmp.ge.f32.partialorder %v1576, 0.0
  %vm2071 = vcmp.ge.f32.partialorder %v1579, 0.0
  %vm2072 = vcmp.ge.f32.partialorder %v1581, 0.0
  %vm2073 = vcmp.ge.f32.partialorder %v1584, 0.0
  %vm2074 = vcmp.ge.f32.partialorder %v1586, 0.0
  %vm2075 = vcmp.ge.f32.partialorder %v1589, 0.0
  %vm2076 = vcmp.ge.f32.partialorder %v1591, 0.0
  %vm2077 = vcmp.ge.f32.partialorder %v1594, 0.0
  %vm2078 = vcmp.ge.f32.partialorder %v1596, 0.0
  %vm2079 = vcmp.ge.f32.partialorder %v1599, 0.0
  %vm2080 = vcmp.ge.f32.partialorder %v1601, 0.0
  %vm2081 = vcmp.ge.f32.partialorder %v1604, 0.0
  %vm2082 = vcmp.ge.f32.partialorder %v1606, 0.0
  %vm2083 = vcmp.ge.f32.partialorder %v1609, 0.0
  %vm2084 = vcmp.ge.f32.partialorder %v1611, 0.0
  %vm2085 = vcmp.ge.f32.partialorder %v1614, 0.0
  %vm2086 = vcmp.ge.f32.partialorder %v1616, 0.0
  %vm2087 = vcmp.ge.f32.partialorder %v1619, 0.0
  %vm2088 = vcmp.ge.f32.partialorder %v1621, 0.0
  %vm2089 = vcmp.ge.f32.partialorder %v1624, 0.0
  %vm2090 = vcmp.ge.f32.partialorder %v1626, 0.0
  %vm2091 = vcmp.ge.f32.partialorder %v1629, 0.0
  %vm2092 = vcmp.ge.f32.partialorder %v1631, 0.0
  %vm2093 = vcmp.ge.f32.partialorder %v1634, 0.0
  %vm2094 = vcmp.ge.f32.partialorder %v1636, 0.0
  %vm2095 = vcmp.ge.f32.partialorder %v1639, 0.0
  %vm2096 = vcmp.ge.f32.partialorder %v1641, 0.0
  %vm2097 = vcmp.ge.f32.partialorder %v1644, 0.0
  %vm2098 = vcmp.ge.f32.partialorder %v1646, 0.0
  %vm2099 = vcmp.ge.f32.partialorder %v1649, 0.0
  %vm2100 = vcmp.ge.f32.partialorder %v1651, 0.0
  %vm2101 = vcmp.ge.f32.partialorder %v1654, 0.0
  %vm2102 = vcmp.ge.f32.partialorder %v1656, 0.0
  %vm2103 = vcmp.ge.f32.partialorder %v1659, 0.0
  %vm2104 = vcmp.ge.f32.partialorder %v1661, 0.0
  %vm2105 = vcmp.ge.f32.partialorder %v1664, 0.0
  %vm2106 = vcmp.ge.f32.partialorder %v1666, 0.0
  %vm2107 = vcmp.ge.f32.partialorder %v1669, 0.0
  %vm2108 = vcmp.ge.f32.partialorder %v1671, 0.0
  %vm2109 = vcmp.ge.f32.partialorder %v1674, 0.0
  %vm2110 = vcmp.ge.f32.partialorder %v1676, 0.0
  %vm2111 = vcmp.ge.f32.partialorder %v1679, 0.0
  %vm2112 = vcmp.ge.f32.partialorder %v1681, 0.0
  %vm2113 = vcmp.ge.f32.partialorder %v1684, 0.0
  %vm2114 = vcmp.ge.f32.partialorder %v1686, 0.0
  %vm2115 = vcmp.ge.f32.partialorder %v1689, 0.0
  %vm2116 = vcmp.ge.f32.partialorder %v1691, 0.0
  %vm2117 = vcmp.ge.f32.partialorder %v1694, 0.0
  %vm2118 = vcmp.ge.f32.partialorder %v1696, 0.0
  %vm2119 = vcmp.ge.f32.partialorder %v1699, 0.0
  %vm2120 = vcmp.ge.f32.partialorder %v1701, 0.0
  %vm2121 = vcmp.ge.f32.partialorder %v1704, 0.0
  %vm2122 = vcmp.ge.f32.partialorder %v1706, 0.0
  %vm2123 = vcmp.ge.f32.partialorder %v1709, 0.0
  %vm2124 = vcmp.ge.f32.partialorder %v1711, 0.0
  %vm2125 = vcmp.ge.f32.partialorder %v1714, 0.0
  %vm2126 = vcmp.ge.f32.partialorder %v1716, 0.0
  %vm2127 = vcmp.ge.f32.partialorder %v1719, 0.0
  %vm2128 = vcmp.ge.f32.partialorder %v1721, 0.0
  %vm2129 = vcmp.ge.f32.partialorder %v1724, 0.0
  %vm2130 = vcmp.ge.f32.partialorder %v1726, 0.0
  %vm2131 = vcmp.ge.f32.partialorder %v1729, 0.0
  %vm2132 = vcmp.ge.f32.partialorder %v1731, 0.0
  %vm2133 = vcmp.ge.f32.partialorder %v1734, 0.0
  %vm2134 = vcmp.ge.f32.partialorder %v1736, 0.0
  %vm2135 = vcmp.ge.f32.partialorder %v1739, 0.0
  %vm2136 = vcmp.ge.f32.partialorder %v1741, 0.0
  %vm2137 = vcmp.ge.f32.partialorder %v1744, 0.0
  %vm2138 = vcmp.ge.f32.partialorder %v1746, 0.0
  %vm2139 = vcmp.ge.f32.partialorder %v1749, 0.0
  %vm2140 = vcmp.ge.f32.partialorder %v1751, 0.0
  %vm2141 = vcmp.ge.f32.partialorder %v1754, 0.0
  %vm2142 = vcmp.ge.f32.partialorder %v1756, 0.0
  %vm2143 = vcmp.ge.f32.partialorder %v1759, 0.0
  %vm2144 = vcmp.ge.f32.partialorder %v1761, 0.0
  %vm2145 = vcmp.ge.f32.partialorder %v1764, 0.0
  %vm2146 = vcmp.ge.f32.partialorder %v1766, 0.0
  %vm2147 = vcmp.ge.f32.partialorder %v1769, 0.0
  %vm2148 = vcmp.ge.f32.partialorder %v1771, 0.0
  %vm2149 = vcmp.ge.f32.partialorder %v1774, 0.0
  %vm2150 = vcmp.ge.f32.partialorder %v1776, 0.0
  %vm2151 = vcmp.ge.f32.partialorder %v1779, 0.0
  %vm2152 = vcmp.ge.f32.partialorder %v1781, 0.0
  %vm2153 = vcmp.ge.f32.partialorder %v1784, 0.0
  %vm2154 = vcmp.ge.f32.partialorder %v1786, 0.0
  %vm2155 = vcmp.ge.f32.partialorder %v1789, 0.0
  %vm2156 = vcmp.ge.f32.partialorder %v1791, 0.0
  %vm2157 = vcmp.ge.f32.partialorder %v1794, 0.0
  %vm2158 = vcmp.ge.f32.partialorder %v1796, 0.0
  %vm2159 = vcmp.ge.f32.partialorder %v1799, 0.0
  %vm2160 = vcmp.ge.f32.partialorder %v1801, 0.0
  %vm2161 = vcmp.ge.f32.partialorder %v1804, 0.0
  %vm2162 = vcmp.ge.f32.partialorder %v1806, 0.0
  %vm2163 = vcmp.ge.f32.partialorder %v1809, 0.0
  %vm2164 = vcmp.ge.f32.partialorder %v1811, 0.0
  %vm2165 = vcmp.ge.f32.partialorder %v1814, 0.0
  %vm2166 = vcmp.ge.f32.partialorder %v1816, 0.0
  %vm2167 = vcmp.ge.f32.partialorder %v1819, 0.0
  %vm2168 = vcmp.ge.f32.partialorder %v1821, 0.0
  %vm2169 = vcmp.ge.f32.partialorder %v1824, 0.0
  %vm2170 = vcmp.ge.f32.partialorder %v1826, 0.0
  %vm2171 = vcmp.ge.f32.partialorder %v1829, 0.0
  %vm2172 = vcmp.ge.f32.partialorder %v1831, 0.0
  %vm2173 = vcmp.ge.f32.partialorder %v1834, 0.0
  %vm2174 = vcmp.ge.f32.partialorder %v1836, 0.0
  %vm2175 = vcmp.ge.f32.partialorder %v1839, 0.0
  %vm2176 = vcmp.ge.f32.partialorder %v1841, 0.0
  %vm2177 = vcmp.ge.f32.partialorder %v1844, 0.0
  %vm2178 = vcmp.ge.f32.partialorder %v1846, 0.0
  %vm2179 = vcmp.ge.f32.partialorder %v1849, 0.0
  %vm2180 = vcmp.ge.f32.partialorder %v1851, 0.0
  %vm2181 = vcmp.ge.f32.partialorder %v1854, 0.0
  %vm2182 = vcmp.ge.f32.partialorder %v1856, 0.0
  %vm2183 = vcmp.ge.f32.partialorder %v1859, 0.0
  %vm2184 = vcmp.ge.f32.partialorder %v1861, 0.0
  %vm2185 = vcmp.ge.f32.partialorder %v1864, 0.0
  %vm2186 = vcmp.ge.f32.partialorder %v1866, 0.0
  %vm2187 = vcmp.ge.f32.partialorder %v1869, 0.0
  %vm2188 = vcmp.ge.f32.partialorder %v1871, 0.0
  %vm2189 = vcmp.ge.f32.partialorder %v1874, 0.0
  %vm2190 = vcmp.ge.f32.partialorder %v1876, 0.0
  %vm2191 = vcmp.ge.f32.partialorder %v1879, 0.0
  %vm2192 = vcmp.ge.f32.partialorder %v1881, 0.0
  %vm2193 = vcmp.ge.f32.partialorder %v1884, 0.0
  %vm2194 = vcmp.ge.f32.partialorder %v1886, 0.0
  %vm2195 = vcmp.ge.f32.partialorder %v1889, 0.0
  %vm2196 = vcmp.ge.f32.partialorder %v1891, 0.0
  %vm2197 = vcmp.ge.f32.partialorder %v1894, 0.0
  %vm2198 = vcmp.ge.f32.partialorder %v1896, 0.0
  %vm2199 = vcmp.ge.f32.partialorder %v1899, 0.0
  %vm2200 = vcmp.ge.f32.partialorder %v1901, 0.0
  %vm2201 = vcmp.ge.f32.partialorder %v1904, 0.0
  %vm2202 = vcmp.ge.f32.partialorder %v1906, 0.0
  %vm2203 = vcmp.ge.f32.partialorder %v1909, 0.0
  %vm2204 = vcmp.ge.f32.partialorder %v1911, 0.0
  %vm2205 = vcmp.ge.f32.partialorder %v1914, 0.0
  %vm2206 = vcmp.ge.f32.partialorder %v1916, 0.0
  %vm2207 = vcmp.ge.f32.partialorder %v1919, 0.0
  %vm2208 = vcmp.ge.f32.partialorder %v1921, 0.0
  %vm2209 = vcmp.ge.f32.partialorder %v1924, 0.0
  %vm2210 = vcmp.ge.f32.partialorder %v1926, 0.0
  %vm2211 = vcmp.ge.f32.partialorder %v1929, 0.0
  %vm2212 = vcmp.ge.f32.partialorder %v1931, 0.0
  %vm2213 = vcmp.ge.f32.partialorder %v1934, 0.0
  %vm2214 = vcmp.ge.f32.partialorder %v1936, 0.0
  %vm2215 = vcmp.ge.f32.partialorder %v1939, 0.0
  %vm2216 = vcmp.ge.f32.partialorder %v1941, 0.0
  %vm2217 = vcmp.ge.f32.partialorder %v1944, 0.0
  %vm2218 = vcmp.ge.f32.partialorder %v1946, 0.0
  %vm2219 = vcmp.ge.f32.partialorder %v1949, 0.0
  %vm2220 = vcmp.ge.f32.partialorder %v1951, 0.0
  %vm2221 = vcmp.ge.f32.partialorder %v1954, 0.0
  %vm2222 = vcmp.ge.f32.partialorder %v1956, 0.0
  %vm2223 = vcmp.ge.f32.partialorder %v1959, 0.0
  %vm2224 = vcmp.ge.f32.partialorder %v1961, 0.0
  %vm2225 = vcmp.ge.f32.partialorder %v1964, 0.0
  %vm2226 = vcmp.ge.f32.partialorder %v1966, 0.0
  %vm2227 = vcmp.ge.f32.partialorder %v1969, 0.0
  %vm2228 = vcmp.ge.f32.partialorder %v1971, 0.0
  %v2229 = vmul.f32 %v1334, 0.2
  %v2230 = vmul.f32 %v1336, 0.2
  %v2231 = vmul.f32 %v1339, 0.2
  %v2232 = vmul.f32 %v1341, 0.2
  %v2233 = vmul.f32 %v1344, 0.2
  %v2234 = vmul.f32 %v1346, 0.2
  %v2235 = vmul.f32 %v1349, 0.2
  %v2236 = vmul.f32 %v1351, 0.2
  %v2237 = vmul.f32 %v1354, 0.2
  %v2238 = vmul.f32 %v1356, 0.2
  %v2239 = vmul.f32 %v1359, 0.2
  %v2240 = vmul.f32 %v1361, 0.2
  %v2241 = vmul.f32 %v1364, 0.2
  %v2242 = vmul.f32 %v1366, 0.2
  %v2243 = vmul.f32 %v1369, 0.2
  %v2244 = vmul.f32 %v1371, 0.2
  %v2245 = vmul.f32 %v1374, 0.2
  %v2246 = vmul.f32 %v1376, 0.2
  %v2247 = vmul.f32 %v1379, 0.2
  %v2248 = vmul.f32 %v1381, 0.2
  %v2249 = vmul.f32 %v1384, 0.2
  %v2250 = vmul.f32 %v1386, 0.2
  %v2251 = vmul.f32 %v1389, 0.2
  %v2252 = vmul.f32 %v1391, 0.2
  %v2253 = vmul.f32 %v1394, 0.2
  %v2254 = vmul.f32 %v1396, 0.2
  %v2255 = vmul.f32 %v1399, 0.2
  %v2256 = vmul.f32 %v1401, 0.2
  %v2257 = vmul.f32 %v1404, 0.2
  %v2258 = vmul.f32 %v1406, 0.2
  %v2259 = vmul.f32 %v1409, 0.2
  %v2260 = vmul.f32 %v1411, 0.2
  %v2261 = vmul.f32 %v1414, 0.2
  %v2262 = vmul.f32 %v1416, 0.2
  %v2263 = vmul.f32 %v1419, 0.2
  %v2264 = vmul.f32 %v1421, 0.2
  %v2265 = vmul.f32 %v1424, 0.2
  %v2266 = vmul.f32 %v1426, 0.2
  %v2267 = vmul.f32 %v1429, 0.2
  %v2268 = vmul.f32 %v1431, 0.2
  %v2269 = vmul.f32 %v1434, 0.2
  %v2270 = vmul.f32 %v1436, 0.2
  %v2271 = vmul.f32 %v1439, 0.2
  %v2272 = vmul.f32 %v1441, 0.2
  %v2273 = vmul.f32 %v1444, 0.2
  %v2274 = vmul.f32 %v1446, 0.2
  %v2275 = vmul.f32 %v1449, 0.2
  %v2276 = vmul.f32 %v1451, 0.2
  %v2277 = vmul.f32 %v1454, 0.2
  %v2278 = vmul.f32 %v1456, 0.2
  %v2279 = vmul.f32 %v1459, 0.2
  %v2280 = vmul.f32 %v1461, 0.2
  %v2281 = vmul.f32 %v1464, 0.2
  %v2282 = vmul.f32 %v1466, 0.2
  %v2283 = vmul.f32 %v1469, 0.2
  %v2284 = vmul.f32 %v1471, 0.2
  %v2285 = vmul.f32 %v1474, 0.2
  %v2286 = vmul.f32 %v1476, 0.2
  %v2287 = vmul.f32 %v1479, 0.2
  %v2288 = vmul.f32 %v1481, 0.2
  %v2289 = vmul.f32 %v1484, 0.2
  %v2290 = vmul.f32 %v1486, 0.2
  %v2291 = vmul.f32 %v1489, 0.2
  %v2292 = vmul.f32 %v1491, 0.2
  %v2293 = vmul.f32 %v1494, 0.2
  %v2294 = vmul.f32 %v1496, 0.2
  %v2295 = vmul.f32 %v1499, 0.2
  %v2296 = vmul.f32 %v1501, 0.2
  %v2297 = vmul.f32 %v1504, 0.2
  %v2298 = vmul.f32 %v1506, 0.2
  %v2299 = vmul.f32 %v1509, 0.2
  %v2300 = vmul.f32 %v1511, 0.2
  %v2301 = vmul.f32 %v1514, 0.2
  %v2302 = vmul.f32 %v1516, 0.2
  %v2303 = vmul.f32 %v1519, 0.2
  %v2304 = vmul.f32 %v1521, 0.2
  %v2305 = vmul.f32 %v1524, 0.2
  %v2306 = vmul.f32 %v1526, 0.2
  %v2307 = vmul.f32 %v1529, 0.2
  %v2308 = vmul.f32 %v1531, 0.2
  %v2309 = vmul.f32 %v1534, 0.2
  %v2310 = vmul.f32 %v1536, 0.2
  %v2311 = vmul.f32 %v1539, 0.2
  %v2312 = vmul.f32 %v1541, 0.2
  %v2313 = vmul.f32 %v1544, 0.2
  %v2314 = vmul.f32 %v1546, 0.2
  %v2315 = vmul.f32 %v1549, 0.2
  %v2316 = vmul.f32 %v1551, 0.2
  %v2317 = vmul.f32 %v1554, 0.2
  %v2318 = vmul.f32 %v1556, 0.2
  %v2319 = vmul.f32 %v1559, 0.2
  %v2320 = vmul.f32 %v1561, 0.2
  %v2321 = vmul.f32 %v1564, 0.2
  %v2322 = vmul.f32 %v1566, 0.2
  %v2323 = vmul.f32 %v1569, 0.2
  %v2324 = vmul.f32 %v1571, 0.2
  %v2325 = vmul.f32 %v1574, 0.2
  %v2326 = vmul.f32 %v1576, 0.2
  %v2327 = vmul.f32 %v1579, 0.2
  %v2328 = vmul.f32 %v1581, 0.2
  %v2329 = vmul.f32 %v1584, 0.2
  %v2330 = vmul.f32 %v1586, 0.2
  %v2331 = vmul.f32 %v1589, 0.2
  %v2332 = vmul.f32 %v1591, 0.2
  %v2333 = vmul.f32 %v1594, 0.2
  %v2334 = vmul.f32 %v1596, 0.2
  %v2335 = vmul.f32 %v1599, 0.2
  %v2336 = vmul.f32 %v1601, 0.2
  %v2337 = vmul.f32 %v1604, 0.2
  %v2338 = vmul.f32 %v1606, 0.2
  %v2339 = vmul.f32 %v1609, 0.2
  %v2340 = vmul.f32 %v1611, 0.2
  %v2341 = vmul.f32 %v1614, 0.2
  %v2342 = vmul.f32 %v1616, 0.2
  %v2343 = vmul.f32 %v1619, 0.2
  %v2344 = vmul.f32 %v1621, 0.2
  %v2345 = vmul.f32 %v1624, 0.2
  %v2346 = vmul.f32 %v1626, 0.2
  %v2347 = vmul.f32 %v1629, 0.2
  %v2348 = vmul.f32 %v1631, 0.2
  %v2349 = vmul.f32 %v1634, 0.2
  %v2350 = vmul.f32 %v1636, 0.2
  %v2351 = vmul.f32 %v1639, 0.2
  %v2352 = vmul.f32 %v1641, 0.2
  %v2353 = vmul.f32 %v1644, 0.2
  %v2354 = vmul.f32 %v1646, 0.2
  %v2355 = vmul.f32 %v1649, 0.2
  %v2356 = vmul.f32 %v1651, 0.2
  %v2357 = vmul.f32 %v1654, 0.2
  %v2358 = vmul.f32 %v1656, 0.2
  %v2359 = vmul.f32 %v1659, 0.2
  %v2360 = vmul.f32 %v1661, 0.2
  %v2361 = vmul.f32 %v1664, 0.2
  %v2362 = vmul.f32 %v1666, 0.2
  %v2363 = vmul.f32 %v1669, 0.2
  %v2364 = vmul.f32 %v1671, 0.2
  %v2365 = vmul.f32 %v1674, 0.2
  %v2366 = vmul.f32 %v1676, 0.2
  %v2367 = vmul.f32 %v1679, 0.2
  %v2368 = vmul.f32 %v1681, 0.2
  %v2369 = vmul.f32 %v1684, 0.2
  %v2370 = vmul.f32 %v1686, 0.2
  %v2371 = vmul.f32 %v1689, 0.2
  %v2372 = vmul.f32 %v1691, 0.2
  %v2373 = vmul.f32 %v1694, 0.2
  %v2374 = vmul.f32 %v1696, 0.2
  %v2375 = vmul.f32 %v1699, 0.2
  %v2376 = vmul.f32 %v1701, 0.2
  %v2377 = vmul.f32 %v1704, 0.2
  %v2378 = vmul.f32 %v1706, 0.2
  %v2379 = vmul.f32 %v1709, 0.2
  %v2380 = vmul.f32 %v1711, 0.2
  %v2381 = vmul.f32 %v1714, 0.2
  %v2382 = vmul.f32 %v1716, 0.2
  %v2383 = vmul.f32 %v1719, 0.2
  %v2384 = vmul.f32 %v1721, 0.2
  %v2385 = vmul.f32 %v1724, 0.2
  %v2386 = vmul.f32 %v1726, 0.2
  %v2387 = vmul.f32 %v1729, 0.2
  %v2388 = vmul.f32 %v1731, 0.2
  %v2389 = vmul.f32 %v1734, 0.2
  %v2390 = vmul.f32 %v1736, 0.2
  %v2391 = vmul.f32 %v1739, 0.2
  %v2392 = vmul.f32 %v1741, 0.2
  %v2393 = vmul.f32 %v1744, 0.2
  %v2394 = vmul.f32 %v1746, 0.2
  %v2395 = vmul.f32 %v1749, 0.2
  %v2396 = vmul.f32 %v1751, 0.2
  %v2397 = vmul.f32 %v1754, 0.2
  %v2398 = vmul.f32 %v1756, 0.2
  %v2399 = vmul.f32 %v1759, 0.2
  %v2400 = vmul.f32 %v1761, 0.2
  %v2401 = vmul.f32 %v1764, 0.2
  %v2402 = vmul.f32 %v1766, 0.2
  %v2403 = vmul.f32 %v1769, 0.2
  %v2404 = vmul.f32 %v1771, 0.2
  %v2405 = vmul.f32 %v1774, 0.2
  %v2406 = vmul.f32 %v1776, 0.2
  %v2407 = vmul.f32 %v1779, 0.2
  %v2408 = vmul.f32 %v1781, 0.2
  %v2409 = vmul.f32 %v1784, 0.2
  %v2410 = vmul.f32 %v1786, 0.2
  %v2411 = vmul.f32 %v1789, 0.2
  %v2412 = vmul.f32 %v1791, 0.2
  %v2413 = vmul.f32 %v1794, 0.2
  %v2414 = vmul.f32 %v1796, 0.2
  %v2415 = vmul.f32 %v1799, 0.2
  %v2416 = vmul.f32 %v1801, 0.2
  %v2417 = vmul.f32 %v1804, 0.2
  %v2418 = vmul.f32 %v1806, 0.2
  %v2419 = vmul.f32 %v1809, 0.2
  %v2420 = vmul.f32 %v1811, 0.2
  %v2421 = vmul.f32 %v1814, 0.2
  %v2422 = vmul.f32 %v1816, 0.2
  %v2423 = vmul.f32 %v1819, 0.2
  %v2424 = vmul.f32 %v1821, 0.2
  %v2425 = vmul.f32 %v1824, 0.2
  %v2426 = vmul.f32 %v1826, 0.2
  %v2427 = vmul.f32 %v1829, 0.2
  %v2428 = vmul.f32 %v1831, 0.2
  %v2429 = vmul.f32 %v1834, 0.2
  %v2430 = vmul.f32 %v1836, 0.2
  %v2431 = vmul.f32 %v1839, 0.2
  %v2432 = vmul.f32 %v1841, 0.2
  %v2433 = vmul.f32 %v1844, 0.2
  %v2434 = vmul.f32 %v1846, 0.2
  %v2435 = vmul.f32 %v1849, 0.2
  %v2436 = vmul.f32 %v1851, 0.2
  %v2437 = vmul.f32 %v1854, 0.2
  %v2438 = vmul.f32 %v1856, 0.2
  %v2439 = vmul.f32 %v1859, 0.2
  %v2440 = vmul.f32 %v1861, 0.2
  %v2441 = vmul.f32 %v1864, 0.2
  %v2442 = vmul.f32 %v1866, 0.2
  %v2443 = vmul.f32 %v1869, 0.2
  %v2444 = vmul.f32 %v1871, 0.2
  %v2445 = vmul.f32 %v1874, 0.2
  %v2446 = vmul.f32 %v1876, 0.2
  %v2447 = vmul.f32 %v1879, 0.2
  %v2448 = vmul.f32 %v1881, 0.2
  %v2449 = vmul.f32 %v1884, 0.2
  %v2450 = vmul.f32 %v1886, 0.2
  %v2451 = vmul.f32 %v1889, 0.2
  %v2452 = vmul.f32 %v1891, 0.2
  %v2453 = vmul.f32 %v1894, 0.2
  %v2454 = vmul.f32 %v1896, 0.2
  %v2455 = vmul.f32 %v1899, 0.2
  %v2456 = vmul.f32 %v1901, 0.2
  %v2457 = vmul.f32 %v1904, 0.2
  %v2458 = vmul.f32 %v1906, 0.2
  %v2459 = vmul.f32 %v1909, 0.2
  %v2460 = vmul.f32 %v1911, 0.2
  %v2461 = vmul.f32 %v1914, 0.2
  %v2462 = vmul.f32 %v1916, 0.2
  %v2463 = vmul.f32 %v1919, 0.2
  %v2464 = vmul.f32 %v1921, 0.2
  %v2465 = vmul.f32 %v1924, 0.2
  %v2466 = vmul.f32 %v1926, 0.2
  %v2467 = vmul.f32 %v1929, 0.2
  %v2468 = vmul.f32 %v1931, 0.2
  %v2469 = vmul.f32 %v1934, 0.2
  %v2470 = vmul.f32 %v1936, 0.2
  %v2471 = vmul.f32 %v1939, 0.2
  %v2472 = vmul.f32 %v1941, 0.2
  %v2473 = vmul.f32 %v1944, 0.2
  %v2474 = vmul.f32 %v1946, 0.2
  %v2475 = vmul.f32 %v1949, 0.2
  %v2476 = vmul.f32 %v1951, 0.2
  %v2477 = vmul.f32 %v1954, 0.2
  %v2478 = vmul.f32 %v1956, 0.2
  %v2479 = vmul.f32 %v1959, 0.2
  %v2480 = vmul.f32 %v1961, 0.2
  %v2481 = vmul.f32 %v1964, 0.2
  %v2482 = vmul.f32 %v1966, 0.2
  %v2483 = vmul.f32 %v1969, 0.2
  %v2484 = vmul.f32 %v1971, 0.2
  %v2485 = vsel %vm1973, %v1334, %v2229
  %v2486 = vsel %vm1974, %v1336, %v2230
  %v2487 = vsel %vm1975, %v1339, %v2231
  %v2488 = vsel %vm1976, %v1341, %v2232
  %v2489 = vsel %vm1977, %v1344, %v2233
  %v2490 = vsel %vm1978, %v1346, %v2234
  %v2491 = vsel %vm1979, %v1349, %v2235
  %v2492 = vsel %vm1980, %v1351, %v2236
  %v2493 = vsel %vm1981, %v1354, %v2237
  %v2494 = vsel %vm1982, %v1356, %v2238
  %v2495 = vsel %vm1983, %v1359, %v2239
  %v2496 = vsel %vm1984, %v1361, %v2240
  %v2497 = vsel %vm1985, %v1364, %v2241
  %v2498 = vsel %vm1986, %v1366, %v2242
  %v2499 = vsel %vm1987, %v1369, %v2243
  %v2500 = vsel %vm1988, %v1371, %v2244
  %v2501 = vsel %vm1989, %v1374, %v2245
  %v2502 = vsel %vm1990, %v1376, %v2246
  %v2503 = vsel %vm1991, %v1379, %v2247
  %v2504 = vsel %vm1992, %v1381, %v2248
  %v2505 = vsel %vm1993, %v1384, %v2249
  %v2506 = vsel %vm1994, %v1386, %v2250
  %v2507 = vsel %vm1995, %v1389, %v2251
  %v2508 = vsel %vm1996, %v1391, %v2252
  %v2509 = vsel %vm1997, %v1394, %v2253
  %v2510 = vsel %vm1998, %v1396, %v2254
  %v2511 = vsel %vm1999, %v1399, %v2255
  %v2512 = vsel %vm2000, %v1401, %v2256
  %v2513 = vsel %vm2001, %v1404, %v2257
  %v2514 = vsel %vm2002, %v1406, %v2258
  %v2515 = vsel %vm2003, %v1409, %v2259
  %v2516 = vsel %vm2004, %v1411, %v2260
  %v2517 = vsel %vm2005, %v1414, %v2261
  %v2518 = vsel %vm2006, %v1416, %v2262
  %v2519 = vsel %vm2007, %v1419, %v2263
  %v2520 = vsel %vm2008, %v1421, %v2264
  %v2521 = vsel %vm2009, %v1424, %v2265
  %v2522 = vsel %vm2010, %v1426, %v2266
  %v2523 = vsel %vm2011, %v1429, %v2267
  %v2524 = vsel %vm2012, %v1431, %v2268
  %v2525 = vsel %vm2013, %v1434, %v2269
  %v2526 = vsel %vm2014, %v1436, %v2270
  %v2527 = vsel %vm2015, %v1439, %v2271
  %v2528 = vsel %vm2016, %v1441, %v2272
  %v2529 = vsel %vm2017, %v1444, %v2273
  %v2530 = vsel %vm2018, %v1446, %v2274
  %v2531 = vsel %vm2019, %v1449, %v2275
  %v2532 = vsel %vm2020, %v1451, %v2276
  %v2533 = vsel %vm2021, %v1454, %v2277
  %v2534 = vsel %vm2022, %v1456, %v2278
  %v2535 = vsel %vm2023, %v1459, %v2279
  %v2536 = vsel %vm2024, %v1461, %v2280
  %v2537 = vsel %vm2025, %v1464, %v2281
  %v2538 = vsel %vm2026, %v1466, %v2282
  %v2539 = vsel %vm2027, %v1469, %v2283
  %v2540 = vsel %vm2028, %v1471, %v2284
  %v2541 = vsel %vm2029, %v1474, %v2285
  %v2542 = vsel %vm2030, %v1476, %v2286
  %v2543 = vsel %vm2031, %v1479, %v2287
  %v2544 = vsel %vm2032, %v1481, %v2288
  %v2545 = vsel %vm2033, %v1484, %v2289
  %v2546 = vsel %vm2034, %v1486, %v2290
  %v2547 = vsel %vm2035, %v1489, %v2291
  %v2548 = vsel %vm2036, %v1491, %v2292
  %v2549 = vsel %vm2037, %v1494, %v2293
  %v2550 = vsel %vm2038, %v1496, %v2294
  %v2551 = vsel %vm2039, %v1499, %v2295
  %v2552 = vsel %vm2040, %v1501, %v2296
  %v2553 = vsel %vm2041, %v1504, %v2297
  %v2554 = vsel %vm2042, %v1506, %v2298
  %v2555 = vsel %vm2043, %v1509, %v2299
  %v2556 = vsel %vm2044, %v1511, %v2300
  %v2557 = vsel %vm2045, %v1514, %v2301
  %v2558 = vsel %vm2046, %v1516, %v2302
  %v2559 = vsel %vm2047, %v1519, %v2303
  %v2560 = vsel %vm2048, %v1521, %v2304
  %v2561 = vsel %vm2049, %v1524, %v2305
  %v2562 = vsel %vm2050, %v1526, %v2306
  %v2563 = vsel %vm2051, %v1529, %v2307
  %v2564 = vsel %vm2052, %v1531, %v2308
  %v2565 = vsel %vm2053, %v1534, %v2309
  %v2566 = vsel %vm2054, %v1536, %v2310
  %v2567 = vsel %vm2055, %v1539, %v2311
  %v2568 = vsel %vm2056, %v1541, %v2312
  %v2569 = vsel %vm2057, %v1544, %v2313
  %v2570 = vsel %vm2058, %v1546, %v2314
  %v2571 = vsel %vm2059, %v1549, %v2315
  %v2572 = vsel %vm2060, %v1551, %v2316
  %v2573 = vsel %vm2061, %v1554, %v2317
  %v2574 = vsel %vm2062, %v1556, %v2318
  %v2575 = vsel %vm2063, %v1559, %v2319
  %v2576 = vsel %vm2064, %v1561, %v2320
  %v2577 = vsel %vm2065, %v1564, %v2321
  %v2578 = vsel %vm2066, %v1566, %v2322
  %v2579 = vsel %vm2067, %v1569, %v2323
  %v2580 = vsel %vm2068, %v1571, %v2324
  %v2581 = vsel %vm2069, %v1574, %v2325
  %v2582 = vsel %vm2070, %v1576, %v2326
  %v2583 = vsel %vm2071, %v1579, %v2327
  %v2584 = vsel %vm2072, %v1581, %v2328
  %v2585 = vsel %vm2073, %v1584, %v2329
  %v2586 = vsel %vm2074, %v1586, %v2330
  %v2587 = vsel %vm2075, %v1589, %v2331
  %v2588 = vsel %vm2076, %v1591, %v2332
  %v2589 = vsel %vm2077, %v1594, %v2333
  %v2590 = vsel %vm2078, %v1596, %v2334
  %v2591 = vsel %vm2079, %v1599, %v2335
  %v2592 = vsel %vm2080, %v1601, %v2336
  %v2593 = vsel %vm2081, %v1604, %v2337
  %v2594 = vsel %vm2082, %v1606, %v2338
  %v2595 = vsel %vm2083, %v1609, %v2339
  %v2596 = vsel %vm2084, %v1611, %v2340
  %v2597 = vsel %vm2085, %v1614, %v2341
  %v2598 = vsel %vm2086, %v1616, %v2342
  %v2599 = vsel %vm2087, %v1619, %v2343
  %v2600 = vsel %vm2088, %v1621, %v2344
  %v2601 = vsel %vm2089, %v1624, %v2345
  %v2602 = vsel %vm2090, %v1626, %v2346
  %v2603 = vsel %vm2091, %v1629, %v2347
  %v2604 = vsel %vm2092, %v1631, %v2348
  %v2605 = vsel %vm2093, %v1634, %v2349
  %v2606 = vsel %vm2094, %v1636, %v2350
  %v2607 = vsel %vm2095, %v1639, %v2351
  %v2608 = vsel %vm2096, %v1641, %v2352
  %v2609 = vsel %vm2097, %v1644, %v2353
  %v2610 = vsel %vm2098, %v1646, %v2354
  %v2611 = vsel %vm2099, %v1649, %v2355
  %v2612 = vsel %vm2100, %v1651, %v2356
  %v2613 = vsel %vm2101, %v1654, %v2357
  %v2614 = vsel %vm2102, %v1656, %v2358
  %v2615 = vsel %vm2103, %v1659, %v2359
  %v2616 = vsel %vm2104, %v1661, %v2360
  %v2617 = vsel %vm2105, %v1664, %v2361
  %v2618 = vsel %vm2106, %v1666, %v2362
  %v2619 = vsel %vm2107, %v1669, %v2363
  %v2620 = vsel %vm2108, %v1671, %v2364
  %v2621 = vsel %vm2109, %v1674, %v2365
  %v2622 = vsel %vm2110, %v1676, %v2366
  %v2623 = vsel %vm2111, %v1679, %v2367
  %v2624 = vsel %vm2112, %v1681, %v2368
  %v2625 = vsel %vm2113, %v1684, %v2369
  %v2626 = vsel %vm2114, %v1686, %v2370
  %v2627 = vsel %vm2115, %v1689, %v2371
  %v2628 = vsel %vm2116, %v1691, %v2372
  %v2629 = vsel %vm2117, %v1694, %v2373
  %v2630 = vsel %vm2118, %v1696, %v2374
  %v2631 = vsel %vm2119, %v1699, %v2375
  %v2632 = vsel %vm2120, %v1701, %v2376
  %v2633 = vsel %vm2121, %v1704, %v2377
  %v2634 = vsel %vm2122, %v1706, %v2378
  %v2635 = vsel %vm2123, %v1709, %v2379
  %v2636 = vsel %vm2124, %v1711, %v2380
  %v2637 = vsel %vm2125, %v1714, %v2381
  %v2638 = vsel %vm2126, %v1716, %v2382
  %v2639 = vsel %vm2127, %v1719, %v2383
  %v2640 = vsel %vm2128, %v1721, %v2384
  %v2641 = vsel %vm2129, %v1724, %v2385
  %v2642 = vsel %vm2130, %v1726, %v2386
  %v2643 = vsel %vm2131, %v1729, %v2387
  %v2644 = vsel %vm2132, %v1731, %v2388
  %v2645 = vsel %vm2133, %v1734, %v2389
  %v2646 = vsel %vm2134, %v1736, %v2390
  %v2647 = vsel %vm2135, %v1739, %v2391
  %v2648 = vsel %vm2136, %v1741, %v2392
  %v2649 = vsel %vm2137, %v1744, %v2393
  %v2650 = vsel %vm2138, %v1746, %v2394
  %v2651 = vsel %vm2139, %v1749, %v2395
  %v2652 = vsel %vm2140, %v1751, %v2396
  %v2653 = vsel %vm2141, %v1754, %v2397
  %v2654 = vsel %vm2142, %v1756, %v2398
  %v2655 = vsel %vm2143, %v1759, %v2399
  %v2656 = vsel %vm2144, %v1761, %v2400
  %v2657 = vsel %vm2145, %v1764, %v2401
  %v2658 = vsel %vm2146, %v1766, %v2402
  %v2659 = vsel %vm2147, %v1769, %v2403
  %v2660 = vsel %vm2148, %v1771, %v2404
  %v2661 = vsel %vm2149, %v1774, %v2405
  %v2662 = vsel %vm2150, %v1776, %v2406
  %v2663 = vsel %vm2151, %v1779, %v2407
  %v2664 = vsel %vm2152, %v1781, %v2408
  %v2665 = vsel %vm2153, %v1784, %v2409
  %v2666 = vsel %vm2154, %v1786, %v2410
  %v2667 = vsel %vm2155, %v1789, %v2411
  %v2668 = vsel %vm2156, %v1791, %v2412
  %v2669 = vsel %vm2157, %v1794, %v2413
  %v2670 = vsel %vm2158, %v1796, %v2414
  %v2671 = vsel %vm2159, %v1799, %v2415
  %v2672 = vsel %vm2160, %v1801, %v2416
  %v2673 = vsel %vm2161, %v1804, %v2417
  %v2674 = vsel %vm2162, %v1806, %v2418
  %v2675 = vsel %vm2163, %v1809, %v2419
  %v2676 = vsel %vm2164, %v1811, %v2420
  %v2677 = vsel %vm2165, %v1814, %v2421
  %v2678 = vsel %vm2166, %v1816, %v2422
  %v2679 = vsel %vm2167, %v1819, %v2423
  %v2680 = vsel %vm2168, %v1821, %v2424
  %v2681 = vsel %vm2169, %v1824, %v2425
  %v2682 = vsel %vm2170, %v1826, %v2426
  %v2683 = vsel %vm2171, %v1829, %v2427
  %v2684 = vsel %vm2172, %v1831, %v2428
  %v2685 = vsel %vm2173, %v1834, %v2429
  %v2686 = vsel %vm2174, %v1836, %v2430
  %v2687 = vsel %vm2175, %v1839, %v2431
  %v2688 = vsel %vm2176, %v1841, %v2432
  %v2689 = vsel %vm2177, %v1844, %v2433
  %v2690 = vsel %vm2178, %v1846, %v2434
  %v2691 = vsel %vm2179, %v1849, %v2435
  %v2692 = vsel %vm2180, %v1851, %v2436
  %v2693 = vsel %vm2181, %v1854, %v2437
  %v2694 = vsel %vm2182, %v1856, %v2438
  %v2695 = vsel %vm2183, %v1859, %v2439
  %v2696 = vsel %vm2184, %v1861, %v2440
  %v2697 = vsel %vm2185, %v1864, %v2441
  %v2698 = vsel %vm2186, %v1866, %v2442
  %v2699 = vsel %vm2187, %v1869, %v2443
  %v2700 = vsel %vm2188, %v1871, %v2444
  %v2701 = vsel %vm2189, %v1874, %v2445
  %v2702 = vsel %vm2190, %v1876, %v2446
  %v2703 = vsel %vm2191, %v1879, %v2447
  %v2704 = vsel %vm2192, %v1881, %v2448
  %v2705 = vsel %vm2193, %v1884, %v2449
  %v2706 = vsel %vm2194, %v1886, %v2450
  %v2707 = vsel %vm2195, %v1889, %v2451
  %v2708 = vsel %vm2196, %v1891, %v2452
  %v2709 = vsel %vm2197, %v1894, %v2453
  %v2710 = vsel %vm2198, %v1896, %v2454
  %v2711 = vsel %vm2199, %v1899, %v2455
  %v2712 = vsel %vm2200, %v1901, %v2456
  %v2713 = vsel %vm2201, %v1904, %v2457
  %v2714 = vsel %vm2202, %v1906, %v2458
  %v2715 = vsel %vm2203, %v1909, %v2459
  %v2716 = vsel %vm2204, %v1911, %v2460
  %v2717 = vsel %vm2205, %v1914, %v2461
  %v2718 = vsel %vm2206, %v1916, %v2462
  %v2719 = vsel %vm2207, %v1919, %v2463
  %v2720 = vsel %vm2208, %v1921, %v2464
  %v2721 = vsel %vm2209, %v1924, %v2465
  %v2722 = vsel %vm2210, %v1926, %v2466
  %v2723 = vsel %vm2211, %v1929, %v2467
  %v2724 = vsel %vm2212, %v1931, %v2468
  %v2725 = vsel %vm2213, %v1934, %v2469
  %v2726 = vsel %vm2214, %v1936, %v2470
  %v2727 = vsel %vm2215, %v1939, %v2471
  %v2728 = vsel %vm2216, %v1941, %v2472
  %v2729 = vsel %vm2217, %v1944, %v2473
  %v2730 = vsel %vm2218, %v1946, %v2474
  %v2731 = vsel %vm2219, %v1949, %v2475
  %v2732 = vsel %vm2220, %v1951, %v2476
  %v2733 = vsel %vm2221, %v1954, %v2477
  %v2734 = vsel %vm2222, %v1956, %v2478
  %v2735 = vsel %vm2223, %v1959, %v2479
  %v2736 = vsel %vm2224, %v1961, %v2480
  %v2737 = vsel %vm2225, %v1964, %v2481
  %v2738 = vsel %vm2226, %v1966, %v2482
  %v2739 = vsel %vm2227, %v1969, %v2483
  %v2740 = vsel %vm2228, %v1971, %v2484
  %v2741 = vpack.c.bf16 %v2485, %v2485
  %v2742 = vpack.c.bf16 %v2486, %v2486
  %v2743 = vpack.c.bf16 %v2487, %v2487
  %v2744 = vpack.c.bf16 %v2488, %v2488
  %v2745 = vpack.c.bf16 %v2489, %v2489
  %v2746 = vpack.c.bf16 %v2490, %v2490
  %v2747 = vpack.c.bf16 %v2491, %v2491
  %v2748 = vpack.c.bf16 %v2492, %v2492
  %v2749 = vpack.c.bf16 %v2493, %v2493
  %v2750 = vpack.c.bf16 %v2494, %v2494
  %v2751 = vpack.c.bf16 %v2495, %v2495
  %v2752 = vpack.c.bf16 %v2496, %v2496
  %v2753 = vpack.c.bf16 %v2497, %v2497
  %v2754 = vpack.c.bf16 %v2498, %v2498
  %v2755 = vpack.c.bf16 %v2499, %v2499
  %v2756 = vpack.c.bf16 %v2500, %v2500
  %v2757 = vpack.c.bf16 %v2501, %v2501
  %v2758 = vpack.c.bf16 %v2502, %v2502
  %v2759 = vpack.c.bf16 %v2503, %v2503
  %v2760 = vpack.c.bf16 %v2504, %v2504
  %v2761 = vpack.c.bf16 %v2505, %v2505
  %v2762 = vpack.c.bf16 %v2506, %v2506
  %v2763 = vpack.c.bf16 %v2507, %v2507
  %v2764 = vpack.c.bf16 %v2508, %v2508
  %v2765 = vpack.c.bf16 %v2509, %v2509
  %v2766 = vpack.c.bf16 %v2510, %v2510
  %v2767 = vpack.c.bf16 %v2511, %v2511
  %v2768 = vpack.c.bf16 %v2512, %v2512
  %v2769 = vpack.c.bf16 %v2513, %v2513
  %v2770 = vpack.c.bf16 %v2514, %v2514
  %v2771 = vpack.c.bf16 %v2515, %v2515
  %v2772 = vpack.c.bf16 %v2516, %v2516
  %v2773 = vpack.c.bf16 %v2517, %v2517
  %v2774 = vpack.c.bf16 %v2518, %v2518
  %v2775 = vpack.c.bf16 %v2519, %v2519
  %v2776 = vpack.c.bf16 %v2520, %v2520
  %v2777 = vpack.c.bf16 %v2521, %v2521
  %v2778 = vpack.c.bf16 %v2522, %v2522
  %v2779 = vpack.c.bf16 %v2523, %v2523
  %v2780 = vpack.c.bf16 %v2524, %v2524
  %v2781 = vpack.c.bf16 %v2525, %v2525
  %v2782 = vpack.c.bf16 %v2526, %v2526
  %v2783 = vpack.c.bf16 %v2527, %v2527
  %v2784 = vpack.c.bf16 %v2528, %v2528
  %v2785 = vpack.c.bf16 %v2529, %v2529
  %v2786 = vpack.c.bf16 %v2530, %v2530
  %v2787 = vpack.c.bf16 %v2531, %v2531
  %v2788 = vpack.c.bf16 %v2532, %v2532
  %v2789 = vpack.c.bf16 %v2533, %v2533
  %v2790 = vpack.c.bf16 %v2534, %v2534
  %v2791 = vpack.c.bf16 %v2535, %v2535
  %v2792 = vpack.c.bf16 %v2536, %v2536
  %v2793 = vpack.c.bf16 %v2537, %v2537
  %v2794 = vpack.c.bf16 %v2538, %v2538
  %v2795 = vpack.c.bf16 %v2539, %v2539
  %v2796 = vpack.c.bf16 %v2540, %v2540
  %v2797 = vpack.c.bf16 %v2541, %v2541
  %v2798 = vpack.c.bf16 %v2542, %v2542
  %v2799 = vpack.c.bf16 %v2543, %v2543
  %v2800 = vpack.c.bf16 %v2544, %v2544
  %v2801 = vpack.c.bf16 %v2545, %v2545
  %v2802 = vpack.c.bf16 %v2546, %v2546
  %v2803 = vpack.c.bf16 %v2547, %v2547
  %v2804 = vpack.c.bf16 %v2548, %v2548
  %v2805 = vpack.c.bf16 %v2549, %v2549
  %v2806 = vpack.c.bf16 %v2550, %v2550
  %v2807 = vpack.c.bf16 %v2551, %v2551
  %v2808 = vpack.c.bf16 %v2552, %v2552
  %v2809 = vpack.c.bf16 %v2553, %v2553
  %v2810 = vpack.c.bf16 %v2554, %v2554
  %v2811 = vpack.c.bf16 %v2555, %v2555
  %v2812 = vpack.c.bf16 %v2556, %v2556
  %v2813 = vpack.c.bf16 %v2557, %v2557
  %v2814 = vpack.c.bf16 %v2558, %v2558
  %v2815 = vpack.c.bf16 %v2559, %v2559
  %v2816 = vpack.c.bf16 %v2560, %v2560
  %v2817 = vpack.c.bf16 %v2561, %v2561
  %v2818 = vpack.c.bf16 %v2562, %v2562
  %v2819 = vpack.c.bf16 %v2563, %v2563
  %v2820 = vpack.c.bf16 %v2564, %v2564
  %v2821 = vpack.c.bf16 %v2565, %v2565
  %v2822 = vpack.c.bf16 %v2566, %v2566
  %v2823 = vpack.c.bf16 %v2567, %v2567
  %v2824 = vpack.c.bf16 %v2568, %v2568
  %v2825 = vpack.c.bf16 %v2569, %v2569
  %v2826 = vpack.c.bf16 %v2570, %v2570
  %v2827 = vpack.c.bf16 %v2571, %v2571
  %v2828 = vpack.c.bf16 %v2572, %v2572
  %v2829 = vpack.c.bf16 %v2573, %v2573
  %v2830 = vpack.c.bf16 %v2574, %v2574
  %v2831 = vpack.c.bf16 %v2575, %v2575
  %v2832 = vpack.c.bf16 %v2576, %v2576
  %v2833 = vpack.c.bf16 %v2577, %v2577
  %v2834 = vpack.c.bf16 %v2578, %v2578
  %v2835 = vpack.c.bf16 %v2579, %v2579
  %v2836 = vpack.c.bf16 %v2580, %v2580
  %v2837 = vpack.c.bf16 %v2581, %v2581
  %v2838 = vpack.c.bf16 %v2582, %v2582
  %v2839 = vpack.c.bf16 %v2583, %v2583
  %v2840 = vpack.c.bf16 %v2584, %v2584
  %v2841 = vpack.c.bf16 %v2585, %v2585
  %v2842 = vpack.c.bf16 %v2586, %v2586
  %v2843 = vpack.c.bf16 %v2587, %v2587
  %v2844 = vpack.c.bf16 %v2588, %v2588
  %v2845 = vpack.c.bf16 %v2589, %v2589
  %v2846 = vpack.c.bf16 %v2590, %v2590
  %v2847 = vpack.c.bf16 %v2591, %v2591
  %v2848 = vpack.c.bf16 %v2592, %v2592
  %v2849 = vpack.c.bf16 %v2593, %v2593
  %v2850 = vpack.c.bf16 %v2594, %v2594
  %v2851 = vpack.c.bf16 %v2595, %v2595
  %v2852 = vpack.c.bf16 %v2596, %v2596
  %v2853 = vpack.c.bf16 %v2597, %v2597
  %v2854 = vpack.c.bf16 %v2598, %v2598
  %v2855 = vpack.c.bf16 %v2599, %v2599
  %v2856 = vpack.c.bf16 %v2600, %v2600
  %v2857 = vpack.c.bf16 %v2601, %v2601
  %v2858 = vpack.c.bf16 %v2602, %v2602
  %v2859 = vpack.c.bf16 %v2603, %v2603
  %v2860 = vpack.c.bf16 %v2604, %v2604
  %v2861 = vpack.c.bf16 %v2605, %v2605
  %v2862 = vpack.c.bf16 %v2606, %v2606
  %v2863 = vpack.c.bf16 %v2607, %v2607
  %v2864 = vpack.c.bf16 %v2608, %v2608
  %v2865 = vpack.c.bf16 %v2609, %v2609
  %v2866 = vpack.c.bf16 %v2610, %v2610
  %v2867 = vpack.c.bf16 %v2611, %v2611
  %v2868 = vpack.c.bf16 %v2612, %v2612
  %v2869 = vpack.c.bf16 %v2613, %v2613
  %v2870 = vpack.c.bf16 %v2614, %v2614
  %v2871 = vpack.c.bf16 %v2615, %v2615
  %v2872 = vpack.c.bf16 %v2616, %v2616
  %v2873 = vpack.c.bf16 %v2617, %v2617
  %v2874 = vpack.c.bf16 %v2618, %v2618
  %v2875 = vpack.c.bf16 %v2619, %v2619
  %v2876 = vpack.c.bf16 %v2620, %v2620
  %v2877 = vpack.c.bf16 %v2621, %v2621
  %v2878 = vpack.c.bf16 %v2622, %v2622
  %v2879 = vpack.c.bf16 %v2623, %v2623
  %v2880 = vpack.c.bf16 %v2624, %v2624
  %v2881 = vpack.c.bf16 %v2625, %v2625
  %v2882 = vpack.c.bf16 %v2626, %v2626
  %v2883 = vpack.c.bf16 %v2627, %v2627
  %v2884 = vpack.c.bf16 %v2628, %v2628
  %v2885 = vpack.c.bf16 %v2629, %v2629
  %v2886 = vpack.c.bf16 %v2630, %v2630
  %v2887 = vpack.c.bf16 %v2631, %v2631
  %v2888 = vpack.c.bf16 %v2632, %v2632
  %v2889 = vpack.c.bf16 %v2633, %v2633
  %v2890 = vpack.c.bf16 %v2634, %v2634
  %v2891 = vpack.c.bf16 %v2635, %v2635
  %v2892 = vpack.c.bf16 %v2636, %v2636
  %v2893 = vpack.c.bf16 %v2637, %v2637
  %v2894 = vpack.c.bf16 %v2638, %v2638
  %v2895 = vpack.c.bf16 %v2639, %v2639
  %v2896 = vpack.c.bf16 %v2640, %v2640
  %v2897 = vpack.c.bf16 %v2641, %v2641
  %v2898 = vpack.c.bf16 %v2642, %v2642
  %v2899 = vpack.c.bf16 %v2643, %v2643
  %v2900 = vpack.c.bf16 %v2644, %v2644
  %v2901 = vpack.c.bf16 %v2645, %v2645
  %v2902 = vpack.c.bf16 %v2646, %v2646
  %v2903 = vpack.c.bf16 %v2647, %v2647
  %v2904 = vpack.c.bf16 %v2648, %v2648
  %v2905 = vpack.c.bf16 %v2649, %v2649
  %v2906 = vpack.c.bf16 %v2650, %v2650
  %v2907 = vpack.c.bf16 %v2651, %v2651
  %v2908 = vpack.c.bf16 %v2652, %v2652
  %v2909 = vpack.c.bf16 %v2653, %v2653
  %v2910 = vpack.c.bf16 %v2654, %v2654
  %v2911 = vpack.c.bf16 %v2655, %v2655
  %v2912 = vpack.c.bf16 %v2656, %v2656
  %v2913 = vpack.c.bf16 %v2657, %v2657
  %v2914 = vpack.c.bf16 %v2658, %v2658
  %v2915 = vpack.c.bf16 %v2659, %v2659
  %v2916 = vpack.c.bf16 %v2660, %v2660
  %v2917 = vpack.c.bf16 %v2661, %v2661
  %v2918 = vpack.c.bf16 %v2662, %v2662
  %v2919 = vpack.c.bf16 %v2663, %v2663
  %v2920 = vpack.c.bf16 %v2664, %v2664
  %v2921 = vpack.c.bf16 %v2665, %v2665
  %v2922 = vpack.c.bf16 %v2666, %v2666
  %v2923 = vpack.c.bf16 %v2667, %v2667
  %v2924 = vpack.c.bf16 %v2668, %v2668
  %v2925 = vpack.c.bf16 %v2669, %v2669
  %v2926 = vpack.c.bf16 %v2670, %v2670
  %v2927 = vpack.c.bf16 %v2671, %v2671
  %v2928 = vpack.c.bf16 %v2672, %v2672
  %v2929 = vpack.c.bf16 %v2673, %v2673
  %v2930 = vpack.c.bf16 %v2674, %v2674
  %v2931 = vpack.c.bf16 %v2675, %v2675
  %v2932 = vpack.c.bf16 %v2676, %v2676
  %v2933 = vpack.c.bf16 %v2677, %v2677
  %v2934 = vpack.c.bf16 %v2678, %v2678
  %v2935 = vpack.c.bf16 %v2679, %v2679
  %v2936 = vpack.c.bf16 %v2680, %v2680
  %v2937 = vpack.c.bf16 %v2681, %v2681
  %v2938 = vpack.c.bf16 %v2682, %v2682
  %v2939 = vpack.c.bf16 %v2683, %v2683
  %v2940 = vpack.c.bf16 %v2684, %v2684
  %v2941 = vpack.c.bf16 %v2685, %v2685
  %v2942 = vpack.c.bf16 %v2686, %v2686
  %v2943 = vpack.c.bf16 %v2687, %v2687
  %v2944 = vpack.c.bf16 %v2688, %v2688
  %v2945 = vpack.c.bf16 %v2689, %v2689
  %v2946 = vpack.c.bf16 %v2690, %v2690
  %v2947 = vpack.c.bf16 %v2691, %v2691
  %v2948 = vpack.c.bf16 %v2692, %v2692
  %v2949 = vpack.c.bf16 %v2693, %v2693
  %v2950 = vpack.c.bf16 %v2694, %v2694
  %v2951 = vpack.c.bf16 %v2695, %v2695
  %v2952 = vpack.c.bf16 %v2696, %v2696
  %v2953 = vpack.c.bf16 %v2697, %v2697
  %v2954 = vpack.c.bf16 %v2698, %v2698
  %v2955 = vpack.c.bf16 %v2699, %v2699
  %v2956 = vpack.c.bf16 %v2700, %v2700
  %v2957 = vpack.c.bf16 %v2701, %v2701
  %v2958 = vpack.c.bf16 %v2702, %v2702
  %v2959 = vpack.c.bf16 %v2703, %v2703
  %v2960 = vpack.c.bf16 %v2704, %v2704
  %v2961 = vpack.c.bf16 %v2705, %v2705
  %v2962 = vpack.c.bf16 %v2706, %v2706
  %v2963 = vpack.c.bf16 %v2707, %v2707
  %v2964 = vpack.c.bf16 %v2708, %v2708
  %v2965 = vpack.c.bf16 %v2709, %v2709
  %v2966 = vpack.c.bf16 %v2710, %v2710
  %v2967 = vpack.c.bf16 %v2711, %v2711
  %v2968 = vpack.c.bf16 %v2712, %v2712
  %v2969 = vpack.c.bf16 %v2713, %v2713
  %v2970 = vpack.c.bf16 %v2714, %v2714
  %v2971 = vpack.c.bf16 %v2715, %v2715
  %v2972 = vpack.c.bf16 %v2716, %v2716
  %v2973 = vpack.c.bf16 %v2717, %v2717
  %v2974 = vpack.c.bf16 %v2718, %v2718
  %v2975 = vpack.c.bf16 %v2719, %v2719
  %v2976 = vpack.c.bf16 %v2720, %v2720
  %v2977 = vpack.c.bf16 %v2721, %v2721
  %v2978 = vpack.c.bf16 %v2722, %v2722
  %v2979 = vpack.c.bf16 %v2723, %v2723
  %v2980 = vpack.c.bf16 %v2724, %v2724
  %v2981 = vpack.c.bf16 %v2725, %v2725
  %v2982 = vpack.c.bf16 %v2726, %v2726
  %v2983 = vpack.c.bf16 %v2727, %v2727
  %v2984 = vpack.c.bf16 %v2728, %v2728
  %v2985 = vpack.c.bf16 %v2729, %v2729
  %v2986 = vpack.c.bf16 %v2730, %v2730
  %v2987 = vpack.c.bf16 %v2731, %v2731
  %v2988 = vpack.c.bf16 %v2732, %v2732
  %v2989 = vpack.c.bf16 %v2733, %v2733
  %v2990 = vpack.c.bf16 %v2734, %v2734
  %v2991 = vpack.c.bf16 %v2735, %v2735
  %v2992 = vpack.c.bf16 %v2736, %v2736
  %v2993 = vpack.c.bf16 %v2737, %v2737
  %v2994 = vpack.c.bf16 %v2738, %v2738
  %v2995 = vpack.c.bf16 %v2739, %v2739
  %v2996 = vpack.c.bf16 %v2740, %v2740
  %2997 = vst [vmem:[%s3] sm:$0xf] %v2741
  %2998 = vst [vmem:[%s3 + $0x4] sm:$0xf] %v2742
  %2999 = vst [vmem:[%s3 + $0x8] sm:$0xf] %v2743
  %3000 = vst [vmem:[%s3 + $0xc] sm:$0xf] %v2744
  %3001 = vst [vmem:[%s3 + $0x10] sm:$0xf] %v2745
  %3002 = vst [vmem:[%s3 + $0x14] sm:$0xf] %v2746
  %3003 = vst [vmem:[%s3 + $0x18] sm:$0xf] %v2747
  %3004 = vst [vmem:[%s3 + $0x1c] sm:$0xf] %v2748
  %3005 = vst [vmem:[%s3 + $0x20] sm:$0xf] %v2749
  %3006 = vst [vmem:[%s3 + $0x24] sm:$0xf] %v2750
  %3007 = vst [vmem:[%s3 + $0x28] sm:$0xf] %v2751
  %3008 = vst [vmem:[%s3 + $0x2c] sm:$0xf] %v2752
  %3009 = vst [vmem:[%s3 + $0x30] sm:$0xf] %v2753
  %3010 = vst [vmem:[%s3 + $0x34] sm:$0xf] %v2754
  %3011 = vst [vmem:[%s3 + $0x38] sm:$0xf] %v2755
  %3012 = vst [vmem:[%s3 + $0x3c] sm:$0xf] %v2756
  %3013 = vst [vmem:[%s3 + $0x40] sm:$0xf] %v2757
  %3014 = vst [vmem:[%s3 + $0x44] sm:$0xf] %v2758
  %3015 = vst [vmem:[%s3 + $0x48] sm:$0xf] %v2759
  %3016 = vst [vmem:[%s3 + $0x4c] sm:$0xf] %v2760
  %3017 = vst [vmem:[%s3 + $0x50] sm:$0xf] %v2761
  %3018 = vst [vmem:[%s3 + $0x54] sm:$0xf] %v2762
  %3019 = vst [vmem:[%s3 + $0x58] sm:$0xf] %v2763
  %3020 = vst [vmem:[%s3 + $0x5c] sm:$0xf] %v2764
  %3021 = vst [vmem:[%s3 + $0x60] sm:$0xf] %v2765
  %3022 = vst [vmem:[%s3 + $0x64] sm:$0xf] %v2766
  %3023 = vst [vmem:[%s3 + $0x68] sm:$0xf] %v2767
  %3024 = vst [vmem:[%s3 + $0x6c] sm:$0xf] %v2768
  %3025 = vst [vmem:[%s3 + $0x70] sm:$0xf] %v2769
  %3026 = vst [vmem:[%s3 + $0x74] sm:$0xf] %v2770
  %3027 = vst [vmem:[%s3 + $0x78] sm:$0xf] %v2771
  %3028 = vst [vmem:[%s3 + $0x7c] sm:$0xf] %v2772
  %3029 = vst [vmem:[%s3 + $0x80] sm:$0xf] %v2773
  %3030 = vst [vmem:[%s3 + $0x84] sm:$0xf] %v2774
  %3031 = vst [vmem:[%s3 + $0x88] sm:$0xf] %v2775
  %3032 = vst [vmem:[%s3 + $0x8c] sm:$0xf] %v2776
  %3033 = vst [vmem:[%s3 + $0x90] sm:$0xf] %v2777
  %3034 = vst [vmem:[%s3 + $0x94] sm:$0xf] %v2778
  %3035 = vst [vmem:[%s3 + $0x98] sm:$0xf] %v2779
  %3036 = vst [vmem:[%s3 + $0x9c] sm:$0xf] %v2780
  %3037 = vst [vmem:[%s3 + $0xa0] sm:$0xf] %v2781
  %3038 = vst [vmem:[%s3 + $0xa4] sm:$0xf] %v2782
  %3039 = vst [vmem:[%s3 + $0xa8] sm:$0xf] %v2783
  %3040 = vst [vmem:[%s3 + $0xac] sm:$0xf] %v2784
  %3041 = vst [vmem:[%s3 + $0xb0] sm:$0xf] %v2785
  %3042 = vst [vmem:[%s3 + $0xb4] sm:$0xf] %v2786
  %3043 = vst [vmem:[%s3 + $0xb8] sm:$0xf] %v2787
  %3044 = vst [vmem:[%s3 + $0xbc] sm:$0xf] %v2788
  %3045 = vst [vmem:[%s3 + $0xc0] sm:$0xf] %v2789
  %3046 = vst [vmem:[%s3 + $0xc4] sm:$0xf] %v2790
  %3047 = vst [vmem:[%s3 + $0xc8] sm:$0xf] %v2791
  %3048 = vst [vmem:[%s3 + $0xcc] sm:$0xf] %v2792
  %3049 = vst [vmem:[%s3 + $0xd0] sm:$0xf] %v2793
  %3050 = vst [vmem:[%s3 + $0xd4] sm:$0xf] %v2794
  %3051 = vst [vmem:[%s3 + $0xd8] sm:$0xf] %v2795
  %3052 = vst [vmem:[%s3 + $0xdc] sm:$0xf] %v2796
  %3053 = vst [vmem:[%s3 + $0xe0] sm:$0xf] %v2797
  %3054 = vst [vmem:[%s3 + $0xe4] sm:$0xf] %v2798
  %3055 = vst [vmem:[%s3 + $0xe8] sm:$0xf] %v2799
  %3056 = vst [vmem:[%s3 + $0xec] sm:$0xf] %v2800
  %3057 = vst [vmem:[%s3 + $0xf0] sm:$0xf] %v2801
  %3058 = vst [vmem:[%s3 + $0xf4] sm:$0xf] %v2802
  %3059 = vst [vmem:[%s3 + $0xf8] sm:$0xf] %v2803
  %3060 = vst [vmem:[%s3 + $0xfc] sm:$0xf] %v2804
  %3061 = vst [vmem:[%s3 + $0x100] sm:$0xf] %v2805
  %3062 = vst [vmem:[%s3 + $0x104] sm:$0xf] %v2806
  %3063 = vst [vmem:[%s3 + $0x108] sm:$0xf] %v2807
  %3064 = vst [vmem:[%s3 + $0x10c] sm:$0xf] %v2808
  %3065 = vst [vmem:[%s3 + $0x110] sm:$0xf] %v2809
  %3066 = vst [vmem:[%s3 + $0x114] sm:$0xf] %v2810
  %3067 = vst [vmem:[%s3 + $0x118] sm:$0xf] %v2811
  %3068 = vst [vmem:[%s3 + $0x11c] sm:$0xf] %v2812
  %3069 = vst [vmem:[%s3 + $0x120] sm:$0xf] %v2813
  %3070 = vst [vmem:[%s3 + $0x124] sm:$0xf] %v2814
  %3071 = vst [vmem:[%s3 + $0x128] sm:$0xf] %v2815
  %3072 = vst [vmem:[%s3 + $0x12c] sm:$0xf] %v2816
  %3073 = vst [vmem:[%s3 + $0x130] sm:$0xf] %v2817
  %3074 = vst [vmem:[%s3 + $0x134] sm:$0xf] %v2818
  %3075 = vst [vmem:[%s3 + $0x138] sm:$0xf] %v2819
  %3076 = vst [vmem:[%s3 + $0x13c] sm:$0xf] %v2820
  %3077 = vst [vmem:[%s3 + $0x140] sm:$0xf] %v2821
  %3078 = vst [vmem:[%s3 + $0x144] sm:$0xf] %v2822
  %3079 = vst [vmem:[%s3 + $0x148] sm:$0xf] %v2823
  %3080 = vst [vmem:[%s3 + $0x14c] sm:$0xf] %v2824
  %3081 = vst [vmem:[%s3 + $0x150] sm:$0xf] %v2825
  %3082 = vst [vmem:[%s3 + $0x154] sm:$0xf] %v2826
  %3083 = vst [vmem:[%s3 + $0x158] sm:$0xf] %v2827
  %3084 = vst [vmem:[%s3 + $0x15c] sm:$0xf] %v2828
  %3085 = vst [vmem:[%s3 + $0x160] sm:$0xf] %v2829
  %3086 = vst [vmem:[%s3 + $0x164] sm:$0xf] %v2830
  %3087 = vst [vmem:[%s3 + $0x168] sm:$0xf] %v2831
  %3088 = vst [vmem:[%s3 + $0x16c] sm:$0xf] %v2832
  %3089 = vst [vmem:[%s3 + $0x170] sm:$0xf] %v2833
  %3090 = vst [vmem:[%s3 + $0x174] sm:$0xf] %v2834
  %3091 = vst [vmem:[%s3 + $0x178] sm:$0xf] %v2835
  %3092 = vst [vmem:[%s3 + $0x17c] sm:$0xf] %v2836
  %3093 = vst [vmem:[%s3 + $0x180] sm:$0xf] %v2837
  %3094 = vst [vmem:[%s3 + $0x184] sm:$0xf] %v2838
  %3095 = vst [vmem:[%s3 + $0x188] sm:$0xf] %v2839
  %3096 = vst [vmem:[%s3 + $0x18c] sm:$0xf] %v2840
  %3097 = vst [vmem:[%s3 + $0x190] sm:$0xf] %v2841
  %3098 = vst [vmem:[%s3 + $0x194] sm:$0xf] %v2842
  %3099 = vst [vmem:[%s3 + $0x198] sm:$0xf] %v2843
  %3100 = vst [vmem:[%s3 + $0x19c] sm:$0xf] %v2844
  %3101 = vst [vmem:[%s3 + $0x1a0] sm:$0xf] %v2845
  %3102 = vst [vmem:[%s3 + $0x1a4] sm:$0xf] %v2846
  %3103 = vst [vmem:[%s3 + $0x1a8] sm:$0xf] %v2847
  %3104 = vst [vmem:[%s3 + $0x1ac] sm:$0xf] %v2848
  %3105 = vst [vmem:[%s3 + $0x1b0] sm:$0xf] %v2849
  %3106 = vst [vmem:[%s3 + $0x1b4] sm:$0xf] %v2850
  %3107 = vst [vmem:[%s3 + $0x1b8] sm:$0xf] %v2851
  %3108 = vst [vmem:[%s3 + $0x1bc] sm:$0xf] %v2852
  %3109 = vst [vmem:[%s3 + $0x1c0] sm:$0xf] %v2853
  %3110 = vst [vmem:[%s3 + $0x1c4] sm:$0xf] %v2854
  %3111 = vst [vmem:[%s3 + $0x1c8] sm:$0xf] %v2855
  %3112 = vst [vmem:[%s3 + $0x1cc] sm:$0xf] %v2856
  %3113 = vst [vmem:[%s3 + $0x1d0] sm:$0xf] %v2857
  %3114 = vst [vmem:[%s3 + $0x1d4] sm:$0xf] %v2858
  %3115 = vst [vmem:[%s3 + $0x1d8] sm:$0xf] %v2859
  %3116 = vst [vmem:[%s3 + $0x1dc] sm:$0xf] %v2860
  %3117 = vst [vmem:[%s3 + $0x1e0] sm:$0xf] %v2861
  %3118 = vst [vmem:[%s3 + $0x1e4] sm:$0xf] %v2862
  %3119 = vst [vmem:[%s3 + $0x1e8] sm:$0xf] %v2863
  %3120 = vst [vmem:[%s3 + $0x1ec] sm:$0xf] %v2864
  %3121 = vst [vmem:[%s3 + $0x1f0] sm:$0xf] %v2865
  %3122 = vst [vmem:[%s3 + $0x1f4] sm:$0xf] %v2866
  %3123 = vst [vmem:[%s3 + $0x1f8] sm:$0xf] %v2867
  %3124 = vst [vmem:[%s3 + $0x1fc] sm:$0xf] %v2868
  %3125 = vst [vmem:[%s3 + $0x200] sm:$0xf] %v2869
  %3126 = vst [vmem:[%s3 + $0x204] sm:$0xf] %v2870
  %3127 = vst [vmem:[%s3 + $0x208] sm:$0xf] %v2871
  %3128 = vst [vmem:[%s3 + $0x20c] sm:$0xf] %v2872
  %3129 = vst [vmem:[%s3 + $0x210] sm:$0xf] %v2873
  %3130 = vst [vmem:[%s3 + $0x214] sm:$0xf] %v2874
  %3131 = vst [vmem:[%s3 + $0x218] sm:$0xf] %v2875
  %3132 = vst [vmem:[%s3 + $0x21c] sm:$0xf] %v2876
  %3133 = vst [vmem:[%s3 + $0x220] sm:$0xf] %v2877
  %3134 = vst [vmem:[%s3 + $0x224] sm:$0xf] %v2878
  %3135 = vst [vmem:[%s3 + $0x228] sm:$0xf] %v2879
  %3136 = vst [vmem:[%s3 + $0x22c] sm:$0xf] %v2880
  %3137 = vst [vmem:[%s3 + $0x230] sm:$0xf] %v2881
  %3138 = vst [vmem:[%s3 + $0x234] sm:$0xf] %v2882
  %3139 = vst [vmem:[%s3 + $0x238] sm:$0xf] %v2883
  %3140 = vst [vmem:[%s3 + $0x23c] sm:$0xf] %v2884
  %3141 = vst [vmem:[%s3 + $0x240] sm:$0xf] %v2885
  %3142 = vst [vmem:[%s3 + $0x244] sm:$0xf] %v2886
  %3143 = vst [vmem:[%s3 + $0x248] sm:$0xf] %v2887
  %3144 = vst [vmem:[%s3 + $0x24c] sm:$0xf] %v2888
  %3145 = vst [vmem:[%s3 + $0x250] sm:$0xf] %v2889
  %3146 = vst [vmem:[%s3 + $0x254] sm:$0xf] %v2890
  %3147 = vst [vmem:[%s3 + $0x258] sm:$0xf] %v2891
  %3148 = vst [vmem:[%s3 + $0x25c] sm:$0xf] %v2892
  %3149 = vst [vmem:[%s3 + $0x260] sm:$0xf] %v2893
  %3150 = vst [vmem:[%s3 + $0x264] sm:$0xf] %v2894
  %3151 = vst [vmem:[%s3 + $0x268] sm:$0xf] %v2895
  %3152 = vst [vmem:[%s3 + $0x26c] sm:$0xf] %v2896
  %3153 = vst [vmem:[%s3 + $0x270] sm:$0xf] %v2897
  %3154 = vst [vmem:[%s3 + $0x274] sm:$0xf] %v2898
  %3155 = vst [vmem:[%s3 + $0x278] sm:$0xf] %v2899
  %3156 = vst [vmem:[%s3 + $0x27c] sm:$0xf] %v2900
  %3157 = vst [vmem:[%s3 + $0x280] sm:$0xf] %v2901
  %3158 = vst [vmem:[%s3 + $0x284] sm:$0xf] %v2902
  %3159 = vst [vmem:[%s3 + $0x288] sm:$0xf] %v2903
  %3160 = vst [vmem:[%s3 + $0x28c] sm:$0xf] %v2904
  %3161 = vst [vmem:[%s3 + $0x290] sm:$0xf] %v2905
  %3162 = vst [vmem:[%s3 + $0x294] sm:$0xf] %v2906
  %3163 = vst [vmem:[%s3 + $0x298] sm:$0xf] %v2907
  %3164 = vst [vmem:[%s3 + $0x29c] sm:$0xf] %v2908
  %3165 = vst [vmem:[%s3 + $0x2a0] sm:$0xf] %v2909
  %3166 = vst [vmem:[%s3 + $0x2a4] sm:$0xf] %v2910
  %3167 = vst [vmem:[%s3 + $0x2a8] sm:$0xf] %v2911
  %3168 = vst [vmem:[%s3 + $0x2ac] sm:$0xf] %v2912
  %3169 = vst [vmem:[%s3 + $0x2b0] sm:$0xf] %v2913
  %3170 = vst [vmem:[%s3 + $0x2b4] sm:$0xf] %v2914
  %3171 = vst [vmem:[%s3 + $0x2b8] sm:$0xf] %v2915
  %3172 = vst [vmem:[%s3 + $0x2bc] sm:$0xf] %v2916
  %3173 = vst [vmem:[%s3 + $0x2c0] sm:$0xf] %v2917
  %3174 = vst [vmem:[%s3 + $0x2c4] sm:$0xf] %v2918
  %3175 = vst [vmem:[%s3 + $0x2c8] sm:$0xf] %v2919
  %3176 = vst [vmem:[%s3 + $0x2cc] sm:$0xf] %v2920
  %3177 = vst [vmem:[%s3 + $0x2d0] sm:$0xf] %v2921
  %3178 = vst [vmem:[%s3 + $0x2d4] sm:$0xf] %v2922
  %3179 = vst [vmem:[%s3 + $0x2d8] sm:$0xf] %v2923
  %3180 = vst [vmem:[%s3 + $0x2dc] sm:$0xf] %v2924
  %3181 = vst [vmem:[%s3 + $0x2e0] sm:$0xf] %v2925
  %3182 = vst [vmem:[%s3 + $0x2e4] sm:$0xf] %v2926
  %3183 = vst [vmem:[%s3 + $0x2e8] sm:$0xf] %v2927
  %3184 = vst [vmem:[%s3 + $0x2ec] sm:$0xf] %v2928
  %3185 = vst [vmem:[%s3 + $0x2f0] sm:$0xf] %v2929
  %3186 = vst [vmem:[%s3 + $0x2f4] sm:$0xf] %v2930
  %3187 = vst [vmem:[%s3 + $0x2f8] sm:$0xf] %v2931
  %3188 = vst [vmem:[%s3 + $0x2fc] sm:$0xf] %v2932
  %3189 = vst [vmem:[%s3 + $0x300] sm:$0xf] %v2933
  %3190 = vst [vmem:[%s3 + $0x304] sm:$0xf] %v2934
  %3191 = vst [vmem:[%s3 + $0x308] sm:$0xf] %v2935
  %3192 = vst [vmem:[%s3 + $0x30c] sm:$0xf] %v2936
  %3193 = vst [vmem:[%s3 + $0x310] sm:$0xf] %v2937
  %3194 = vst [vmem:[%s3 + $0x314] sm:$0xf] %v2938
  %3195 = vst [vmem:[%s3 + $0x318] sm:$0xf] %v2939
  %3196 = vst [vmem:[%s3 + $0x31c] sm:$0xf] %v2940
  %3197 = vst [vmem:[%s3 + $0x320] sm:$0xf] %v2941
  %3198 = vst [vmem:[%s3 + $0x324] sm:$0xf] %v2942
  %3199 = vst [vmem:[%s3 + $0x328] sm:$0xf] %v2943
  %3200 = vst [vmem:[%s3 + $0x32c] sm:$0xf] %v2944
  %3201 = vst [vmem:[%s3 + $0x330] sm:$0xf] %v2945
  %3202 = vst [vmem:[%s3 + $0x334] sm:$0xf] %v2946
  %3203 = vst [vmem:[%s3 + $0x338] sm:$0xf] %v2947
  %3204 = vst [vmem:[%s3 + $0x33c] sm:$0xf] %v2948
  %3205 = vst [vmem:[%s3 + $0x340] sm:$0xf] %v2949
  %3206 = vst [vmem:[%s3 + $0x344] sm:$0xf] %v2950
  %3207 = vst [vmem:[%s3 + $0x348] sm:$0xf] %v2951
  %3208 = vst [vmem:[%s3 + $0x34c] sm:$0xf] %v2952
  %3209 = vst [vmem:[%s3 + $0x350] sm:$0xf] %v2953
  %3210 = vst [vmem:[%s3 + $0x354] sm:$0xf] %v2954
  %3211 = vst [vmem:[%s3 + $0x358] sm:$0xf] %v2955
  %3212 = vst [vmem:[%s3 + $0x35c] sm:$0xf] %v2956
  %3213 = vst [vmem:[%s3 + $0x360] sm:$0xf] %v2957
  %3214 = vst [vmem:[%s3 + $0x364] sm:$0xf] %v2958
  %3215 = vst [vmem:[%s3 + $0x368] sm:$0xf] %v2959
  %3216 = vst [vmem:[%s3 + $0x36c] sm:$0xf] %v2960
  %3217 = vst [vmem:[%s3 + $0x370] sm:$0xf] %v2961
  %3218 = vst [vmem:[%s3 + $0x374] sm:$0xf] %v2962
  %3219 = vst [vmem:[%s3 + $0x378] sm:$0xf] %v2963
  %3220 = vst [vmem:[%s3 + $0x37c] sm:$0xf] %v2964
  %3221 = vst [vmem:[%s3 + $0x380] sm:$0xf] %v2965
  %3222 = vst [vmem:[%s3 + $0x384] sm:$0xf] %v2966
  %3223 = vst [vmem:[%s3 + $0x388] sm:$0xf] %v2967
  %3224 = vst [vmem:[%s3 + $0x38c] sm:$0xf] %v2968
  %3225 = vst [vmem:[%s3 + $0x390] sm:$0xf] %v2969
  %3226 = vst [vmem:[%s3 + $0x394] sm:$0xf] %v2970
  %3227 = vst [vmem:[%s3 + $0x398] sm:$0xf] %v2971
  %3228 = vst [vmem:[%s3 + $0x39c] sm:$0xf] %v2972
  %3229 = vst [vmem:[%s3 + $0x3a0] sm:$0xf] %v2973
  %3230 = vst [vmem:[%s3 + $0x3a4] sm:$0xf] %v2974
  %3231 = vst [vmem:[%s3 + $0x3a8] sm:$0xf] %v2975
  %3232 = vst [vmem:[%s3 + $0x3ac] sm:$0xf] %v2976
  %3233 = vst [vmem:[%s3 + $0x3b0] sm:$0xf] %v2977
  %3234 = vst [vmem:[%s3 + $0x3b4] sm:$0xf] %v2978
  %3235 = vst [vmem:[%s3 + $0x3b8] sm:$0xf] %v2979
  %3236 = vst [vmem:[%s3 + $0x3bc] sm:$0xf] %v2980
  %3237 = vst [vmem:[%s3 + $0x3c0] sm:$0xf] %v2981
  %3238 = vst [vmem:[%s3 + $0x3c4] sm:$0xf] %v2982
  %3239 = vst [vmem:[%s3 + $0x3c8] sm:$0xf] %v2983
  %3240 = vst [vmem:[%s3 + $0x3cc] sm:$0xf] %v2984
  %3241 = vst [vmem:[%s3 + $0x3d0] sm:$0xf] %v2985
  %3242 = vst [vmem:[%s3 + $0x3d4] sm:$0xf] %v2986
  %3243 = vst [vmem:[%s3 + $0x3d8] sm:$0xf] %v2987
  %3244 = vst [vmem:[%s3 + $0x3dc] sm:$0xf] %v2988
  %3245 = vst [vmem:[%s3 + $0x3e0] sm:$0xf] %v2989
  %3246 = vst [vmem:[%s3 + $0x3e4] sm:$0xf] %v2990
  %3247 = vst [vmem:[%s3 + $0x3e8] sm:$0xf] %v2991
  %3248 = vst [vmem:[%s3 + $0x3ec] sm:$0xf] %v2992
  %3249 = vst [vmem:[%s3 + $0x3f0] sm:$0xf] %v2993
  %3250 = vst [vmem:[%s3 + $0x3f4] sm:$0xf] %v2994
  %3251 = vst [vmem:[%s3 + $0x3f8] sm:$0xf] %v2995
  %3252 = vst [vmem:[%s3 + $0x3fc] sm:$0xf] %v2996
  // Predicated region
  $region14: #{discriminator_forward.7} parent=0 // pred_check
    _
  $region15: #{discriminator_forward.7} parent=0 // pred_check_branch
    %3254 = sbr.rel (0) target = $region17
  $region16: #{discriminator_forward.7} parent=0 // pred_region
    _
  $region17: #{discriminator_forward.7} parent=0 // pred_fallthru
    _
  // Predicated region
  $region18: #{discriminator_forward.7} parent=0 // pred_check
    _
  $region19: #{discriminator_forward.7} parent=0 // pred_check_branch
    %3256 = sbr.rel (0) target = $region21
  $region20: #{discriminator_forward.7} parent=0 // pred_region
    _
  $region21: #{discriminator_forward.7} parent=0 // pred_fallthru
    _

// kernel: discriminator_forward.8
$region0: #{discriminator_forward.8}
  #allocation0 [shape = 'u32[]', space=smem, size = 0x4, offset = 0x4, fixed_abs, tag = 'smem constant byte address 0x4 - core index']
  #allocation1 [shape = 'u32[72,128]{1,0:T(1,128)}', space=vmem, size = 0x9000, scoped, tag = 'internal scratch']
  %s0 = inlined_call_operand.vmem [shape: bf16[512,128], index: 0, kind: input, shape index: {}]
  %s1 = inlined_call_operand.vmem [shape: bf16[128,128], index: 1, kind: input, shape index: {}]
  %s2 = inlined_call_operand.vmem [shape: bf16[512,128], index: 2, kind: output, shape index: {0}]
  %s3 = inlined_call_operand.vmem [shape: f32[1,2,128], index: 3, kind: output, shape index: {1}]
  %4 = xla_tuple %s2, %s3
  %s5 = sld [smem:[#allocation0]]
  $region26: #{discriminator_forward.8} parent=0
    _
  %s7 = ssub.s32 1, %s5
  %s8 = scalar_select 0, %s7, %s5
  // Predicated region
  $region2: #{discriminator_forward.8} parent=0 // pred_check
    _
  $region3: #{discriminator_forward.8} parent=0 // pred_check_branch
    %10 = sbr.rel (0) target = $region5
  $region4: #{discriminator_forward.8} parent=0 // pred_region
    _
  $region5: #{discriminator_forward.8} parent=0 // pred_fallthru
    _
  // Predicated region
  $region6: #{discriminator_forward.8} parent=0 // pred_check
    _
  $region7: #{discriminator_forward.8} parent=0 // pred_check_branch
    %12 = sbr.rel (0) target = $region9
  $region8: #{discriminator_forward.8} parent=0 // pred_region
    _
  $region9: #{discriminator_forward.8} parent=0 // pred_fallthru
    _
  %v13 = vld [vmem:[%s0] sm:$0xf]
  %v14 = vld [vmem:[%s0 + $0x4] sm:$0xf]
  %v15 = vld [vmem:[%s0 + $0x8] sm:$0xf]
  %v16 = vld [vmem:[%s0 + $0xc] sm:$0xf]
  %v17 = vld [vmem:[%s0 + $0x10] sm:$0xf]
  %v18 = vld [vmem:[%s0 + $0x14] sm:$0xf]
  %v19 = vld [vmem:[%s0 + $0x18] sm:$0xf]
  %v20 = vld [vmem:[%s0 + $0x1c] sm:$0xf]
  %v21 = vld [vmem:[%s0 + $0x20] sm:$0xf]
  %v22 = vld [vmem:[%s0 + $0x24] sm:$0xf]
  %v23 = vld [vmem:[%s0 + $0x28] sm:$0xf]
  %v24 = vld [vmem:[%s0 + $0x2c] sm:$0xf]
  %v25 = vld [vmem:[%s0 + $0x30] sm:$0xf]
  %v26 = vld [vmem:[%s0 + $0x34] sm:$0xf]
  %v27 = vld [vmem:[%s0 + $0x38] sm:$0xf]
  %v28 = vld [vmem:[%s0 + $0x3c] sm:$0xf]
  %v29 = vld [vmem:[%s0 + $0x40] sm:$0xf]
  %v30 = vld [vmem:[%s0 + $0x44] sm:$0xf]
  %v31 = vld [vmem:[%s0 + $0x48] sm:$0xf]
  %v32 = vld [vmem:[%s0 + $0x4c] sm:$0xf]
  %v33 = vld [vmem:[%s0 + $0x50] sm:$0xf]
  %v34 = vld [vmem:[%s0 + $0x54] sm:$0xf]
  %v35 = vld [vmem:[%s0 + $0x58] sm:$0xf]
  %v36 = vld [vmem:[%s0 + $0x5c] sm:$0xf]
  %v37 = vld [vmem:[%s0 + $0x60] sm:$0xf]
  %v38 = vld [vmem:[%s0 + $0x64] sm:$0xf]
  %v39 = vld [vmem:[%s0 + $0x68] sm:$0xf]
  %v40 = vld [vmem:[%s0 + $0x6c] sm:$0xf]
  %v41 = vld [vmem:[%s0 + $0x70] sm:$0xf]
  %v42 = vld [vmem:[%s0 + $0x74] sm:$0xf]
  %v43 = vld [vmem:[%s0 + $0x78] sm:$0xf]
  %v44 = vld [vmem:[%s0 + $0x7c] sm:$0xf]
  %v45 = vld [vmem:[%s0 + $0x80] sm:$0xf]
  %v46 = vld [vmem:[%s0 + $0x84] sm:$0xf]
  %v47 = vld [vmem:[%s0 + $0x88] sm:$0xf]
  %v48 = vld [vmem:[%s0 + $0x8c] sm:$0xf]
  %v49 = vld [vmem:[%s0 + $0x90] sm:$0xf]
  %v50 = vld [vmem:[%s0 + $0x94] sm:$0xf]
  %v51 = vld [vmem:[%s0 + $0x98] sm:$0xf]
  %v52 = vld [vmem:[%s0 + $0x9c] sm:$0xf]
  %v53 = vld [vmem:[%s0 + $0xa0] sm:$0xf]
  %v54 = vld [vmem:[%s0 + $0xa4] sm:$0xf]
  %v55 = vld [vmem:[%s0 + $0xa8] sm:$0xf]
  %v56 = vld [vmem:[%s0 + $0xac] sm:$0xf]
  %v57 = vld [vmem:[%s0 + $0xb0] sm:$0xf]
  %v58 = vld [vmem:[%s0 + $0xb4] sm:$0xf]
  %v59 = vld [vmem:[%s0 + $0xb8] sm:$0xf]
  %v60 = vld [vmem:[%s0 + $0xbc] sm:$0xf]
  %v61 = vld [vmem:[%s0 + $0xc0] sm:$0xf]
  %v62 = vld [vmem:[%s0 + $0xc4] sm:$0xf]
  %v63 = vld [vmem:[%s0 + $0xc8] sm:$0xf]
  %v64 = vld [vmem:[%s0 + $0xcc] sm:$0xf]
  %v65 = vld [vmem:[%s0 + $0xd0] sm:$0xf]
  %v66 = vld [vmem:[%s0 + $0xd4] sm:$0xf]
  %v67 = vld [vmem:[%s0 + $0xd8] sm:$0xf]
  %v68 = vld [vmem:[%s0 + $0xdc] sm:$0xf]
  %v69 = vld [vmem:[%s0 + $0xe0] sm:$0xf]
  %v70 = vld [vmem:[%s0 + $0xe4] sm:$0xf]
  %v71 = vld [vmem:[%s0 + $0xe8] sm:$0xf]
  %v72 = vld [vmem:[%s0 + $0xec] sm:$0xf]
  %v73 = vld [vmem:[%s0 + $0xf0] sm:$0xf]
  %v74 = vld [vmem:[%s0 + $0xf4] sm:$0xf]
  %v75 = vld [vmem:[%s0 + $0xf8] sm:$0xf]
  %v76 = vld [vmem:[%s0 + $0xfc] sm:$0xf]
  %v77 = vld [vmem:[%s1] sm:$0xf]
  %v78 = vld [vmem:[%s1 + $0x4] sm:$0xf]
  %v79 = vld [vmem:[%s1 + $0x8] sm:$0xf]
  %v80 = vld [vmem:[%s1 + $0xc] sm:$0xf]
  %v81 = vld [vmem:[%s1 + $0x10] sm:$0xf]
  %v82 = vld [vmem:[%s1 + $0x14] sm:$0xf]
  %v83 = vld [vmem:[%s1 + $0x18] sm:$0xf]
  %v84 = vld [vmem:[%s1 + $0x1c] sm:$0xf]
  %v85 = vld [vmem:[%s1 + $0x20] sm:$0xf]
  %v86 = vld [vmem:[%s1 + $0x24] sm:$0xf]
  %v87 = vld [vmem:[%s1 + $0x28] sm:$0xf]
  %v88 = vld [vmem:[%s1 + $0x2c] sm:$0xf]
  %v89 = vld [vmem:[%s1 + $0x30] sm:$0xf]
  %v90 = vld [vmem:[%s1 + $0x34] sm:$0xf]
  %v91 = vld [vmem:[%s1 + $0x38] sm:$0xf]
  %v92 = vld [vmem:[%s1 + $0x3c] sm:$0xf]
  %v157 = vunpack.c.l.b16 %v13
  %v158 = vunpack.c.l.b16 %v14
  %v159 = vunpack.c.l.b16 %v15
  %v160 = vunpack.c.l.b16 %v16
  %v161 = vunpack.c.l.b16 %v17
  %v162 = vunpack.c.l.b16 %v18
  %v163 = vunpack.c.l.b16 %v19
  %v164 = vunpack.c.l.b16 %v20
  %v165 = vunpack.c.l.b16 %v21
  %v166 = vunpack.c.l.b16 %v22
  %v167 = vunpack.c.l.b16 %v23
  %v168 = vunpack.c.l.b16 %v24
  %v169 = vunpack.c.l.b16 %v25
  %v170 = vunpack.c.l.b16 %v26
  %v171 = vunpack.c.l.b16 %v27
  %v172 = vunpack.c.l.b16 %v28
  %v173 = vunpack.c.l.b16 %v29
  %v174 = vunpack.c.l.b16 %v30
  %v175 = vunpack.c.l.b16 %v31
  %v176 = vunpack.c.l.b16 %v32
  %v177 = vunpack.c.l.b16 %v33
  %v178 = vunpack.c.l.b16 %v34
  %v179 = vunpack.c.l.b16 %v35
  %v180 = vunpack.c.l.b16 %v36
  %v181 = vunpack.c.l.b16 %v37
  %v182 = vunpack.c.l.b16 %v38
  %v183 = vunpack.c.l.b16 %v39
  %v184 = vunpack.c.l.b16 %v40
  %v185 = vunpack.c.l.b16 %v41
  %v186 = vunpack.c.l.b16 %v42
  %v187 = vunpack.c.l.b16 %v43
  %v188 = vunpack.c.l.b16 %v44
  %v189 = vunpack.c.l.b16 %v45
  %v190 = vunpack.c.l.b16 %v46
  %v191 = vunpack.c.l.b16 %v47
  %v192 = vunpack.c.l.b16 %v48
  %v193 = vunpack.c.l.b16 %v49
  %v194 = vunpack.c.l.b16 %v50
  %v195 = vunpack.c.l.b16 %v51
  %v196 = vunpack.c.l.b16 %v52
  %v197 = vunpack.c.l.b16 %v53
  %v198 = vunpack.c.l.b16 %v54
  %v199 = vunpack.c.l.b16 %v55
  %v200 = vunpack.c.l.b16 %v56
  %v201 = vunpack.c.l.b16 %v57
  %v202 = vunpack.c.l.b16 %v58
  %v203 = vunpack.c.l.b16 %v59
  %v204 = vunpack.c.l.b16 %v60
  %v205 = vunpack.c.l.b16 %v61
  %v206 = vunpack.c.l.b16 %v62
  %v207 = vunpack.c.l.b16 %v63
  %v208 = vunpack.c.l.b16 %v64
  %v209 = vunpack.c.l.b16 %v65
  %v210 = vunpack.c.l.b16 %v66
  %v211 = vunpack.c.l.b16 %v67
  %v212 = vunpack.c.l.b16 %v68
  %v213 = vunpack.c.l.b16 %v69
  %v214 = vunpack.c.l.b16 %v70
  %v215 = vunpack.c.l.b16 %v71
  %v216 = vunpack.c.l.b16 %v72
  %v217 = vunpack.c.l.b16 %v73
  %v218 = vunpack.c.l.b16 %v74
  %v219 = vunpack.c.l.b16 %v75
  %v220 = vunpack.c.l.b16 %v76
  %v221 = vpack.c.b16 %v158, %v157
  %v222 = vpack.c.b16 %v160, %v159
  %v223 = vpack.c.b16 %v162, %v161
  %v224 = vpack.c.b16 %v164, %v163
  %v225 = vpack.c.b16 %v166, %v165
  %v226 = vpack.c.b16 %v168, %v167
  %v227 = vpack.c.b16 %v170, %v169
  %v228 = vpack.c.b16 %v172, %v171
  %v229 = vpack.c.b16 %v174, %v173
  %v230 = vpack.c.b16 %v176, %v175
  %v231 = vpack.c.b16 %v178, %v177
  %v232 = vpack.c.b16 %v180, %v179
  %v233 = vpack.c.b16 %v182, %v181
  %v234 = vpack.c.b16 %v184, %v183
  %v235 = vpack.c.b16 %v186, %v185
  %v236 = vpack.c.b16 %v188, %v187
  %v237 = vpack.c.b16 %v190, %v189
  %v238 = vpack.c.b16 %v192, %v191
  %v239 = vpack.c.b16 %v194, %v193
  %v240 = vpack.c.b16 %v196, %v195
  %v241 = vpack.c.b16 %v198, %v197
  %v242 = vpack.c.b16 %v200, %v199
  %v243 = vpack.c.b16 %v202, %v201
  %v244 = vpack.c.b16 %v204, %v203
  %v245 = vpack.c.b16 %v206, %v205
  %v246 = vpack.c.b16 %v208, %v207
  %v247 = vpack.c.b16 %v210, %v209
  %v248 = vpack.c.b16 %v212, %v211
  %v249 = vpack.c.b16 %v214, %v213
  %v250 = vpack.c.b16 %v216, %v215
  %v251 = vpack.c.b16 %v218, %v217
  %v252 = vpack.c.b16 %v220, %v219
  %v301 = vunpack.c.l.b16 %v77
  %v302 = vunpack.c.l.b16 %v78
  %v303 = vunpack.c.l.b16 %v79
  %v304 = vunpack.c.l.b16 %v80
  %v305 = vunpack.c.l.b16 %v81
  %v306 = vunpack.c.l.b16 %v82
  %v307 = vunpack.c.l.b16 %v83
  %v308 = vunpack.c.l.b16 %v84
  %v309 = vunpack.c.l.b16 %v85
  %v310 = vunpack.c.l.b16 %v86
  %v311 = vunpack.c.l.b16 %v87
  %v312 = vunpack.c.l.b16 %v88
  %v313 = vunpack.c.l.b16 %v89
  %v314 = vunpack.c.l.b16 %v90
  %v315 = vunpack.c.l.b16 %v91
  %v316 = vunpack.c.l.b16 %v92
  %v317 = vpack.c.b16 %v302, %v301
  %v318 = vpack.c.b16 %v304, %v303
  %v319 = vpack.c.b16 %v306, %v305
  %v320 = vpack.c.b16 %v308, %v307
  %v321 = vpack.c.b16 %v310, %v309
  %v322 = vpack.c.b16 %v312, %v311
  %v323 = vpack.c.b16 %v314, %v313
  %v324 = vpack.c.b16 %v316, %v315
  %333 = vmatpush.bf16.msra.mxu0 %v324
  %334 = vmatpush.bf16.msra.mxu0 %v323
  %335 = vmatpush.bf16.msra.mxu0 %v322
  %336 = vmatpush.bf16.msra.mxu0 %v321
  %337 = vmatpush.bf16.msra.mxu0 %v320
  %338 = vmatpush.bf16.msra.mxu0 %v319
  %339 = vmatpush.bf16.msra.mxu0 %v318
  %340 = vmatpush.bf16.msra.mxu0 %v317
  %341 = vmatmul.bf16.gmra.mxu0 %v221
  %v342 = vpop.f32.mrf.mxu0
  %v343 = vadd.f32 0.0, %v342
  %v344 = vpop.f32.mrf.mxu0
  %v345 = vadd.f32 0.0, %v344
  %346 = vmatmul.bf16.gmra.mxu0 %v222
  %v347 = vpop.f32.mrf.mxu0
  %v348 = vadd.f32 0.0, %v347
  %v349 = vpop.f32.mrf.mxu0
  %v350 = vadd.f32 0.0, %v349
  %351 = vmatmul.bf16.gmra.mxu0 %v223
  %v352 = vpop.f32.mrf.mxu0
  %v353 = vadd.f32 0.0, %v352
  %v354 = vpop.f32.mrf.mxu0
  %v355 = vadd.f32 0.0, %v354
  %356 = vmatmul.bf16.gmra.mxu0 %v224
  %v357 = vpop.f32.mrf.mxu0
  %v358 = vadd.f32 0.0, %v357
  %v359 = vpop.f32.mrf.mxu0
  %v360 = vadd.f32 0.0, %v359
  %361 = vmatmul.bf16.gmra.mxu0 %v225
  %v362 = vpop.f32.mrf.mxu0
  %v363 = vadd.f32 0.0, %v362
  %v364 = vpop.f32.mrf.mxu0
  %v365 = vadd.f32 0.0, %v364
  %366 = vmatmul.bf16.gmra.mxu0 %v226
  %v367 = vpop.f32.mrf.mxu0
  %v368 = vadd.f32 0.0, %v367
  %v369 = vpop.f32.mrf.mxu0
  %v370 = vadd.f32 0.0, %v369
  %371 = vmatmul.bf16.gmra.mxu0 %v227
  %v372 = vpop.f32.mrf.mxu0
  %v373 = vadd.f32 0.0, %v372
  %v374 = vpop.f32.mrf.mxu0
  %v375 = vadd.f32 0.0, %v374
  %376 = vmatmul.bf16.gmra.mxu0 %v228
  %v377 = vpop.f32.mrf.mxu0
  %v378 = vadd.f32 0.0, %v377
  %v379 = vpop.f32.mrf.mxu0
  %v380 = vadd.f32 0.0, %v379
  %381 = vmatmul.bf16.gmra.mxu0 %v229
  %v382 = vpop.f32.mrf.mxu0
  %v383 = vadd.f32 0.0, %v382
  %v384 = vpop.f32.mrf.mxu0
  %v385 = vadd.f32 0.0, %v384
  %386 = vmatmul.bf16.gmra.mxu0 %v230
  %v387 = vpop.f32.mrf.mxu0
  %v388 = vadd.f32 0.0, %v387
  %v389 = vpop.f32.mrf.mxu0
  %v390 = vadd.f32 0.0, %v389
  %391 = vmatmul.bf16.gmra.mxu0 %v231
  %v392 = vpop.f32.mrf.mxu0
  %v393 = vadd.f32 0.0, %v392
  %v394 = vpop.f32.mrf.mxu0
  %v395 = vadd.f32 0.0, %v394
  %396 = vmatmul.bf16.gmra.mxu0 %v232
  %v397 = vpop.f32.mrf.mxu0
  %v398 = vadd.f32 0.0, %v397
  %v399 = vpop.f32.mrf.mxu0
  %v400 = vadd.f32 0.0, %v399
  %401 = vmatmul.bf16.gmra.mxu0 %v233
  %v402 = vpop.f32.mrf.mxu0
  %v403 = vadd.f32 0.0, %v402
  %v404 = vpop.f32.mrf.mxu0
  %v405 = vadd.f32 0.0, %v404
  %406 = vmatmul.bf16.gmra.mxu0 %v234
  %v407 = vpop.f32.mrf.mxu0
  %v408 = vadd.f32 0.0, %v407
  %v409 = vpop.f32.mrf.mxu0
  %v410 = vadd.f32 0.0, %v409
  %411 = vmatmul.bf16.gmra.mxu0 %v235
  %v412 = vpop.f32.mrf.mxu0
  %v413 = vadd.f32 0.0, %v412
  %v414 = vpop.f32.mrf.mxu0
  %v415 = vadd.f32 0.0, %v414
  %416 = vmatmul.bf16.gmra.mxu0 %v236
  %v417 = vpop.f32.mrf.mxu0
  %v418 = vadd.f32 0.0, %v417
  %v419 = vpop.f32.mrf.mxu0
  %v420 = vadd.f32 0.0, %v419
  %421 = vmatmul.bf16.gmra.mxu0 %v237
  %v422 = vpop.f32.mrf.mxu0
  %v423 = vadd.f32 0.0, %v422
  %v424 = vpop.f32.mrf.mxu0
  %v425 = vadd.f32 0.0, %v424
  %426 = vmatmul.bf16.gmra.mxu0 %v238
  %v427 = vpop.f32.mrf.mxu0
  %v428 = vadd.f32 0.0, %v427
  %v429 = vpop.f32.mrf.mxu0
  %v430 = vadd.f32 0.0, %v429
  %431 = vmatmul.bf16.gmra.mxu0 %v239
  %v432 = vpop.f32.mrf.mxu0
  %v433 = vadd.f32 0.0, %v432
  %v434 = vpop.f32.mrf.mxu0
  %v435 = vadd.f32 0.0, %v434
  %436 = vmatmul.bf16.gmra.mxu0 %v240
  %v437 = vpop.f32.mrf.mxu0
  %v438 = vadd.f32 0.0, %v437
  %v439 = vpop.f32.mrf.mxu0
  %v440 = vadd.f32 0.0, %v439
  %441 = vmatmul.bf16.gmra.mxu0 %v241
  %v442 = vpop.f32.mrf.mxu0
  %v443 = vadd.f32 0.0, %v442
  %v444 = vpop.f32.mrf.mxu0
  %v445 = vadd.f32 0.0, %v444
  %446 = vmatmul.bf16.gmra.mxu0 %v242
  %v447 = vpop.f32.mrf.mxu0
  %v448 = vadd.f32 0.0, %v447
  %v449 = vpop.f32.mrf.mxu0
  %v450 = vadd.f32 0.0, %v449
  %451 = vmatmul.bf16.gmra.mxu0 %v243
  %v452 = vpop.f32.mrf.mxu0
  %v453 = vadd.f32 0.0, %v452
  %v454 = vpop.f32.mrf.mxu0
  %v455 = vadd.f32 0.0, %v454
  %456 = vmatmul.bf16.gmra.mxu0 %v244
  %v457 = vpop.f32.mrf.mxu0
  %v458 = vadd.f32 0.0, %v457
  %v459 = vpop.f32.mrf.mxu0
  %v460 = vadd.f32 0.0, %v459
  %461 = vmatmul.bf16.gmra.mxu0 %v245
  %v462 = vpop.f32.mrf.mxu0
  %v463 = vadd.f32 0.0, %v462
  %v464 = vpop.f32.mrf.mxu0
  %v465 = vadd.f32 0.0, %v464
  %466 = vmatmul.bf16.gmra.mxu0 %v246
  %v467 = vpop.f32.mrf.mxu0
  %v468 = vadd.f32 0.0, %v467
  %v469 = vpop.f32.mrf.mxu0
  %v470 = vadd.f32 0.0, %v469
  %471 = vmatmul.bf16.gmra.mxu0 %v247
  %v472 = vpop.f32.mrf.mxu0
  %v473 = vadd.f32 0.0, %v472
  %v474 = vpop.f32.mrf.mxu0
  %v475 = vadd.f32 0.0, %v474
  %476 = vmatmul.bf16.gmra.mxu0 %v248
  %v477 = vpop.f32.mrf.mxu0
  %v478 = vadd.f32 0.0, %v477
  %v479 = vpop.f32.mrf.mxu0
  %v480 = vadd.f32 0.0, %v479
  %481 = vmatmul.bf16.gmra.mxu0 %v249
  %v482 = vpop.f32.mrf.mxu0
  %v483 = vadd.f32 0.0, %v482
  %v484 = vpop.f32.mrf.mxu0
  %v485 = vadd.f32 0.0, %v484
  %486 = vmatmul.bf16.gmra.mxu0 %v250
  %v487 = vpop.f32.mrf.mxu0
  %v488 = vadd.f32 0.0, %v487
  %v489 = vpop.f32.mrf.mxu0
  %v490 = vadd.f32 0.0, %v489
  %491 = vmatmul.bf16.gmra.mxu0 %v251
  %v492 = vpop.f32.mrf.mxu0
  %v493 = vadd.f32 0.0, %v492
  %v494 = vpop.f32.mrf.mxu0
  %v495 = vadd.f32 0.0, %v494
  %496 = vmatmul.bf16.gmra.mxu0 %v252
  %v497 = vpop.f32.mrf.mxu0
  %v498 = vadd.f32 0.0, %v497
  %v499 = vpop.f32.mrf.mxu0
  %v500 = vadd.f32 0.0, %v499
  %501 = vdwg.mxu0
  %v502 = vpack.c.bf16 %v343, %v343
  %v503 = vpack.c.bf16 %v345, %v345
  %v504 = vpack.c.bf16 %v348, %v348
  %v505 = vpack.c.bf16 %v350, %v350
  %v506 = vpack.c.bf16 %v353, %v353
  %v507 = vpack.c.bf16 %v355, %v355
  %v508 = vpack.c.bf16 %v358, %v358
  %v509 = vpack.c.bf16 %v360, %v360
  %v510 = vpack.c.bf16 %v363, %v363
  %v511 = vpack.c.bf16 %v365, %v365
  %v512 = vpack.c.bf16 %v368, %v368
  %v513 = vpack.c.bf16 %v370, %v370
  %v514 = vpack.c.bf16 %v373, %v373
  %v515 = vpack.c.bf16 %v375, %v375
  %v516 = vpack.c.bf16 %v378, %v378
  %v517 = vpack.c.bf16 %v380, %v380
  %v518 = vpack.c.bf16 %v383, %v383
  %v519 = vpack.c.bf16 %v385, %v385
  %v520 = vpack.c.bf16 %v388, %v388
  %v521 = vpack.c.bf16 %v390, %v390
  %v522 = vpack.c.bf16 %v393, %v393
  %v523 = vpack.c.bf16 %v395, %v395
  %v524 = vpack.c.bf16 %v398, %v398
  %v525 = vpack.c.bf16 %v400, %v400
  %v526 = vpack.c.bf16 %v403, %v403
  %v527 = vpack.c.bf16 %v405, %v405
  %v528 = vpack.c.bf16 %v408, %v408
  %v529 = vpack.c.bf16 %v410, %v410
  %v530 = vpack.c.bf16 %v413, %v413
  %v531 = vpack.c.bf16 %v415, %v415
  %v532 = vpack.c.bf16 %v418, %v418
  %v533 = vpack.c.bf16 %v420, %v420
  %v534 = vpack.c.bf16 %v423, %v423
  %v535 = vpack.c.bf16 %v425, %v425
  %v536 = vpack.c.bf16 %v428, %v428
  %v537 = vpack.c.bf16 %v430, %v430
  %v538 = vpack.c.bf16 %v433, %v433
  %v539 = vpack.c.bf16 %v435, %v435
  %v540 = vpack.c.bf16 %v438, %v438
  %v541 = vpack.c.bf16 %v440, %v440
  %v542 = vpack.c.bf16 %v443, %v443
  %v543 = vpack.c.bf16 %v445, %v445
  %v544 = vpack.c.bf16 %v448, %v448
  %v545 = vpack.c.bf16 %v450, %v450
  %v546 = vpack.c.bf16 %v453, %v453
  %v547 = vpack.c.bf16 %v455, %v455
  %v548 = vpack.c.bf16 %v458, %v458
  %v549 = vpack.c.bf16 %v460, %v460
  %v550 = vpack.c.bf16 %v463, %v463
  %v551 = vpack.c.bf16 %v465, %v465
  %v552 = vpack.c.bf16 %v468, %v468
  %v553 = vpack.c.bf16 %v470, %v470
  %v554 = vpack.c.bf16 %v473, %v473
  %v555 = vpack.c.bf16 %v475, %v475
  %v556 = vpack.c.bf16 %v478, %v478
  %v557 = vpack.c.bf16 %v480, %v480
  %v558 = vpack.c.bf16 %v483, %v483
  %v559 = vpack.c.bf16 %v485, %v485
  %v560 = vpack.c.bf16 %v488, %v488
  %v561 = vpack.c.bf16 %v490, %v490
  %v562 = vpack.c.bf16 %v493, %v493
  %v563 = vpack.c.bf16 %v495, %v495
  %v564 = vpack.c.bf16 %v498, %v498
  %v565 = vpack.c.bf16 %v500, %v500
  %566 = vst [vmem:[%s2] sm:$0xf] %v502
  %567 = vst [vmem:[%s2 + $0x4] sm:$0xf] %v503
  %568 = vst [vmem:[%s2 + $0x8] sm:$0xf] %v504
  %569 = vst [vmem:[%s2 + $0xc] sm:$0xf] %v505
  %570 = vst [vmem:[%s2 + $0x10] sm:$0xf] %v506
  %571 = vst [vmem:[%s2 + $0x14] sm:$0xf] %v507
  %572 = vst [vmem:[%s2 + $0x18] sm:$0xf] %v508
  %573 = vst [vmem:[%s2 + $0x1c] sm:$0xf] %v509
  %574 = vst [vmem:[%s2 + $0x20] sm:$0xf] %v510
  %575 = vst [vmem:[%s2 + $0x24] sm:$0xf] %v511
  %576 = vst [vmem:[%s2 + $0x28] sm:$0xf] %v512
  %577 = vst [vmem:[%s2 + $0x2c] sm:$0xf] %v513
  %578 = vst [vmem:[%s2 + $0x30] sm:$0xf] %v514
  %579 = vst [vmem:[%s2 + $0x34] sm:$0xf] %v515
  %580 = vst [vmem:[%s2 + $0x38] sm:$0xf] %v516
  %581 = vst [vmem:[%s2 + $0x3c] sm:$0xf] %v517
  %582 = vst [vmem:[%s2 + $0x40] sm:$0xf] %v518
  %583 = vst [vmem:[%s2 + $0x44] sm:$0xf] %v519
  %584 = vst [vmem:[%s2 + $0x48] sm:$0xf] %v520
  %585 = vst [vmem:[%s2 + $0x4c] sm:$0xf] %v521
  %586 = vst [vmem:[%s2 + $0x50] sm:$0xf] %v522
  %587 = vst [vmem:[%s2 + $0x54] sm:$0xf] %v523
  %588 = vst [vmem:[%s2 + $0x58] sm:$0xf] %v524
  %589 = vst [vmem:[%s2 + $0x5c] sm:$0xf] %v525
  %590 = vst [vmem:[%s2 + $0x60] sm:$0xf] %v526
  %591 = vst [vmem:[%s2 + $0x64] sm:$0xf] %v527
  %592 = vst [vmem:[%s2 + $0x68] sm:$0xf] %v528
  %593 = vst [vmem:[%s2 + $0x6c] sm:$0xf] %v529
  %594 = vst [vmem:[%s2 + $0x70] sm:$0xf] %v530
  %595 = vst [vmem:[%s2 + $0x74] sm:$0xf] %v531
  %596 = vst [vmem:[%s2 + $0x78] sm:$0xf] %v532
  %597 = vst [vmem:[%s2 + $0x7c] sm:$0xf] %v533
  %598 = vst [vmem:[%s2 + $0x80] sm:$0xf] %v534
  %599 = vst [vmem:[%s2 + $0x84] sm:$0xf] %v535
  %600 = vst [vmem:[%s2 + $0x88] sm:$0xf] %v536
  %601 = vst [vmem:[%s2 + $0x8c] sm:$0xf] %v537
  %602 = vst [vmem:[%s2 + $0x90] sm:$0xf] %v538
  %603 = vst [vmem:[%s2 + $0x94] sm:$0xf] %v539
  %604 = vst [vmem:[%s2 + $0x98] sm:$0xf] %v540
  %605 = vst [vmem:[%s2 + $0x9c] sm:$0xf] %v541
  %606 = vst [vmem:[%s2 + $0xa0] sm:$0xf] %v542
  %607 = vst [vmem:[%s2 + $0xa4] sm:$0xf] %v543
  %608 = vst [vmem:[%s2 + $0xa8] sm:$0xf] %v544
  %609 = vst [vmem:[%s2 + $0xac] sm:$0xf] %v545
  %610 = vst [vmem:[%s2 + $0xb0] sm:$0xf] %v546
  %611 = vst [vmem:[%s2 + $0xb4] sm:$0xf] %v547
  %612 = vst [vmem:[%s2 + $0xb8] sm:$0xf] %v548
  %613 = vst [vmem:[%s2 + $0xbc] sm:$0xf] %v549
  %614 = vst [vmem:[%s2 + $0xc0] sm:$0xf] %v550
  %615 = vst [vmem:[%s2 + $0xc4] sm:$0xf] %v551
  %616 = vst [vmem:[%s2 + $0xc8] sm:$0xf] %v552
  %617 = vst [vmem:[%s2 + $0xcc] sm:$0xf] %v553
  %618 = vst [vmem:[%s2 + $0xd0] sm:$0xf] %v554
  %619 = vst [vmem:[%s2 + $0xd4] sm:$0xf] %v555
  %620 = vst [vmem:[%s2 + $0xd8] sm:$0xf] %v556
  %621 = vst [vmem:[%s2 + $0xdc] sm:$0xf] %v557
  %622 = vst [vmem:[%s2 + $0xe0] sm:$0xf] %v558
  %623 = vst [vmem:[%s2 + $0xe4] sm:$0xf] %v559
  %624 = vst [vmem:[%s2 + $0xe8] sm:$0xf] %v560
  %625 = vst [vmem:[%s2 + $0xec] sm:$0xf] %v561
  %626 = vst [vmem:[%s2 + $0xf0] sm:$0xf] %v562
  %627 = vst [vmem:[%s2 + $0xf4] sm:$0xf] %v563
  %628 = vst [vmem:[%s2 + $0xf8] sm:$0xf] %v564
  %629 = vst [vmem:[%s2 + $0xfc] sm:$0xf] %v565
  %v630 = vadd.f32 %v343, %v345
  %v631 = vadd.f32 %v630, %v348
  %v632 = vadd.f32 %v631, %v350
  %v633 = vadd.f32 %v632, %v353
  %v634 = vadd.f32 %v633, %v355
  %v635 = vadd.f32 %v634, %v358
  %v636 = vadd.f32 %v635, %v360
  %v637 = vadd.f32 %v636, %v363
  %v638 = vadd.f32 %v637, %v365
  %v639 = vadd.f32 %v638, %v368
  %v640 = vadd.f32 %v639, %v370
  %v641 = vadd.f32 %v640, %v373
  %v642 = vadd.f32 %v641, %v375
  %v643 = vadd.f32 %v642, %v378
  %v644 = vadd.f32 %v643, %v380
  %v645 = vadd.f32 %v644, %v383
  %v646 = vadd.f32 %v645, %v385
  %v647 = vadd.f32 %v646, %v388
  %v648 = vadd.f32 %v647, %v390
  %v649 = vadd.f32 %v648, %v393
  %v650 = vadd.f32 %v649, %v395
  %v651 = vadd.f32 %v650, %v398
  %v652 = vadd.f32 %v651, %v400
  %v653 = vadd.f32 %v652, %v403
  %v654 = vadd.f32 %v653, %v405
  %v655 = vadd.f32 %v654, %v408
  %v656 = vadd.f32 %v655, %v410
  %v657 = vadd.f32 %v656, %v413
  %v658 = vadd.f32 %v657, %v415
  %v659 = vadd.f32 %v658, %v418
  %v660 = vadd.f32 %v659, %v420
  %v661 = vadd.f32 %v660, %v423
  %v662 = vadd.f32 %v661, %v425
  %v663 = vadd.f32 %v662, %v428
  %v664 = vadd.f32 %v663, %v430
  %v665 = vadd.f32 %v664, %v433
  %v666 = vadd.f32 %v665, %v435
  %v667 = vadd.f32 %v666, %v438
  %v668 = vadd.f32 %v667, %v440
  %v669 = vadd.f32 %v668, %v443
  %v670 = vadd.f32 %v669, %v445
  %v671 = vadd.f32 %v670, %v448
  %v672 = vadd.f32 %v671, %v450
  %v673 = vadd.f32 %v672, %v453
  %v674 = vadd.f32 %v673, %v455
  %v675 = vadd.f32 %v674, %v458
  %v676 = vadd.f32 %v675, %v460
  %v677 = vadd.f32 %v676, %v463
  %v678 = vadd.f32 %v677, %v465
  %v679 = vadd.f32 %v678, %v468
  %v680 = vadd.f32 %v679, %v470
  %v681 = vadd.f32 %v680, %v473
  %v682 = vadd.f32 %v681, %v475
  %v683 = vadd.f32 %v682, %v478
  %v684 = vadd.f32 %v683, %v480
  %v685 = vadd.f32 %v684, %v483
  %v686 = vadd.f32 %v685, %v485
  %v687 = vadd.f32 %v686, %v488
  %v688 = vadd.f32 %v687, %v490
  %v689 = vadd.f32 %v688, %v493
  %v690 = vadd.f32 %v689, %v495
  %v691 = vadd.f32 %v690, %v498
  %v692 = vadd.f32 %v691, %v500
  %v693 = vrot.slane %v692, 4
  %v694 = vadd.f32 %v692, %v693
  %v695 = vrot.slane %v694, 2
  %v696 = vadd.f32 %v694, %v695
  %v697 = vrot.slane %v696, 1
  %v698 = vadd.f32 %v696, %v697
  %699 = vst [vmem:[%s3] sm:$0x1] %v698
  %v700 = vmul.f32 %v343, %v343
  %v701 = vmul.f32 %v345, %v345
  %v702 = vmul.f32 %v348, %v348
  %v703 = vmul.f32 %v350, %v350
  %v704 = vmul.f32 %v353, %v353
  %v705 = vmul.f32 %v355, %v355
  %v706 = vmul.f32 %v358, %v358
  %v707 = vmul.f32 %v360, %v360
  %v708 = vmul.f32 %v363, %v363
  %v709 = vmul.f32 %v365, %v365
  %v710 = vmul.f32 %v368, %v368
  %v711 = vmul.f32 %v370, %v370
  %v712 = vmul.f32 %v373, %v373
  %v713 = vmul.f32 %v375, %v375
  %v714 = vmul.f32 %v378, %v378
  %v715 = vmul.f32 %v380, %v380
  %v716 = vmul.f32 %v383, %v383
  %v717 = vmul.f32 %v385, %v385
  %v718 = vmul.f32 %v388, %v388
  %v719 = vmul.f32 %v390, %v390
  %v720 = vmul.f32 %v393, %v393
  %v721 = vmul.f32 %v395, %v395
  %v722 = vmul.f32 %v398, %v398
  %v723 = vmul.f32 %v400, %v400
  %v724 = vmul.f32 %v403, %v403
  %v725 = vmul.f32 %v405, %v405
  %v726 = vmul.f32 %v408, %v408
  %v727 = vmul.f32 %v410, %v410
  %v728 = vmul.f32 %v413, %v413
  %v729 = vmul.f32 %v415, %v415
  %v730 = vmul.f32 %v418, %v418
  %v731 = vmul.f32 %v420, %v420
  %v732 = vmul.f32 %v423, %v423
  %v733 = vmul.f32 %v425, %v425
  %v734 = vmul.f32 %v428, %v428
  %v735 = vmul.f32 %v430, %v430
  %v736 = vmul.f32 %v433, %v433
  %v737 = vmul.f32 %v435, %v435
  %v738 = vmul.f32 %v438, %v438
  %v739 = vmul.f32 %v440, %v440
  %v740 = vmul.f32 %v443, %v443
  %v741 = vmul.f32 %v445, %v445
  %v742 = vmul.f32 %v448, %v448
  %v743 = vmul.f32 %v450, %v450
  %v744 = vmul.f32 %v453, %v453
  %v745 = vmul.f32 %v455, %v455
  %v746 = vmul.f32 %v458, %v458
  %v747 = vmul.f32 %v460, %v460
  %v748 = vmul.f32 %v463, %v463
  %v749 = vmul.f32 %v465, %v465
  %v750 = vmul.f32 %v468, %v468
  %v751 = vmul.f32 %v470, %v470
  %v752 = vmul.f32 %v473, %v473
  %v753 = vmul.f32 %v475, %v475
  %v754 = vmul.f32 %v478, %v478
  %v755 = vmul.f32 %v480, %v480
  %v756 = vmul.f32 %v483, %v483
  %v757 = vmul.f32 %v485, %v485
  %v758 = vmul.f32 %v488, %v488
  %v759 = vmul.f32 %v490, %v490
  %v760 = vmul.f32 %v493, %v493
  %v761 = vmul.f32 %v495, %v495
  %v762 = vmul.f32 %v498, %v498
  %v763 = vmul.f32 %v500, %v500
  %v764 = vadd.f32 %v700, %v701
  %v765 = vadd.f32 %v764, %v702
  %v766 = vadd.f32 %v765, %v703
  %v767 = vadd.f32 %v766, %v704
  %v768 = vadd.f32 %v767, %v705
  %v769 = vadd.f32 %v768, %v706
  %v770 = vadd.f32 %v769, %v707
  %v771 = vadd.f32 %v770, %v708
  %v772 = vadd.f32 %v771, %v709
  %v773 = vadd.f32 %v772, %v710
  %v774 = vadd.f32 %v773, %v711
  %v775 = vadd.f32 %v774, %v712
  %v776 = vadd.f32 %v775, %v713
  %v777 = vadd.f32 %v776, %v714
  %v778 = vadd.f32 %v777, %v715
  %v779 = vadd.f32 %v778, %v716
  %v780 = vadd.f32 %v779, %v717
  %v781 = vadd.f32 %v780, %v718
  %v782 = vadd.f32 %v781, %v719
  %v783 = vadd.f32 %v782, %v720
  %v784 = vadd.f32 %v783, %v721
  %v785 = vadd.f32 %v784, %v722
  %v786 = vadd.f32 %v785, %v723
  %v787 = vadd.f32 %v786, %v724
  %v788 = vadd.f32 %v787, %v725
  %v789 = vadd.f32 %v788, %v726
  %v790 = vadd.f32 %v789, %v727
  %v791 = vadd.f32 %v790, %v728
  %v792 = vadd.f32 %v791, %v729
  %v793 = vadd.f32 %v792, %v730
  %v794 = vadd.f32 %v793, %v731
  %v795 = vadd.f32 %v794, %v732
  %v796 = vadd.f32 %v795, %v733
  %v797 = vadd.f32 %v796, %v734
  %v798 = vadd.f32 %v797, %v735
  %v799 = vadd.f32 %v798, %v736
  %v800 = vadd.f32 %v799, %v737
  %v801 = vadd.f32 %v800, %v738
  %v802 = vadd.f32 %v801, %v739
  %v803 = vadd.f32 %v802, %v740
  %v804 = vadd.f32 %v803, %v741
  %v805 = vadd.f32 %v804, %v742
  %v806 = vadd.f32 %v805, %v743
  %v807 = vadd.f32 %v806, %v744
  %v808 = vadd.f32 %v807, %v745
  %v809 = vadd.f32 %v808, %v746
  %v810 = vadd.f32 %v809, %v747
  %v811 = vadd.f32 %v810, %v748
  %v812 = vadd.f32 %v811, %v749
  %v813 = vadd.f32 %v812, %v750
  %v814 = vadd.f32 %v813, %v751
  %v815 = vadd.f32 %v814, %v752
  %v816 = vadd.f32 %v815, %v753
  %v817 = vadd.f32 %v816, %v754
  %v818 = vadd.f32 %v817, %v755
  %v819 = vadd.f32 %v818, %v756
  %v820 = vadd.f32 %v819, %v757
  %v821 = vadd.f32 %v820, %v758
  %v822 = vadd.f32 %v821, %v759
  %v823 = vadd.f32 %v822, %v760
  %v824 = vadd.f32 %v823, %v761
  %v825 = vadd.f32 %v824, %v762
  %v826 = vadd.f32 %v825, %v763
  %v827 = vrot.slane %v826, 4
  %v828 = vadd.f32 %v826, %v827
  %v829 = vrot.slane %v828, 2
  %v830 = vadd.f32 %v828, %v829
  %v831 = vrot.slane %v830, 1
  %v832 = vadd.f32 %v830, %v831
  %833 = vst [vmem:[%s3 + $0x1] sm:$0x1] %v832
  // Predicated region
  $region10: #{discriminator_forward.8} parent=0 // pred_check
    _
  $region11: #{discriminator_forward.8} parent=0 // pred_check_branch
    %835 = sbr.rel (0) target = $region13
  $region12: #{discriminator_forward.8} parent=0 // pred_region
    _
  $region13: #{discriminator_forward.8} parent=0 // pred_fallthru
    _
  // Predicated region
  $region14: #{discriminator_forward.8} parent=0 // pred_check
    _
  $region15: #{discriminator_forward.8} parent=0 // pred_check_branch
    %837 = sbr.rel (0) target = $region17
  $region16: #{discriminator_forward.8} parent=0 // pred_region
    _
  $region17: #{discriminator_forward.8} parent=0 // pred_fallthru
    _
  // Predicated region
  $region18: #{discriminator_forward.8} parent=0 // pred_check
    _
  $region19: #{discriminator_forward.8} parent=0 // pred_check_branch
    %839 = sbr.rel (0) target = $region21
  $region20: #{discriminator_forward.8} parent=0 // pred_region
    _
  $region21: #{discriminator_forward.8} parent=0 // pred_fallthru
    _
  // Predicated region
  $region22: #{discriminator_forward.8} parent=0 // pred_check
    _
  $region23: #{discriminator_forward.8} parent=0 // pred_check_branch
    %841 = sbr.rel (0) target = $region25
  $region24: #{discriminator_forward.8} parent=0 // pred_region
    _
  $region25: #{discriminator_forward.8} parent=0 // pred_fallthru
    _

// kernel: discriminator_forward.9
$region0: #{discriminator_forward.9}
  #allocation0 [shape = 'u32[]', space=smem, size = 0x4, offset = 0x4, fixed_abs, tag = 'smem constant byte address 0x4 - core index']
  #allocation1 [shape = 'u32[72,128]{1,0:T(1,128)}', space=vmem, size = 0x9000, scoped, tag = 'internal scratch']
  %s0 = inlined_call_operand.vmem [shape: bf16[512,128], index: 0, kind: input, shape index: {}]
  %s1 = inlined_call_operand.vmem [shape: f32[1,128], index: 1, kind: input, shape index: {}]
  %s2 = inlined_call_operand.vmem [shape: f32[1,128], index: 2, kind: input, shape index: {}]
  %s3 = inlined_call_operand.vmem [shape: bf16[512,128], index: 3, kind: output, shape index: {}]
  %s4 = sld [smem:[#allocation0]]
  $region22: #{discriminator_forward.9} parent=0
    _
  %s6 = ssub.s32 1, %s4
  %s7 = scalar_select 0, %s6, %s4
  // Predicated region
  $region2: #{discriminator_forward.9} parent=0 // pred_check
    _
  $region3: #{discriminator_forward.9} parent=0 // pred_check_branch
    %9 = sbr.rel (0) target = $region5
  $region4: #{discriminator_forward.9} parent=0 // pred_region
    _
  $region5: #{discriminator_forward.9} parent=0 // pred_fallthru
    _
  // Predicated region
  $region6: #{discriminator_forward.9} parent=0 // pred_check
    _
  $region7: #{discriminator_forward.9} parent=0 // pred_check_branch
    %11 = sbr.rel (0) target = $region9
  $region8: #{discriminator_forward.9} parent=0 // pred_region
    _
  $region9: #{discriminator_forward.9} parent=0 // pred_fallthru
    _
  // Predicated region
  $region10: #{discriminator_forward.9} parent=0 // pred_check
    _
  $region11: #{discriminator_forward.9} parent=0 // pred_check_branch
    %13 = sbr.rel (0) target = $region13
  $region12: #{discriminator_forward.9} parent=0 // pred_region
    _
  $region13: #{discriminator_forward.9} parent=0 // pred_fallthru
    _
  %v14 = vld [vmem:[%s0] sm:$0xf]
  %v15 = vld [vmem:[%s0 + $0x4] sm:$0xf]
  %v16 = vld [vmem:[%s0 + $0x8] sm:$0xf]
  %v17 = vld [vmem:[%s0 + $0xc] sm:$0xf]
  %v18 = vld [vmem:[%s0 + $0x10] sm:$0xf]
  %v19 = vld [vmem:[%s0 + $0x14] sm:$0xf]
  %v20 = vld [vmem:[%s0 + $0x18] sm:$0xf]
  %v21 = vld [vmem:[%s0 + $0x1c] sm:$0xf]
  %v22 = vld [vmem:[%s0 + $0x20] sm:$0xf]
  %v23 = vld [vmem:[%s0 + $0x24] sm:$0xf]
  %v24 = vld [vmem:[%s0 + $0x28] sm:$0xf]
  %v25 = vld [vmem:[%s0 + $0x2c] sm:$0xf]
  %v26 = vld [vmem:[%s0 + $0x30] sm:$0xf]
  %v27 = vld [vmem:[%s0 + $0x34] sm:$0xf]
  %v28 = vld [vmem:[%s0 + $0x38] sm:$0xf]
  %v29 = vld [vmem:[%s0 + $0x3c] sm:$0xf]
  %v30 = vld [vmem:[%s0 + $0x40] sm:$0xf]
  %v31 = vld [vmem:[%s0 + $0x44] sm:$0xf]
  %v32 = vld [vmem:[%s0 + $0x48] sm:$0xf]
  %v33 = vld [vmem:[%s0 + $0x4c] sm:$0xf]
  %v34 = vld [vmem:[%s0 + $0x50] sm:$0xf]
  %v35 = vld [vmem:[%s0 + $0x54] sm:$0xf]
  %v36 = vld [vmem:[%s0 + $0x58] sm:$0xf]
  %v37 = vld [vmem:[%s0 + $0x5c] sm:$0xf]
  %v38 = vld [vmem:[%s0 + $0x60] sm:$0xf]
  %v39 = vld [vmem:[%s0 + $0x64] sm:$0xf]
  %v40 = vld [vmem:[%s0 + $0x68] sm:$0xf]
  %v41 = vld [vmem:[%s0 + $0x6c] sm:$0xf]
  %v42 = vld [vmem:[%s0 + $0x70] sm:$0xf]
  %v43 = vld [vmem:[%s0 + $0x74] sm:$0xf]
  %v44 = vld [vmem:[%s0 + $0x78] sm:$0xf]
  %v45 = vld [vmem:[%s0 + $0x7c] sm:$0xf]
  %v46 = vld [vmem:[%s0 + $0x80] sm:$0xf]
  %v47 = vld [vmem:[%s0 + $0x84] sm:$0xf]
  %v48 = vld [vmem:[%s0 + $0x88] sm:$0xf]
  %v49 = vld [vmem:[%s0 + $0x8c] sm:$0xf]
  %v50 = vld [vmem:[%s0 + $0x90] sm:$0xf]
  %v51 = vld [vmem:[%s0 + $0x94] sm:$0xf]
  %v52 = vld [vmem:[%s0 + $0x98] sm:$0xf]
  %v53 = vld [vmem:[%s0 + $0x9c] sm:$0xf]
  %v54 = vld [vmem:[%s0 + $0xa0] sm:$0xf]
  %v55 = vld [vmem:[%s0 + $0xa4] sm:$0xf]
  %v56 = vld [vmem:[%s0 + $0xa8] sm:$0xf]
  %v57 = vld [vmem:[%s0 + $0xac] sm:$0xf]
  %v58 = vld [vmem:[%s0 + $0xb0] sm:$0xf]
  %v59 = vld [vmem:[%s0 + $0xb4] sm:$0xf]
  %v60 = vld [vmem:[%s0 + $0xb8] sm:$0xf]
  %v61 = vld [vmem:[%s0 + $0xbc] sm:$0xf]
  %v62 = vld [vmem:[%s0 + $0xc0] sm:$0xf]
  %v63 = vld [vmem:[%s0 + $0xc4] sm:$0xf]
  %v64 = vld [vmem:[%s0 + $0xc8] sm:$0xf]
  %v65 = vld [vmem:[%s0 + $0xcc] sm:$0xf]
  %v66 = vld [vmem:[%s0 + $0xd0] sm:$0xf]
  %v67 = vld [vmem:[%s0 + $0xd4] sm:$0xf]
  %v68 = vld [vmem:[%s0 + $0xd8] sm:$0xf]
  %v69 = vld [vmem:[%s0 + $0xdc] sm:$0xf]
  %v70 = vld [vmem:[%s0 + $0xe0] sm:$0xf]
  %v71 = vld [vmem:[%s0 + $0xe4] sm:$0xf]
  %v72 = vld [vmem:[%s0 + $0xe8] sm:$0xf]
  %v73 = vld [vmem:[%s0 + $0xec] sm:$0xf]
  %v74 = vld [vmem:[%s0 + $0xf0] sm:$0xf]
  %v75 = vld [vmem:[%s0 + $0xf4] sm:$0xf]
  %v76 = vld [vmem:[%s0 + $0xf8] sm:$0xf]
  %v77 = vld [vmem:[%s0 + $0xfc] sm:$0xf]
  %v78 = vunpack.c.l.bf16 %v14
  %v79 = vunpack.c.l.bf16 %v15
  %v80 = vunpack.c.l.bf16 %v16
  %v81 = vunpack.c.l.bf16 %v17
  %v82 = vunpack.c.l.bf16 %v18
  %v83 = vunpack.c.l.bf16 %v19
  %v84 = vunpack.c.l.bf16 %v20
  %v85 = vunpack.c.l.bf16 %v21
  %v86 = vunpack.c.l.bf16 %v22
  %v87 = vunpack.c.l.bf16 %v23
  %v88 = vunpack.c.l.bf16 %v24
  %v89 = vunpack.c.l.bf16 %v25
  %v90 = vunpack.c.l.bf16 %v26
  %v91 = vunpack.c.l.bf16 %v27
  %v92 = vunpack.c.l.bf16 %v28
  %v93 = vunpack.c.l.bf16 %v29
  %v94 = vunpack.c.l.bf16 %v30
  %v95 = vunpack.c.l.bf16 %v31
  %v96 = vunpack.c.l.bf16 %v32
  %v97 = vunpack.c.l.bf16 %v33
  %v98 = vunpack.c.l.bf16 %v34
  %v99 = vunpack.c.l.bf16 %v35
  %v100 = vunpack.c.l.bf16 %v36
  %v101 = vunpack.c.l.bf16 %v37
  %v102 = vunpack.c.l.bf16 %v38
  %v103 = vunpack.c.l.bf16 %v39
  %v104 = vunpack.c.l.bf16 %v40
  %v105 = vunpack.c.l.bf16 %v41
  %v106 = vunpack.c.l.bf16 %v42
  %v107 = vunpack.c.l.bf16 %v43
  %v108 = vunpack.c.l.bf16 %v44
  %v109 = vunpack.c.l.bf16 %v45
  %v110 = vunpack.c.l.bf16 %v46
  %v111 = vunpack.c.l.bf16 %v47
  %v112 = vunpack.c.l.bf16 %v48
  %v113 = vunpack.c.l.bf16 %v49
  %v114 = vunpack.c.l.bf16 %v50
  %v115 = vunpack.c.l.bf16 %v51
  %v116 = vunpack.c.l.bf16 %v52
  %v117 = vunpack.c.l.bf16 %v53
  %v118 = vunpack.c.l.bf16 %v54
  %v119 = vunpack.c.l.bf16 %v55
  %v120 = vunpack.c.l.bf16 %v56
  %v121 = vunpack.c.l.bf16 %v57
  %v122 = vunpack.c.l.bf16 %v58
  %v123 = vunpack.c.l.bf16 %v59
  %v124 = vunpack.c.l.bf16 %v60
  %v125 = vunpack.c.l.bf16 %v61
  %v126 = vunpack.c.l.bf16 %v62
  %v127 = vunpack.c.l.bf16 %v63
  %v128 = vunpack.c.l.bf16 %v64
  %v129 = vunpack.c.l.bf16 %v65
  %v130 = vunpack.c.l.bf16 %v66
  %v131 = vunpack.c.l.bf16 %v67
  %v132 = vunpack.c.l.bf16 %v68
  %v133 = vunpack.c.l.bf16 %v69
  %v134 = vunpack.c.l.bf16 %v70
  %v135 = vunpack.c.l.bf16 %v71
  %v136 = vunpack.c.l.bf16 %v72
  %v137 = vunpack.c.l.bf16 %v73
  %v138 = vunpack.c.l.bf16 %v74
  %v139 = vunpack.c.l.bf16 %v75
  %v140 = vunpack.c.l.bf16 %v76
  %v141 = vunpack.c.l.bf16 %v77
  %v142 = vld [vmem:[%s1] sm:$0x1]
  %v144 = vperm.slane %v142, 0
  %v146 = vmul.f32 %v78, %v144
  %v147 = vmul.f32 %v79, %v144
  %v148 = vmul.f32 %v80, %v144
  %v149 = vmul.f32 %v81, %v144
  %v150 = vmul.f32 %v82, %v144
  %v151 = vmul.f32 %v83, %v144
  %v152 = vmul.f32 %v84, %v144
  %v153 = vmul.f32 %v85, %v144
  %v154 = vmul.f32 %v86, %v144
  %v155 = vmul.f32 %v87, %v144
  %v156 = vmul.f32 %v88, %v144
  %v157 = vmul.f32 %v89, %v144
  %v158 = vmul.f32 %v90, %v144
  %v159 = vmul.f32 %v91, %v144
  %v160 = vmul.f32 %v92, %v144
  %v161 = vmul.f32 %v93, %v144
  %v162 = vmul.f32 %v94, %v144
  %v163 = vmul.f32 %v95, %v144
  %v164 = vmul.f32 %v96, %v144
  %v165 = vmul.f32 %v97, %v144
  %v166 = vmul.f32 %v98, %v144
  %v167 = vmul.f32 %v99, %v144
  %v168 = vmul.f32 %v100, %v144
  %v169 = vmul.f32 %v101, %v144
  %v170 = vmul.f32 %v102, %v144
  %v171 = vmul.f32 %v103, %v144
  %v172 = vmul.f32 %v104, %v144
  %v173 = vmul.f32 %v105, %v144
  %v174 = vmul.f32 %v106, %v144
  %v175 = vmul.f32 %v107, %v144
  %v176 = vmul.f32 %v108, %v144
  %v177 = vmul.f32 %v109, %v144
  %v178 = vmul.f32 %v110, %v144
  %v179 = vmul.f32 %v111, %v144
  %v180 = vmul.f32 %v112, %v144
  %v181 = vmul.f32 %v113, %v144
  %v182 = vmul.f32 %v114, %v144
  %v183 = vmul.f32 %v115, %v144
  %v184 = vmul.f32 %v116, %v144
  %v185 = vmul.f32 %v117, %v144
  %v186 = vmul.f32 %v118, %v144
  %v187 = vmul.f32 %v119, %v144
  %v188 = vmul.f32 %v120, %v144
  %v189 = vmul.f32 %v121, %v144
  %v190 = vmul.f32 %v122, %v144
  %v191 = vmul.f32 %v123, %v144
  %v192 = vmul.f32 %v124, %v144
  %v193 = vmul.f32 %v125, %v144
  %v194 = vmul.f32 %v126, %v144
  %v195 = vmul.f32 %v127, %v144
  %v196 = vmul.f32 %v128, %v144
  %v197 = vmul.f32 %v129, %v144
  %v198 = vmul.f32 %v130, %v144
  %v199 = vmul.f32 %v131, %v144
  %v200 = vmul.f32 %v132, %v144
  %v201 = vmul.f32 %v133, %v144
  %v202 = vmul.f32 %v134, %v144
  %v203 = vmul.f32 %v135, %v144
  %v204 = vmul.f32 %v136, %v144
  %v205 = vmul.f32 %v137, %v144
  %v206 = vmul.f32 %v138, %v144
  %v207 = vmul.f32 %v139, %v144
  %v208 = vmul.f32 %v140, %v144
  %v209 = vmul.f32 %v141, %v144
  %v210 = vld [vmem:[%s2] sm:$0x1]
  %v212 = vperm.slane %v210, 0
  %v214 = vadd.f32 %v146, %v212
  %v215 = vadd.f32 %v147, %v212
  %v216 = vadd.f32 %v148, %v212
  %v217 = vadd.f32 %v149, %v212
  %v218 = vadd.f32 %v150, %v212
  %v219 = vadd.f32 %v151, %v212
  %v220 = vadd.f32 %v152, %v212
  %v221 = vadd.f32 %v153, %v212
  %v222 = vadd.f32 %v154, %v212
  %v223 = vadd.f32 %v155, %v212
  %v224 = vadd.f32 %v156, %v212
  %v225 = vadd.f32 %v157, %v212
  %v226 = vadd.f32 %v158, %v212
  %v227 = vadd.f32 %v159, %v212
  %v228 = vadd.f32 %v160, %v212
  %v229 = vadd.f32 %v161, %v212
  %v230 = vadd.f32 %v162, %v212
  %v231 = vadd.f32 %v163, %v212
  %v232 = vadd.f32 %v164, %v212
  %v233 = vadd.f32 %v165, %v212
  %v234 = vadd.f32 %v166, %v212
  %v235 = vadd.f32 %v167, %v212
  %v236 = vadd.f32 %v168, %v212
  %v237 = vadd.f32 %v169, %v212
  %v238 = vadd.f32 %v170, %v212
  %v239 = vadd.f32 %v171, %v212
  %v240 = vadd.f32 %v172, %v212
  %v241 = vadd.f32 %v173, %v212
  %v242 = vadd.f32 %v174, %v212
  %v243 = vadd.f32 %v175, %v212
  %v244 = vadd.f32 %v176, %v212
  %v245 = vadd.f32 %v177, %v212
  %v246 = vadd.f32 %v178, %v212
  %v247 = vadd.f32 %v179, %v212
  %v248 = vadd.f32 %v180, %v212
  %v249 = vadd.f32 %v181, %v212
  %v250 = vadd.f32 %v182, %v212
  %v251 = vadd.f32 %v183, %v212
  %v252 = vadd.f32 %v184, %v212
  %v253 = vadd.f32 %v185, %v212
  %v254 = vadd.f32 %v186, %v212
  %v255 = vadd.f32 %v187, %v212
  %v256 = vadd.f32 %v188, %v212
  %v257 = vadd.f32 %v189, %v212
  %v258 = vadd.f32 %v190, %v212
  %v259 = vadd.f32 %v191, %v212
  %v260 = vadd.f32 %v192, %v212
  %v261 = vadd.f32 %v193, %v212
  %v262 = vadd.f32 %v194, %v212
  %v263 = vadd.f32 %v195, %v212
  %v264 = vadd.f32 %v196, %v212
  %v265 = vadd.f32 %v197, %v212
  %v266 = vadd.f32 %v198, %v212
  %v267 = vadd.f32 %v199, %v212
  %v268 = vadd.f32 %v200, %v212
  %v269 = vadd.f32 %v201, %v212
  %v270 = vadd.f32 %v202, %v212
  %v271 = vadd.f32 %v203, %v212
  %v272 = vadd.f32 %v204, %v212
  %v273 = vadd.f32 %v205, %v212
  %v274 = vadd.f32 %v206, %v212
  %v275 = vadd.f32 %v207, %v212
  %v276 = vadd.f32 %v208, %v212
  %v277 = vadd.f32 %v209, %v212
  %vm278 = vcmp.ge.f32.partialorder %v214, 0.0
  %vm279 = vcmp.ge.f32.partialorder %v215, 0.0
  %vm280 = vcmp.ge.f32.partialorder %v216, 0.0
  %vm281 = vcmp.ge.f32.partialorder %v217, 0.0
  %vm282 = vcmp.ge.f32.partialorder %v218, 0.0
  %vm283 = vcmp.ge.f32.partialorder %v219, 0.0
  %vm284 = vcmp.ge.f32.partialorder %v220, 0.0
  %vm285 = vcmp.ge.f32.partialorder %v221, 0.0
  %vm286 = vcmp.ge.f32.partialorder %v222, 0.0
  %vm287 = vcmp.ge.f32.partialorder %v223, 0.0
  %vm288 = vcmp.ge.f32.partialorder %v224, 0.0
  %vm289 = vcmp.ge.f32.partialorder %v225, 0.0
  %vm290 = vcmp.ge.f32.partialorder %v226, 0.0
  %vm291 = vcmp.ge.f32.partialorder %v227, 0.0
  %vm292 = vcmp.ge.f32.partialorder %v228, 0.0
  %vm293 = vcmp.ge.f32.partialorder %v229, 0.0
  %vm294 = vcmp.ge.f32.partialorder %v230, 0.0
  %vm295 = vcmp.ge.f32.partialorder %v231, 0.0
  %vm296 = vcmp.ge.f32.partialorder %v232, 0.0
  %vm297 = vcmp.ge.f32.partialorder %v233, 0.0
  %vm298 = vcmp.ge.f32.partialorder %v234, 0.0
  %vm299 = vcmp.ge.f32.partialorder %v235, 0.0
  %vm300 = vcmp.ge.f32.partialorder %v236, 0.0
  %vm301 = vcmp.ge.f32.partialorder %v237, 0.0
  %vm302 = vcmp.ge.f32.partialorder %v238, 0.0
  %vm303 = vcmp.ge.f32.partialorder %v239, 0.0
  %vm304 = vcmp.ge.f32.partialorder %v240, 0.0
  %vm305 = vcmp.ge.f32.partialorder %v241, 0.0
  %vm306 = vcmp.ge.f32.partialorder %v242, 0.0
  %vm307 = vcmp.ge.f32.partialorder %v243, 0.0
  %vm308 = vcmp.ge.f32.partialorder %v244, 0.0
  %vm309 = vcmp.ge.f32.partialorder %v245, 0.0
  %vm310 = vcmp.ge.f32.partialorder %v246, 0.0
  %vm311 = vcmp.ge.f32.partialorder %v247, 0.0
  %vm312 = vcmp.ge.f32.partialorder %v248, 0.0
  %vm313 = vcmp.ge.f32.partialorder %v249, 0.0
  %vm314 = vcmp.ge.f32.partialorder %v250, 0.0
  %vm315 = vcmp.ge.f32.partialorder %v251, 0.0
  %vm316 = vcmp.ge.f32.partialorder %v252, 0.0
  %vm317 = vcmp.ge.f32.partialorder %v253, 0.0
  %vm318 = vcmp.ge.f32.partialorder %v254, 0.0
  %vm319 = vcmp.ge.f32.partialorder %v255, 0.0
  %vm320 = vcmp.ge.f32.partialorder %v256, 0.0
  %vm321 = vcmp.ge.f32.partialorder %v257, 0.0
  %vm322 = vcmp.ge.f32.partialorder %v258, 0.0
  %vm323 = vcmp.ge.f32.partialorder %v259, 0.0
  %vm324 = vcmp.ge.f32.partialorder %v260, 0.0
  %vm325 = vcmp.ge.f32.partialorder %v261, 0.0
  %vm326 = vcmp.ge.f32.partialorder %v262, 0.0
  %vm327 = vcmp.ge.f32.partialorder %v263, 0.0
  %vm328 = vcmp.ge.f32.partialorder %v264, 0.0
  %vm329 = vcmp.ge.f32.partialorder %v265, 0.0
  %vm330 = vcmp.ge.f32.partialorder %v266, 0.0
  %vm331 = vcmp.ge.f32.partialorder %v267, 0.0
  %vm332 = vcmp.ge.f32.partialorder %v268, 0.0
  %vm333 = vcmp.ge.f32.partialorder %v269, 0.0
  %vm334 = vcmp.ge.f32.partialorder %v270, 0.0
  %vm335 = vcmp.ge.f32.partialorder %v271, 0.0
  %vm336 = vcmp.ge.f32.partialorder %v272, 0.0
  %vm337 = vcmp.ge.f32.partialorder %v273, 0.0
  %vm338 = vcmp.ge.f32.partialorder %v274, 0.0
  %vm339 = vcmp.ge.f32.partialorder %v275, 0.0
  %vm340 = vcmp.ge.f32.partialorder %v276, 0.0
  %vm341 = vcmp.ge.f32.partialorder %v277, 0.0
  %v342 = vmul.f32 %v214, 0.2
  %v343 = vmul.f32 %v215, 0.2
  %v344 = vmul.f32 %v216, 0.2
  %v345 = vmul.f32 %v217, 0.2
  %v346 = vmul.f32 %v218, 0.2
  %v347 = vmul.f32 %v219, 0.2
  %v348 = vmul.f32 %v220, 0.2
  %v349 = vmul.f32 %v221, 0.2
  %v350 = vmul.f32 %v222, 0.2
  %v351 = vmul.f32 %v223, 0.2
  %v352 = vmul.f32 %v224, 0.2
  %v353 = vmul.f32 %v225, 0.2
  %v354 = vmul.f32 %v226, 0.2
  %v355 = vmul.f32 %v227, 0.2
  %v356 = vmul.f32 %v228, 0.2
  %v357 = vmul.f32 %v229, 0.2
  %v358 = vmul.f32 %v230, 0.2
  %v359 = vmul.f32 %v231, 0.2
  %v360 = vmul.f32 %v232, 0.2
  %v361 = vmul.f32 %v233, 0.2
  %v362 = vmul.f32 %v234, 0.2
  %v363 = vmul.f32 %v235, 0.2
  %v364 = vmul.f32 %v236, 0.2
  %v365 = vmul.f32 %v237, 0.2
  %v366 = vmul.f32 %v238, 0.2
  %v367 = vmul.f32 %v239, 0.2
  %v368 = vmul.f32 %v240, 0.2
  %v369 = vmul.f32 %v241, 0.2
  %v370 = vmul.f32 %v242, 0.2
  %v371 = vmul.f32 %v243, 0.2
  %v372 = vmul.f32 %v244, 0.2
  %v373 = vmul.f32 %v245, 0.2
  %v374 = vmul.f32 %v246, 0.2
  %v375 = vmul.f32 %v247, 0.2
  %v376 = vmul.f32 %v248, 0.2
  %v377 = vmul.f32 %v249, 0.2
  %v378 = vmul.f32 %v250, 0.2
  %v379 = vmul.f32 %v251, 0.2
  %v380 = vmul.f32 %v252, 0.2
  %v381 = vmul.f32 %v253, 0.2
  %v382 = vmul.f32 %v254, 0.2
  %v383 = vmul.f32 %v255, 0.2
  %v384 = vmul.f32 %v256, 0.2
  %v385 = vmul.f32 %v257, 0.2
  %v386 = vmul.f32 %v258, 0.2
  %v387 = vmul.f32 %v259, 0.2
  %v388 = vmul.f32 %v260, 0.2
  %v389 = vmul.f32 %v261, 0.2
  %v390 = vmul.f32 %v262, 0.2
  %v391 = vmul.f32 %v263, 0.2
  %v392 = vmul.f32 %v264, 0.2
  %v393 = vmul.f32 %v265, 0.2
  %v394 = vmul.f32 %v266, 0.2
  %v395 = vmul.f32 %v267, 0.2
  %v396 = vmul.f32 %v268, 0.2
  %v397 = vmul.f32 %v269, 0.2
  %v398 = vmul.f32 %v270, 0.2
  %v399 = vmul.f32 %v271, 0.2
  %v400 = vmul.f32 %v272, 0.2
  %v401 = vmul.f32 %v273, 0.2
  %v402 = vmul.f32 %v274, 0.2
  %v403 = vmul.f32 %v275, 0.2
  %v404 = vmul.f32 %v276, 0.2
  %v405 = vmul.f32 %v277, 0.2
  %v406 = vsel %vm278, %v214, %v342
  %v407 = vsel %vm279, %v215, %v343
  %v408 = vsel %vm280, %v216, %v344
  %v409 = vsel %vm281, %v217, %v345
  %v410 = vsel %vm282, %v218, %v346
  %v411 = vsel %vm283, %v219, %v347
  %v412 = vsel %vm284, %v220, %v348
  %v413 = vsel %vm285, %v221, %v349
  %v414 = vsel %vm286, %v222, %v350
  %v415 = vsel %vm287, %v223, %v351
  %v416 = vsel %vm288, %v224, %v352
  %v417 = vsel %vm289, %v225, %v353
  %v418 = vsel %vm290, %v226, %v354
  %v419 = vsel %vm291, %v227, %v355
  %v420 = vsel %vm292, %v228, %v356
  %v421 = vsel %vm293, %v229, %v357
  %v422 = vsel %vm294, %v230, %v358
  %v423 = vsel %vm295, %v231, %v359
  %v424 = vsel %vm296, %v232, %v360
  %v425 = vsel %vm297, %v233, %v361
  %v426 = vsel %vm298, %v234, %v362
  %v427 = vsel %vm299, %v235, %v363
  %v428 = vsel %vm300, %v236, %v364
  %v429 = vsel %vm301, %v237, %v365
  %v430 = vsel %vm302, %v238, %v366
  %v431 = vsel %vm303, %v239, %v367
  %v432 = vsel %vm304, %v240, %v368
  %v433 = vsel %vm305, %v241, %v369
  %v434 = vsel %vm306, %v242, %v370
  %v435 = vsel %vm307, %v243, %v371
  %v436 = vsel %vm308, %v244, %v372
  %v437 = vsel %vm309, %v245, %v373
  %v438 = vsel %vm310, %v246, %v374
  %v439 = vsel %vm311, %v247, %v375
  %v440 = vsel %vm312, %v248, %v376
  %v441 = vsel %vm313, %v249, %v377
  %v442 = vsel %vm314, %v250, %v378
  %v443 = vsel %vm315, %v251, %v379
  %v444 = vsel %vm316, %v252, %v380
  %v445 = vsel %vm317, %v253, %v381
  %v446 = vsel %vm318, %v254, %v382
  %v447 = vsel %vm319, %v255, %v383
  %v448 = vsel %vm320, %v256, %v384
  %v449 = vsel %vm321, %v257, %v385
  %v450 = vsel %vm322, %v258, %v386
  %v451 = vsel %vm323, %v259, %v387
  %v452 = vsel %vm324, %v260, %v388
  %v453 = vsel %vm325, %v261, %v389
  %v454 = vsel %vm326, %v262, %v390
  %v455 = vsel %vm327, %v263, %v391
  %v456 = vsel %vm328, %v264, %v392
  %v457 = vsel %vm329, %v265, %v393
  %v458 = vsel %vm330, %v266, %v394
  %v459 = vsel %vm331, %v267, %v395
  %v460 = vsel %vm332, %v268, %v396
  %v461 = vsel %vm333, %v269, %v397
  %v462 = vsel %vm334, %v270, %v398
  %v463 = vsel %vm335, %v271, %v399
  %v464 = vsel %vm336, %v272, %v400
  %v465 = vsel %vm337, %v273, %v401
  %v466 = vsel %vm338, %v274, %v402
  %v467 = vsel %vm339, %v275, %v403
  %v468 = vsel %vm340, %v276, %v404
  %v469 = vsel %vm341, %v277, %v405
  %v470 = vpack.c.bf16 %v406, %v406
  %v471 = vpack.c.bf16 %v407, %v407
  %v472 = vpack.c.bf16 %v408, %v408
  %v473 = vpack.c.bf16 %v409, %v409
  %v474 = vpack.c.bf16 %v410, %v410
  %v475 = vpack.c.bf16 %v411, %v411
  %v476 = vpack.c.bf16 %v412, %v412
  %v477 = vpack.c.bf16 %v413, %v413
  %v478 = vpack.c.bf16 %v414, %v414
  %v479 = vpack.c.bf16 %v415, %v415
  %v480 = vpack.c.bf16 %v416, %v416
  %v481 = vpack.c.bf16 %v417, %v417
  %v482 = vpack.c.bf16 %v418, %v418
  %v483 = vpack.c.bf16 %v419, %v419
  %v484 = vpack.c.bf16 %v420, %v420
  %v485 = vpack.c.bf16 %v421, %v421
  %v486 = vpack.c.bf16 %v422, %v422
  %v487 = vpack.c.bf16 %v423, %v423
  %v488 = vpack.c.bf16 %v424, %v424
  %v489 = vpack.c.bf16 %v425, %v425
  %v490 = vpack.c.bf16 %v426, %v426
  %v491 = vpack.c.bf16 %v427, %v427
  %v492 = vpack.c.bf16 %v428, %v428
  %v493 = vpack.c.bf16 %v429, %v429
  %v494 = vpack.c.bf16 %v430, %v430
  %v495 = vpack.c.bf16 %v431, %v431
  %v496 = vpack.c.bf16 %v432, %v432
  %v497 = vpack.c.bf16 %v433, %v433
  %v498 = vpack.c.bf16 %v434, %v434
  %v499 = vpack.c.bf16 %v435, %v435
  %v500 = vpack.c.bf16 %v436, %v436
  %v501 = vpack.c.bf16 %v437, %v437
  %v502 = vpack.c.bf16 %v438, %v438
  %v503 = vpack.c.bf16 %v439, %v439
  %v504 = vpack.c.bf16 %v440, %v440
  %v505 = vpack.c.bf16 %v441, %v441
  %v506 = vpack.c.bf16 %v442, %v442
  %v507 = vpack.c.bf16 %v443, %v443
  %v508 = vpack.c.bf16 %v444, %v444
  %v509 = vpack.c.bf16 %v445, %v445
  %v510 = vpack.c.bf16 %v446, %v446
  %v511 = vpack.c.bf16 %v447, %v447
  %v512 = vpack.c.bf16 %v448, %v448
  %v513 = vpack.c.bf16 %v449, %v449
  %v514 = vpack.c.bf16 %v450, %v450
  %v515 = vpack.c.bf16 %v451, %v451
  %v516 = vpack.c.bf16 %v452, %v452
  %v517 = vpack.c.bf16 %v453, %v453
  %v518 = vpack.c.bf16 %v454, %v454
  %v519 = vpack.c.bf16 %v455, %v455
  %v520 = vpack.c.bf16 %v456, %v456
  %v521 = vpack.c.bf16 %v457, %v457
  %v522 = vpack.c.bf16 %v458, %v458
  %v523 = vpack.c.bf16 %v459, %v459
  %v524 = vpack.c.bf16 %v460, %v460
  %v525 = vpack.c.bf16 %v461, %v461
  %v526 = vpack.c.bf16 %v462, %v462
  %v527 = vpack.c.bf16 %v463, %v463
  %v528 = vpack.c.bf16 %v464, %v464
  %v529 = vpack.c.bf16 %v465, %v465
  %v530 = vpack.c.bf16 %v466, %v466
  %v531 = vpack.c.bf16 %v467, %v467
  %v532 = vpack.c.bf16 %v468, %v468
  %v533 = vpack.c.bf16 %v469, %v469
  %534 = vst [vmem:[%s3] sm:$0xf] %v470
  %535 = vst [vmem:[%s3 + $0x4] sm:$0xf] %v471
  %536 = vst [vmem:[%s3 + $0x8] sm:$0xf] %v472
  %537 = vst [vmem:[%s3 + $0xc] sm:$0xf] %v473
  %538 = vst [vmem:[%s3 + $0x10] sm:$0xf] %v474
  %539 = vst [vmem:[%s3 + $0x14] sm:$0xf] %v475
  %540 = vst [vmem:[%s3 + $0x18] sm:$0xf] %v476
  %541 = vst [vmem:[%s3 + $0x1c] sm:$0xf] %v477
  %542 = vst [vmem:[%s3 + $0x20] sm:$0xf] %v478
  %543 = vst [vmem:[%s3 + $0x24] sm:$0xf] %v479
  %544 = vst [vmem:[%s3 + $0x28] sm:$0xf] %v480
  %545 = vst [vmem:[%s3 + $0x2c] sm:$0xf] %v481
  %546 = vst [vmem:[%s3 + $0x30] sm:$0xf] %v482
  %547 = vst [vmem:[%s3 + $0x34] sm:$0xf] %v483
  %548 = vst [vmem:[%s3 + $0x38] sm:$0xf] %v484
  %549 = vst [vmem:[%s3 + $0x3c] sm:$0xf] %v485
  %550 = vst [vmem:[%s3 + $0x40] sm:$0xf] %v486
  %551 = vst [vmem:[%s3 + $0x44] sm:$0xf] %v487
  %552 = vst [vmem:[%s3 + $0x48] sm:$0xf] %v488
  %553 = vst [vmem:[%s3 + $0x4c] sm:$0xf] %v489
  %554 = vst [vmem:[%s3 + $0x50] sm:$0xf] %v490
  %555 = vst [vmem:[%s3 + $0x54] sm:$0xf] %v491
  %556 = vst [vmem:[%s3 + $0x58] sm:$0xf] %v492
  %557 = vst [vmem:[%s3 + $0x5c] sm:$0xf] %v493
  %558 = vst [vmem:[%s3 + $0x60] sm:$0xf] %v494
  %559 = vst [vmem:[%s3 + $0x64] sm:$0xf] %v495
  %560 = vst [vmem:[%s3 + $0x68] sm:$0xf] %v496
  %561 = vst [vmem:[%s3 + $0x6c] sm:$0xf] %v497
  %562 = vst [vmem:[%s3 + $0x70] sm:$0xf] %v498
  %563 = vst [vmem:[%s3 + $0x74] sm:$0xf] %v499
  %564 = vst [vmem:[%s3 + $0x78] sm:$0xf] %v500
  %565 = vst [vmem:[%s3 + $0x7c] sm:$0xf] %v501
  %566 = vst [vmem:[%s3 + $0x80] sm:$0xf] %v502
  %567 = vst [vmem:[%s3 + $0x84] sm:$0xf] %v503
  %568 = vst [vmem:[%s3 + $0x88] sm:$0xf] %v504
  %569 = vst [vmem:[%s3 + $0x8c] sm:$0xf] %v505
  %570 = vst [vmem:[%s3 + $0x90] sm:$0xf] %v506
  %571 = vst [vmem:[%s3 + $0x94] sm:$0xf] %v507
  %572 = vst [vmem:[%s3 + $0x98] sm:$0xf] %v508
  %573 = vst [vmem:[%s3 + $0x9c] sm:$0xf] %v509
  %574 = vst [vmem:[%s3 + $0xa0] sm:$0xf] %v510
  %575 = vst [vmem:[%s3 + $0xa4] sm:$0xf] %v511
  %576 = vst [vmem:[%s3 + $0xa8] sm:$0xf] %v512
  %577 = vst [vmem:[%s3 + $0xac] sm:$0xf] %v513
  %578 = vst [vmem:[%s3 + $0xb0] sm:$0xf] %v514
  %579 = vst [vmem:[%s3 + $0xb4] sm:$0xf] %v515
  %580 = vst [vmem:[%s3 + $0xb8] sm:$0xf] %v516
  %581 = vst [vmem:[%s3 + $0xbc] sm:$0xf] %v517
  %582 = vst [vmem:[%s3 + $0xc0] sm:$0xf] %v518
  %583 = vst [vmem:[%s3 + $0xc4] sm:$0xf] %v519
  %584 = vst [vmem:[%s3 + $0xc8] sm:$0xf] %v520
  %585 = vst [vmem:[%s3 + $0xcc] sm:$0xf] %v521
  %586 = vst [vmem:[%s3 + $0xd0] sm:$0xf] %v522
  %587 = vst [vmem:[%s3 + $0xd4] sm:$0xf] %v523
  %588 = vst [vmem:[%s3 + $0xd8] sm:$0xf] %v524
  %589 = vst [vmem:[%s3 + $0xdc] sm:$0xf] %v525
  %590 = vst [vmem:[%s3 + $0xe0] sm:$0xf] %v526
  %591 = vst [vmem:[%s3 + $0xe4] sm:$0xf] %v527
  %592 = vst [vmem:[%s3 + $0xe8] sm:$0xf] %v528
  %593 = vst [vmem:[%s3 + $0xec] sm:$0xf] %v529
  %594 = vst [vmem:[%s3 + $0xf0] sm:$0xf] %v530
  %595 = vst [vmem:[%s3 + $0xf4] sm:$0xf] %v531
  %596 = vst [vmem:[%s3 + $0xf8] sm:$0xf] %v532
  %597 = vst [vmem:[%s3 + $0xfc] sm:$0xf] %v533
  // Predicated region
  $region14: #{discriminator_forward.9} parent=0 // pred_check
    _
  $region15: #{discriminator_forward.9} parent=0 // pred_check_branch
    %599 = sbr.rel (0) target = $region17
  $region16: #{discriminator_forward.9} parent=0 // pred_region
    _
  $region17: #{discriminator_forward.9} parent=0 // pred_fallthru
    _
  // Predicated region
  $region18: #{discriminator_forward.9} parent=0 // pred_check
    _
  $region19: #{discriminator_forward.9} parent=0 // pred_check_branch
    %601 = sbr.rel (0) target = $region21
  $region20: #{discriminator_forward.9} parent=0 // pred_region
    _
  $region21: #{discriminator_forward.9} parent=0 // pred_fallthru
    _

// kernel: discriminator_forward.10
$region0: #{discriminator_forward.10}
  #allocation0 [shape = 'u32[]', space=smem, size = 0x4, offset = 0x4, fixed_abs, tag = 'smem constant byte address 0x4 - core index']
  #allocation1 [shape = 'u32[72,128]{1,0:T(1,128)}', space=vmem, size = 0x9000, scoped, tag = 'internal scratch']
  %s0 = inlined_call_operand.vmem [shape: bf16[128,256], index: 0, kind: input, shape index: {}]
  %s1 = inlined_call_operand.vmem [shape: bf16[256,128], index: 1, kind: input, shape index: {}]
  %s2 = inlined_call_operand.vmem [shape: bf16[128,128], index: 2, kind: output, shape index: {0}]
  %s3 = inlined_call_operand.vmem [shape: f32[1,2,128], index: 3, kind: output, shape index: {1}]
  %4 = xla_tuple %s2, %s3
  %s5 = sld [smem:[#allocation0]]
  $region26: #{discriminator_forward.10} parent=0
    _
  %s7 = ssub.s32 1, %s5
  %s8 = scalar_select 0, %s7, %s5
  // Predicated region
  $region2: #{discriminator_forward.10} parent=0 // pred_check
    _
  $region3: #{discriminator_forward.10} parent=0 // pred_check_branch
    %10 = sbr.rel (0) target = $region5
  $region4: #{discriminator_forward.10} parent=0 // pred_region
    _
  $region5: #{discriminator_forward.10} parent=0 // pred_fallthru
    _
  // Predicated region
  $region6: #{discriminator_forward.10} parent=0 // pred_check
    _
  $region7: #{discriminator_forward.10} parent=0 // pred_check_branch
    %12 = sbr.rel (0) target = $region9
  $region8: #{discriminator_forward.10} parent=0 // pred_region
    _
  $region9: #{discriminator_forward.10} parent=0 // pred_fallthru
    _
  %v13 = vld [vmem:[%s0] sm:$0xff]
  %v14 = vld [vmem:[%s0 + $0x8] sm:$0xff]
  %v15 = vld [vmem:[%s0 + $0x10] sm:$0xff]
  %v16 = vld [vmem:[%s0 + $0x18] sm:$0xff]
  %v17 = vld [vmem:[%s0 + $0x20] sm:$0xff]
  %v18 = vld [vmem:[%s0 + $0x28] sm:$0xff]
  %v19 = vld [vmem:[%s0 + $0x30] sm:$0xff]
  %v20 = vld [vmem:[%s0 + $0x38] sm:$0xff]
  %v21 = vld [vmem:[%s0 + $0x40] sm:$0xff]
  %v22 = vld [vmem:[%s0 + $0x48] sm:$0xff]
  %v23 = vld [vmem:[%s0 + $0x50] sm:$0xff]
  %v24 = vld [vmem:[%s0 + $0x58] sm:$0xff]
  %v25 = vld [vmem:[%s0 + $0x60] sm:$0xff]
  %v26 = vld [vmem:[%s0 + $0x68] sm:$0xff]
  %v27 = vld [vmem:[%s0 + $0x70] sm:$0xff]
  %v28 = vld [vmem:[%s0 + $0x78] sm:$0xff]
  %v29 = vld [vmem:[%s1] sm:$0xf]
  %v30 = vld [vmem:[%s1 + $0x4] sm:$0xf]
  %v31 = vld [vmem:[%s1 + $0x8] sm:$0xf]
  %v32 = vld [vmem:[%s1 + $0xc] sm:$0xf]
  %v33 = vld [vmem:[%s1 + $0x10] sm:$0xf]
  %v34 = vld [vmem:[%s1 + $0x14] sm:$0xf]
  %v35 = vld [vmem:[%s1 + $0x18] sm:$0xf]
  %v36 = vld [vmem:[%s1 + $0x1c] sm:$0xf]
  %v37 = vld [vmem:[%s1 + $0x20] sm:$0xf]
  %v38 = vld [vmem:[%s1 + $0x24] sm:$0xf]
  %v39 = vld [vmem:[%s1 + $0x28] sm:$0xf]
  %v40 = vld [vmem:[%s1 + $0x2c] sm:$0xf]
  %v41 = vld [vmem:[%s1 + $0x30] sm:$0xf]
  %v42 = vld [vmem:[%s1 + $0x34] sm:$0xf]
  %v43 = vld [vmem:[%s1 + $0x38] sm:$0xf]
  %v44 = vld [vmem:[%s1 + $0x3c] sm:$0xf]
  %v45 = vld [vmem:[%s1 + $0x40] sm:$0xf]
  %v46 = vld [vmem:[%s1 + $0x44] sm:$0xf]
  %v47 = vld [vmem:[%s1 + $0x48] sm:$0xf]
  %v48 = vld [vmem:[%s1 + $0x4c] sm:$0xf]
  %v49 = vld [vmem:[%s1 + $0x50] sm:$0xf]
  %v50 = vld [vmem:[%s1 + $0x54] sm:$0xf]
  %v51 = vld [vmem:[%s1 + $0x58] sm:$0xf]
  %v52 = vld [vmem:[%s1 + $0x5c] sm:$0xf]
  %v53 = vld [vmem:[%s1 + $0x60] sm:$0xf]
  %v54 = vld [vmem:[%s1 + $0x64] sm:$0xf]
  %v55 = vld [vmem:[%s1 + $0x68] sm:$0xf]
  %v56 = vld [vmem:[%s1 + $0x6c] sm:$0xf]
  %v57 = vld [vmem:[%s1 + $0x70] sm:$0xf]
  %v58 = vld [vmem:[%s1 + $0x74] sm:$0xf]
  %v59 = vld [vmem:[%s1 + $0x78] sm:$0xf]
  %v60 = vld [vmem:[%s1 + $0x7c] sm:$0xf]
  %v77 = vunpack.c.l.b16 %v13
  %v78 = vunpack.c.h.b16 %v13
  %v79 = vunpack.c.l.b16 %v14
  %v80 = vunpack.c.h.b16 %v14
  %v81 = vunpack.c.l.b16 %v15
  %v82 = vunpack.c.h.b16 %v15
  %v83 = vunpack.c.l.b16 %v16
  %v84 = vunpack.c.h.b16 %v16
  %v85 = vunpack.c.l.b16 %v17
  %v86 = vunpack.c.h.b16 %v17
  %v87 = vunpack.c.l.b16 %v18
  %v88 = vunpack.c.h.b16 %v18
  %v89 = vunpack.c.l.b16 %v19
  %v90 = vunpack.c.h.b16 %v19
  %v91 = vunpack.c.l.b16 %v20
  %v92 = vunpack.c.h.b16 %v20
  %v93 = vunpack.c.l.b16 %v21
  %v94 = vunpack.c.h.b16 %v21
  %v95 = vunpack.c.l.b16 %v22
  %v96 = vunpack.c.h.b16 %v22
  %v97 = vunpack.c.l.b16 %v23
  %v98 = vunpack.c.h.b16 %v23
  %v99 = vunpack.c.l.b16 %v24
  %v100 = vunpack.c.h.b16 %v24
  %v101 = vunpack.c.l.b16 %v25
  %v102 = vunpack.c.h.b16 %v25
  %v103 = vunpack.c.l.b16 %v26
  %v104 = vunpack.c.h.b16 %v26
  %v105 = vunpack.c.l.b16 %v27
  %v106 = vunpack.c.h.b16 %v27
  %v107 = vunpack.c.l.b16 %v28
  %v108 = vunpack.c.h.b16 %v28
  %v109 = vpack.c.b16 %v79, %v77
  %v110 = vpack.c.b16 %v80, %v78
  %v111 = vpack.c.b16 %v83, %v81
  %v112 = vpack.c.b16 %v84, %v82
  %v113 = vpack.c.b16 %v87, %v85
  %v114 = vpack.c.b16 %v88, %v86
  %v115 = vpack.c.b16 %v91, %v89
  %v116 = vpack.c.b16 %v92, %v90
  %v117 = vpack.c.b16 %v95, %v93
  %v118 = vpack.c.b16 %v96, %v94
  %v119 = vpack.c.b16 %v99, %v97
  %v120 = vpack.c.b16 %v100, %v98
  %v121 = vpack.c.b16 %v103, %v101
  %v122 = vpack.c.b16 %v104, %v102
  %v123 = vpack.c.b16 %v107, %v105
  %v124 = vpack.c.b16 %v108, %v106
  %v173 = vunpack.c.l.b16 %v29
  %v174 = vunpack.c.l.b16 %v30
  %v175 = vunpack.c.l.b16 %v31
  %v176 = vunpack.c.l.b16 %v32
  %v177 = vunpack.c.l.b16 %v33
  %v178 = vunpack.c.l.b16 %v34
  %v179 = vunpack.c.l.b16 %v35
  %v180 = vunpack.c.l.b16 %v36
  %v181 = vunpack.c.l.b16 %v37
  %v182 = vunpack.c.l.b16 %v38
  %v183 = vunpack.c.l.b16 %v39
  %v184 = vunpack.c.l.b16 %v40
  %v185 = vunpack.c.l.b16 %v41
  %v186 = vunpack.c.l.b16 %v42
  %v187 = vunpack.c.l.b16 %v43
  %v188 = vunpack.c.l.b16 %v44
  %v189 = vunpack.c.l.b16 %v45
  %v190 = vunpack.c.l.b16 %v46
  %v191 = vunpack.c.l.b16 %v47
  %v192 = vunpack.c.l.b16 %v48
  %v193 = vunpack.c.l.b16 %v49
  %v194 = vunpack.c.l.b16 %v50
  %v195 = vunpack.c.l.b16 %v51
  %v196 = vunpack.c.l.b16 %v52
  %v197 = vunpack.c.l.b16 %v53
  %v198 = vunpack.c.l.b16 %v54
  %v199 = vunpack.c.l.b16 %v55
  %v200 = vunpack.c.l.b16 %v56
  %v201 = vunpack.c.l.b16 %v57
  %v202 = vunpack.c.l.b16 %v58
  %v203 = vunpack.c.l.b16 %v59
  %v204 = vunpack.c.l.b16 %v60
  %v205 = vpack.c.b16 %v174, %v173
  %v206 = vpack.c.b16 %v176, %v175
  %v207 = vpack.c.b16 %v178, %v177
  %v208 = vpack.c.b16 %v180, %v179
  %v209 = vpack.c.b16 %v182, %v181
  %v210 = vpack.c.b16 %v184, %v183
  %v211 = vpack.c.b16 %v186, %v185
  %v212 = vpack.c.b16 %v188, %v187
  %v213 = vpack.c.b16 %v190, %v189
  %v214 = vpack.c.b16 %v192, %v191
  %v215 = vpack.c.b16 %v194, %v193
  %v216 = vpack.c.b16 %v196, %v195
  %v217 = vpack.c.b16 %v198, %v197
  %v218 = vpack.c.b16 %v200, %v199
  %v219 = vpack.c.b16 %v202, %v201
  %v220 = vpack.c.b16 %v204, %v203
  %237 = vmatpush.bf16.msra.mxu0 %v212
  %238 = vmatpush.bf16.msra.mxu0 %v211
  %239 = vmatpush.bf16.msra.mxu0 %v210
  %240 = vmatpush.bf16.msra.mxu0 %v209
  %241 = vmatpush.bf16.msra.mxu0 %v208
  %242 = vmatpush.bf16.msra.mxu0 %v207
  %243 = vmatpush.bf16.msra.mxu0 %v206
  %244 = vmatpush.bf16.msra.mxu0 %v205
  %245 = vmatmul.bf16.gmra.mxu0 %v109
  %v246 = vpop.f32.mrf.mxu0
  %v247 = vadd.f32 0.0, %v246
  %v248 = vpop.f32.mrf.mxu0
  %v249 = vadd.f32 0.0, %v248
  %250 = vmatmul.bf16.gmra.mxu0 %v111
  %v251 = vpop.f32.mrf.mxu0
  %v252 = vadd.f32 0.0, %v251
  %v253 = vpop.f32.mrf.mxu0
  %v254 = vadd.f32 0.0, %v253
  %255 = vmatmul.bf16.gmra.mxu0 %v113
  %v256 = vpop.f32.mrf.mxu0
  %v257 = vadd.f32 0.0, %v256
  %v258 = vpop.f32.mrf.mxu0
  %v259 = vadd.f32 0.0, %v258
  %260 = vmatmul.bf16.gmra.mxu0 %v115
  %v261 = vpop.f32.mrf.mxu0
  %v262 = vadd.f32 0.0, %v261
  %v263 = vpop.f32.mrf.mxu0
  %v264 = vadd.f32 0.0, %v263
  %265 = vmatmul.bf16.gmra.mxu0 %v117
  %v266 = vpop.f32.mrf.mxu0
  %v267 = vadd.f32 0.0, %v266
  %v268 = vpop.f32.mrf.mxu0
  %v269 = vadd.f32 0.0, %v268
  %270 = vmatmul.bf16.gmra.mxu0 %v119
  %v271 = vpop.f32.mrf.mxu0
  %v272 = vadd.f32 0.0, %v271
  %v273 = vpop.f32.mrf.mxu0
  %v274 = vadd.f32 0.0, %v273
  %275 = vmatmul.bf16.gmra.mxu0 %v121
  %v276 = vpop.f32.mrf.mxu0
  %v277 = vadd.f32 0.0, %v276
  %v278 = vpop.f32.mrf.mxu0
  %v279 = vadd.f32 0.0, %v278
  %280 = vmatmul.bf16.gmra.mxu0 %v123
  %v281 = vpop.f32.mrf.mxu0
  %v282 = vadd.f32 0.0, %v281
  %v283 = vpop.f32.mrf.mxu0
  %v284 = vadd.f32 0.0, %v283
  %285 = vdwg.mxu0
  %286 = vmatpush.bf16.msra.mxu0 %v220
  %287 = vmatpush.bf16.msra.mxu0 %v219
  %288 = vmatpush.bf16.msra.mxu0 %v218
  %289 = vmatpush.bf16.msra.mxu0 %v217
  %290 = vmatpush.bf16.msra.mxu0 %v216
  %291 = vmatpush.bf16.msra.mxu0 %v215
  %292 = vmatpush.bf16.msra.mxu0 %v214
  %293 = vmatpush.bf16.msra.mxu0 %v213
  %294 = vmatmul.bf16.gmra.mxu0 %v110
  %v295 = vpop.f32.mrf.mxu0
  %v296 = vadd.f32 %v247, %v295
  %v297 = vpop.f32.mrf.mxu0
  %v298 = vadd.f32 %v249, %v297
  %299 = vmatmul.bf16.gmra.mxu0 %v112
  %v300 = vpop.f32.mrf.mxu0
  %v301 = vadd.f32 %v252, %v300
  %v302 = vpop.f32.mrf.mxu0
  %v303 = vadd.f32 %v254, %v302
  %304 = vmatmul.bf16.gmra.mxu0 %v114
  %v305 = vpop.f32.mrf.mxu0
  %v306 = vadd.f32 %v257, %v305
  %v307 = vpop.f32.mrf.mxu0
  %v308 = vadd.f32 %v259, %v307
  %309 = vmatmul.bf16.gmra.mxu0 %v116
  %v310 = vpop.f32.mrf.mxu0
  %v311 = vadd.f32 %v262, %v310
  %v312 = vpop.f32.mrf.mxu0
  %v313 = vadd.f32 %v264, %v312
  %314 = vmatmul.bf16.gmra.mxu0 %v118
  %v315 = vpop.f32.mrf.mxu0
  %v316 = vadd.f32 %v267, %v315
  %v317 = vpop.f32.mrf.mxu0
  %v318 = vadd.f32 %v269, %v317
  %319 = vmatmul.bf16.gmra.mxu0 %v120
  %v320 = vpop.f32.mrf.mxu0
  %v321 = vadd.f32 %v272, %v320
  %v322 = vpop.f32.mrf.mxu0
  %v323 = vadd.f32 %v274, %v322
  %324 = vmatmul.bf16.gmra.mxu0 %v122
  %v325 = vpop.f32.mrf.mxu0
  %v326 = vadd.f32 %v277, %v325
  %v327 = vpop.f32.mrf.mxu0
  %v328 = vadd.f32 %v279, %v327
  %329 = vmatmul.bf16.gmra.mxu0 %v124
  %v330 = vpop.f32.mrf.mxu0
  %v331 = vadd.f32 %v282, %v330
  %v332 = vpop.f32.mrf.mxu0
  %v333 = vadd.f32 %v284, %v332
  %334 = vdwg.mxu0
  %v335 = vpack.c.bf16 %v296, %v296
  %v336 = vpack.c.bf16 %v298, %v298
  %v337 = vpack.c.bf16 %v301, %v301
  %v338 = vpack.c.bf16 %v303, %v303
  %v339 = vpack.c.bf16 %v306, %v306
  %v340 = vpack.c.bf16 %v308, %v308
  %v341 = vpack.c.bf16 %v311, %v311
  %v342 = vpack.c.bf16 %v313, %v313
  %v343 = vpack.c.bf16 %v316, %v316
  %v344 = vpack.c.bf16 %v318, %v318
  %v345 = vpack.c.bf16 %v321, %v321
  %v346 = vpack.c.bf16 %v323, %v323
  %v347 = vpack.c.bf16 %v326, %v326
  %v348 = vpack.c.bf16 %v328, %v328
  %v349 = vpack.c.bf16 %v331, %v331
  %v350 = vpack.c.bf16 %v333, %v333
  %351 = vst [vmem:[%s2] sm:$0xf] %v335
  %352 = vst [vmem:[%s2 + $0x4] sm:$0xf] %v336
  %353 = vst [vmem:[%s2 + $0x8] sm:$0xf] %v337
  %354 = vst [vmem:[%s2 + $0xc] sm:$0xf] %v338
  %355 = vst [vmem:[%s2 + $0x10] sm:$0xf] %v339
  %356 = vst [vmem:[%s2 + $0x14] sm:$0xf] %v340
  %357 = vst [vmem:[%s2 + $0x18] sm:$0xf] %v341
  %358 = vst [vmem:[%s2 + $0x1c] sm:$0xf] %v342
  %359 = vst [vmem:[%s2 + $0x20] sm:$0xf] %v343
  %360 = vst [vmem:[%s2 + $0x24] sm:$0xf] %v344
  %361 = vst [vmem:[%s2 + $0x28] sm:$0xf] %v345
  %362 = vst [vmem:[%s2 + $0x2c] sm:$0xf] %v346
  %363 = vst [vmem:[%s2 + $0x30] sm:$0xf] %v347
  %364 = vst [vmem:[%s2 + $0x34] sm:$0xf] %v348
  %365 = vst [vmem:[%s2 + $0x38] sm:$0xf] %v349
  %366 = vst [vmem:[%s2 + $0x3c] sm:$0xf] %v350
  %v367 = vadd.f32 %v296, %v298
  %v368 = vadd.f32 %v367, %v301
  %v369 = vadd.f32 %v368, %v303
  %v370 = vadd.f32 %v369, %v306
  %v371 = vadd.f32 %v370, %v308
  %v372 = vadd.f32 %v371, %v311
  %v373 = vadd.f32 %v372, %v313
  %v374 = vadd.f32 %v373, %v316
  %v375 = vadd.f32 %v374, %v318
  %v376 = vadd.f32 %v375, %v321
  %v377 = vadd.f32 %v376, %v323
  %v378 = vadd.f32 %v377, %v326
  %v379 = vadd.f32 %v378, %v328
  %v380 = vadd.f32 %v379, %v331
  %v381 = vadd.f32 %v380, %v333
  %v382 = vrot.slane %v381, 4
  %v383 = vadd.f32 %v381, %v382
  %v384 = vrot.slane %v383, 2
  %v385 = vadd.f32 %v383, %v384
  %v386 = vrot.slane %v385, 1
  %v387 = vadd.f32 %v385, %v386
  %388 = vst [vmem:[%s3] sm:$0x1] %v387
  %v389 = vmul.f32 %v296, %v296
  %v390 = vmul.f32 %v298, %v298
  %v391 = vmul.f32 %v301, %v301
  %v392 = vmul.f32 %v303, %v303
  %v393 = vmul.f32 %v306, %v306
  %v394 = vmul.f32 %v308, %v308
  %v395 = vmul.f32 %v311, %v311
  %v396 = vmul.f32 %v313, %v313
  %v397 = vmul.f32 %v316, %v316
  %v398 = vmul.f32 %v318, %v318
  %v399 = vmul.f32 %v321, %v321
  %v400 = vmul.f32 %v323, %v323
  %v401 = vmul.f32 %v326, %v326
  %v402 = vmul.f32 %v328, %v328
  %v403 = vmul.f32 %v331, %v331
  %v404 = vmul.f32 %v333, %v333
  %v405 = vadd.f32 %v389, %v390
  %v406 = vadd.f32 %v405, %v391
  %v407 = vadd.f32 %v406, %v392
  %v408 = vadd.f32 %v407, %v393
  %v409 = vadd.f32 %v408, %v394
  %v410 = vadd.f32 %v409, %v395
  %v411 = vadd.f32 %v410, %v396
  %v412 = vadd.f32 %v411, %v397
  %v413 = vadd.f32 %v412, %v398
  %v414 = vadd.f32 %v413, %v399
  %v415 = vadd.f32 %v414, %v400
  %v416 = vadd.f32 %v415, %v401
  %v417 = vadd.f32 %v416, %v402
  %v418 = vadd.f32 %v417, %v403
  %v419 = vadd.f32 %v418, %v404
  %v420 = vrot.slane %v419, 4
  %v421 = vadd.f32 %v419, %v420
  %v422 = vrot.slane %v421, 2
  %v423 = vadd.f32 %v421, %v422
  %v424 = vrot.slane %v423, 1
  %v425 = vadd.f32 %v423, %v424
  %426 = vst [vmem:[%s3 + $0x1] sm:$0x1] %v425
  // Predicated region
  $region10: #{discriminator_forward.10} parent=0 // pred_check
    _
  $region11: #{discriminator_forward.10} parent=0 // pred_check_branch
    %428 = sbr.rel (0) target = $region13
  $region12: #{discriminator_forward.10} parent=0 // pred_region
    _
  $region13: #{discriminator_forward.10} parent=0 // pred_fallthru
    _
  // Predicated region
  $region14: #{discriminator_forward.10} parent=0 // pred_check
    _
  $region15: #{discriminator_forward.10} parent=0 // pred_check_branch
    %430 = sbr.rel (0) target = $region17
  $region16: #{discriminator_forward.10} parent=0 // pred_region
    _
  $region17: #{discriminator_forward.10} parent=0 // pred_fallthru
    _
  // Predicated region
  $region18: #{discriminator_forward.10} parent=0 // pred_check
    _
  $region19: #{discriminator_forward.10} parent=0 // pred_check_branch
    %432 = sbr.rel (0) target = $region21
  $region20: #{discriminator_forward.10} parent=0 // pred_region
    _
  $region21: #{discriminator_forward.10} parent=0 // pred_fallthru
    _
  // Predicated region
  $region22: #{discriminator_forward.10} parent=0 // pred_check
    _
  $region23: #{discriminator_forward.10} parent=0 // pred_check_branch
    %434 = sbr.rel (0) target = $region25
  $region24: #{discriminator_forward.10} parent=0 // pred_region
    _
  $region25: #{discriminator_forward.10} parent=0 // pred_fallthru
    _

// kernel: discriminator_forward.11
$region0: #{discriminator_forward.11}
  #allocation0 [shape = 'u32[]', space=smem, size = 0x4, offset = 0x4, fixed_abs, tag = 'smem constant byte address 0x4 - core index']
  #allocation1 [shape = 'u32[72,128]{1,0:T(1,128)}', space=vmem, size = 0x9000, scoped, tag = 'internal scratch']
  %s0 = inlined_call_operand.vmem [shape: bf16[128,128], index: 0, kind: input, shape index: {}]
  %s1 = inlined_call_operand.vmem [shape: f32[1,128], index: 1, kind: input, shape index: {}]
  %s2 = inlined_call_operand.vmem [shape: f32[1,128], index: 2, kind: input, shape index: {}]
  %s3 = inlined_call_operand.vmem [shape: bf16[128,128], index: 3, kind: output, shape index: {}]
  %s4 = sld [smem:[#allocation0]]
  $region22: #{discriminator_forward.11} parent=0
    _
  %s6 = ssub.s32 1, %s4
  %s7 = scalar_select 0, %s6, %s4
  // Predicated region
  $region2: #{discriminator_forward.11} parent=0 // pred_check
    _
  $region3: #{discriminator_forward.11} parent=0 // pred_check_branch
    %9 = sbr.rel (0) target = $region5
  $region4: #{discriminator_forward.11} parent=0 // pred_region
    _
  $region5: #{discriminator_forward.11} parent=0 // pred_fallthru
    _
  // Predicated region
  $region6: #{discriminator_forward.11} parent=0 // pred_check
    _
  $region7: #{discriminator_forward.11} parent=0 // pred_check_branch
    %11 = sbr.rel (0) target = $region9
  $region8: #{discriminator_forward.11} parent=0 // pred_region
    _
  $region9: #{discriminator_forward.11} parent=0 // pred_fallthru
    _
  // Predicated region
  $region10: #{discriminator_forward.11} parent=0 // pred_check
    _
  $region11: #{discriminator_forward.11} parent=0 // pred_check_branch
    %13 = sbr.rel (0) target = $region13
  $region12: #{discriminator_forward.11} parent=0 // pred_region
    _
  $region13: #{discriminator_forward.11} parent=0 // pred_fallthru
    _
  %v14 = vld [vmem:[%s0] sm:$0xf]
  %v15 = vld [vmem:[%s0 + $0x4] sm:$0xf]
  %v16 = vld [vmem:[%s0 + $0x8] sm:$0xf]
  %v17 = vld [vmem:[%s0 + $0xc] sm:$0xf]
  %v18 = vld [vmem:[%s0 + $0x10] sm:$0xf]
  %v19 = vld [vmem:[%s0 + $0x14] sm:$0xf]
  %v20 = vld [vmem:[%s0 + $0x18] sm:$0xf]
  %v21 = vld [vmem:[%s0 + $0x1c] sm:$0xf]
  %v22 = vld [vmem:[%s0 + $0x20] sm:$0xf]
  %v23 = vld [vmem:[%s0 + $0x24] sm:$0xf]
  %v24 = vld [vmem:[%s0 + $0x28] sm:$0xf]
  %v25 = vld [vmem:[%s0 + $0x2c] sm:$0xf]
  %v26 = vld [vmem:[%s0 + $0x30] sm:$0xf]
  %v27 = vld [vmem:[%s0 + $0x34] sm:$0xf]
  %v28 = vld [vmem:[%s0 + $0x38] sm:$0xf]
  %v29 = vld [vmem:[%s0 + $0x3c] sm:$0xf]
  %v30 = vunpack.c.l.bf16 %v14
  %v31 = vunpack.c.l.bf16 %v15
  %v32 = vunpack.c.l.bf16 %v16
  %v33 = vunpack.c.l.bf16 %v17
  %v34 = vunpack.c.l.bf16 %v18
  %v35 = vunpack.c.l.bf16 %v19
  %v36 = vunpack.c.l.bf16 %v20
  %v37 = vunpack.c.l.bf16 %v21
  %v38 = vunpack.c.l.bf16 %v22
  %v39 = vunpack.c.l.bf16 %v23
  %v40 = vunpack.c.l.bf16 %v24
  %v41 = vunpack.c.l.bf16 %v25
  %v42 = vunpack.c.l.bf16 %v26
  %v43 = vunpack.c.l.bf16 %v27
  %v44 = vunpack.c.l.bf16 %v28
  %v45 = vunpack.c.l.bf16 %v29
  %v46 = vld [vmem:[%s1] sm:$0x1]
  %v48 = vperm.slane %v46, 0
  %v50 = vmul.f32 %v30, %v48
  %v51 = vmul.f32 %v31, %v48
  %v52 = vmul.f32 %v32, %v48
  %v53 = vmul.f32 %v33, %v48
  %v54 = vmul.f32 %v34, %v48
  %v55 = vmul.f32 %v35, %v48
  %v56 = vmul.f32 %v36, %v48
  %v57 = vmul.f32 %v37, %v48
  %v58 = vmul.f32 %v38, %v48
  %v59 = vmul.f32 %v39, %v48
  %v60 = vmul.f32 %v40, %v48
  %v61 = vmul.f32 %v41, %v48
  %v62 = vmul.f32 %v42, %v48
  %v63 = vmul.f32 %v43, %v48
  %v64 = vmul.f32 %v44, %v48
  %v65 = vmul.f32 %v45, %v48
  %v66 = vld [vmem:[%s2] sm:$0x1]
  %v68 = vperm.slane %v66, 0
  %v70 = vadd.f32 %v50, %v68
  %v71 = vadd.f32 %v51, %v68
  %v72 = vadd.f32 %v52, %v68
  %v73 = vadd.f32 %v53, %v68
  %v74 = vadd.f32 %v54, %v68
  %v75 = vadd.f32 %v55, %v68
  %v76 = vadd.f32 %v56, %v68
  %v77 = vadd.f32 %v57, %v68
  %v78 = vadd.f32 %v58, %v68
  %v79 = vadd.f32 %v59, %v68
  %v80 = vadd.f32 %v60, %v68
  %v81 = vadd.f32 %v61, %v68
  %v82 = vadd.f32 %v62, %v68
  %v83 = vadd.f32 %v63, %v68
  %v84 = vadd.f32 %v64, %v68
  %v85 = vadd.f32 %v65, %v68
  %vm86 = vcmp.ge.f32.partialorder %v70, 0.0
  %vm87 = vcmp.ge.f32.partialorder %v71, 0.0
  %vm88 = vcmp.ge.f32.partialorder %v72, 0.0
  %vm89 = vcmp.ge.f32.partialorder %v73, 0.0
  %vm90 = vcmp.ge.f32.partialorder %v74, 0.0
  %vm91 = vcmp.ge.f32.partialorder %v75, 0.0
  %vm92 = vcmp.ge.f32.partialorder %v76, 0.0
  %vm93 = vcmp.ge.f32.partialorder %v77, 0.0
  %vm94 = vcmp.ge.f32.partialorder %v78, 0.0
  %vm95 = vcmp.ge.f32.partialorder %v79, 0.0
  %vm96 = vcmp.ge.f32.partialorder %v80, 0.0
  %vm97 = vcmp.ge.f32.partialorder %v81, 0.0
  %vm98 = vcmp.ge.f32.partialorder %v82, 0.0
  %vm99 = vcmp.ge.f32.partialorder %v83, 0.0
  %vm100 = vcmp.ge.f32.partialorder %v84, 0.0
  %vm101 = vcmp.ge.f32.partialorder %v85, 0.0
  %v102 = vmul.f32 %v70, 0.2
  %v103 = vmul.f32 %v71, 0.2
  %v104 = vmul.f32 %v72, 0.2
  %v105 = vmul.f32 %v73, 0.2
  %v106 = vmul.f32 %v74, 0.2
  %v107 = vmul.f32 %v75, 0.2
  %v108 = vmul.f32 %v76, 0.2
  %v109 = vmul.f32 %v77, 0.2
  %v110 = vmul.f32 %v78, 0.2
  %v111 = vmul.f32 %v79, 0.2
  %v112 = vmul.f32 %v80, 0.2
  %v113 = vmul.f32 %v81, 0.2
  %v114 = vmul.f32 %v82, 0.2
  %v115 = vmul.f32 %v83, 0.2
  %v116 = vmul.f32 %v84, 0.2
  %v117 = vmul.f32 %v85, 0.2
  %v118 = vsel %vm86, %v70, %v102
  %v119 = vsel %vm87, %v71, %v103
  %v120 = vsel %vm88, %v72, %v104
  %v121 = vsel %vm89, %v73, %v105
  %v122 = vsel %vm90, %v74, %v106
  %v123 = vsel %vm91, %v75, %v107
  %v124 = vsel %vm92, %v76, %v108
  %v125 = vsel %vm93, %v77, %v109
  %v126 = vsel %vm94, %v78, %v110
  %v127 = vsel %vm95, %v79, %v111
  %v128 = vsel %vm96, %v80, %v112
  %v129 = vsel %vm97, %v81, %v113
  %v130 = vsel %vm98, %v82, %v114
  %v131 = vsel %vm99, %v83, %v115
  %v132 = vsel %vm100, %v84, %v116
  %v133 = vsel %vm101, %v85, %v117
  %v134 = vpack.c.bf16 %v118, %v118
  %v135 = vpack.c.bf16 %v119, %v119
  %v136 = vpack.c.bf16 %v120, %v120
  %v137 = vpack.c.bf16 %v121, %v121
  %v138 = vpack.c.bf16 %v122, %v122
  %v139 = vpack.c.bf16 %v123, %v123
  %v140 = vpack.c.bf16 %v124, %v124
  %v141 = vpack.c.bf16 %v125, %v125
  %v142 = vpack.c.bf16 %v126, %v126
  %v143 = vpack.c.bf16 %v127, %v127
  %v144 = vpack.c.bf16 %v128, %v128
  %v145 = vpack.c.bf16 %v129, %v129
  %v146 = vpack.c.bf16 %v130, %v130
  %v147 = vpack.c.bf16 %v131, %v131
  %v148 = vpack.c.bf16 %v132, %v132
  %v149 = vpack.c.bf16 %v133, %v133
  %150 = vst [vmem:[%s3] sm:$0xf] %v134
  %151 = vst [vmem:[%s3 + $0x4] sm:$0xf] %v135
  %152 = vst [vmem:[%s3 + $0x8] sm:$0xf] %v136
  %153 = vst [vmem:[%s3 + $0xc] sm:$0xf] %v137
  %154 = vst [vmem:[%s3 + $0x10] sm:$0xf] %v138
  %155 = vst [vmem:[%s3 + $0x14] sm:$0xf] %v139
  %156 = vst [vmem:[%s3 + $0x18] sm:$0xf] %v140
  %157 = vst [vmem:[%s3 + $0x1c] sm:$0xf] %v141
  %158 = vst [vmem:[%s3 + $0x20] sm:$0xf] %v142
  %159 = vst [vmem:[%s3 + $0x24] sm:$0xf] %v143
  %160 = vst [vmem:[%s3 + $0x28] sm:$0xf] %v144
  %161 = vst [vmem:[%s3 + $0x2c] sm:$0xf] %v145
  %162 = vst [vmem:[%s3 + $0x30] sm:$0xf] %v146
  %163 = vst [vmem:[%s3 + $0x34] sm:$0xf] %v147
  %164 = vst [vmem:[%s3 + $0x38] sm:$0xf] %v148
  %165 = vst [vmem:[%s3 + $0x3c] sm:$0xf] %v149
  // Predicated region
  $region14: #{discriminator_forward.11} parent=0 // pred_check
    _
  $region15: #{discriminator_forward.11} parent=0 // pred_check_branch
    %167 = sbr.rel (0) target = $region17
  $region16: #{discriminator_forward.11} parent=0 // pred_region
    _
  $region17: #{discriminator_forward.11} parent=0 // pred_fallthru
    _
  // Predicated region
  $region18: #{discriminator_forward.11} parent=0 // pred_check
    _
  $region19: #{discriminator_forward.11} parent=0 // pred_check_branch
    %169 = sbr.rel (0) target = $region21
  $region20: #{discriminator_forward.11} parent=0 // pred_region
    _
  $region21: #{discriminator_forward.11} parent=0 // pred_fallthru
    _

// kernel: discriminator_forward.13
$region0: #{discriminator_forward.13}
  #allocation0 [shape = 'u32[]', space=smem, size = 0x4, offset = 0x4, fixed_abs, tag = 'smem constant byte address 0x4 - core index']
  #allocation1 [shape = 'u32[72,128]{1,0:T(1,128)}', space=vmem, size = 0x9000, scoped, tag = 'internal scratch']
  %s0 = inlined_call_operand.vmem [shape: bf16[32,128], index: 0, kind: input, shape index: {}]
  %s1 = inlined_call_operand.vmem [shape: f32[1,128], index: 1, kind: input, shape index: {}]
  %s2 = inlined_call_operand.vmem [shape: f32[1,128], index: 2, kind: input, shape index: {}]
  %s3 = inlined_call_operand.vmem [shape: bf16[32,128], index: 3, kind: output, shape index: {}]
  %s4 = sld [smem:[#allocation0]]
  $region22: #{discriminator_forward.13} parent=0
    _
  %s6 = ssub.s32 1, %s4
  %s7 = scalar_select 0, %s6, %s4
  // Predicated region
  $region2: #{discriminator_forward.13} parent=0 // pred_check
    _
  $region3: #{discriminator_forward.13} parent=0 // pred_check_branch
    %9 = sbr.rel (0) target = $region5
  $region4: #{discriminator_forward.13} parent=0 // pred_region
    _
  $region5: #{discriminator_forward.13} parent=0 // pred_fallthru
    _
  // Predicated region
  $region6: #{discriminator_forward.13} parent=0 // pred_check
    _
  $region7: #{discriminator_forward.13} parent=0 // pred_check_branch
    %11 = sbr.rel (0) target = $region9
  $region8: #{discriminator_forward.13} parent=0 // pred_region
    _
  $region9: #{discriminator_forward.13} parent=0 // pred_fallthru
    _
  // Predicated region
  $region10: #{discriminator_forward.13} parent=0 // pred_check
    _
  $region11: #{discriminator_forward.13} parent=0 // pred_check_branch
    %13 = sbr.rel (0) target = $region13
  $region12: #{discriminator_forward.13} parent=0 // pred_region
    _
  $region13: #{discriminator_forward.13} parent=0 // pred_fallthru
    _
  %v14 = vld [vmem:[%s0] sm:$0xf]
  %v15 = vld [vmem:[%s0 + $0x4] sm:$0xf]
  %v16 = vld [vmem:[%s0 + $0x8] sm:$0xf]
  %v17 = vld [vmem:[%s0 + $0xc] sm:$0xf]
  %v18 = vunpack.c.l.bf16 %v14
  %v19 = vunpack.c.l.bf16 %v15
  %v20 = vunpack.c.l.bf16 %v16
  %v21 = vunpack.c.l.bf16 %v17
  %v22 = vld [vmem:[%s1] sm:$0x1]
  %v24 = vperm.slane %v22, 0
  %v26 = vmul.f32 %v18, %v24
  %v27 = vmul.f32 %v19, %v24
  %v28 = vmul.f32 %v20, %v24
  %v29 = vmul.f32 %v21, %v24
  %v30 = vld [vmem:[%s2] sm:$0x1]
  %v32 = vperm.slane %v30, 0
  %v34 = vadd.f32 %v26, %v32
  %v35 = vadd.f32 %v27, %v32
  %v36 = vadd.f32 %v28, %v32
  %v37 = vadd.f32 %v29, %v32
  %vm38 = vcmp.ge.f32.partialorder %v34, 0.0
  %vm39 = vcmp.ge.f32.partialorder %v35, 0.0
  %vm40 = vcmp.ge.f32.partialorder %v36, 0.0
  %vm41 = vcmp.ge.f32.partialorder %v37, 0.0
  %v42 = vmul.f32 %v34, 0.2
  %v43 = vmul.f32 %v35, 0.2
  %v44 = vmul.f32 %v36, 0.2
  %v45 = vmul.f32 %v37, 0.2
  %v46 = vsel %vm38, %v34, %v42
  %v47 = vsel %vm39, %v35, %v43
  %v48 = vsel %vm40, %v36, %v44
  %v49 = vsel %vm41, %v37, %v45
  %v50 = vpack.c.bf16 %v46, %v46
  %v51 = vpack.c.bf16 %v47, %v47
  %v52 = vpack.c.bf16 %v48, %v48
  %v53 = vpack.c.bf16 %v49, %v49
  %54 = vst [vmem:[%s3] sm:$0xf] %v50
  %55 = vst [vmem:[%s3 + $0x4] sm:$0xf] %v51
  %56 = vst [vmem:[%s3 + $0x8] sm:$0xf] %v52
  %57 = vst [vmem:[%s3 + $0xc] sm:$0xf] %v53
  // Predicated region
  $region14: #{discriminator_forward.13} parent=0 // pred_check
    _
  $region15: #{discriminator_forward.13} parent=0 // pred_check_branch
    %59 = sbr.rel (0) target = $region17
  $region16: #{discriminator_forward.13} parent=0 // pred_region
    _
  $region17: #{discriminator_forward.13} parent=0 // pred_fallthru
    _
  // Predicated region
  $region18: #{discriminator_forward.13} parent=0 // pred_check
    _
  $region19: #{discriminator_forward.13} parent=0 // pred_check_branch
    %61 = sbr.rel (0) target = $region21
  $region20: #{discriminator_forward.13} parent=0 // pred_region
    _
  $region21: #{discriminator_forward.13} parent=0 // pred_fallthru
    _

// kernel: discriminator_forward.12
$region0: #{discriminator_forward.12}
  #allocation0 [shape = 'u32[]', space=smem, size = 0x4, offset = 0x4, fixed_abs, tag = 'smem constant byte address 0x4 - core index']
  #allocation1 [shape = 'u32[72,128]{1,0:T(1,128)}', space=vmem, size = 0x9000, scoped, tag = 'internal scratch']
  %s0 = inlined_call_operand.vmem [shape: bf16[32,512], index: 0, kind: input, shape index: {}]
  %s1 = inlined_call_operand.vmem [shape: bf16[512,128], index: 1, kind: input, shape index: {}]
  %s2 = inlined_call_operand.vmem [shape: bf16[32,128], index: 2, kind: output, shape index: {0}]
  %s3 = inlined_call_operand.vmem [shape: f32[1,2,128], index: 3, kind: output, shape index: {1}]
  %4 = xla_tuple %s2, %s3
  %s5 = sld [smem:[#allocation0]]
  $region26: #{discriminator_forward.12} parent=0
    _
  %s7 = ssub.s32 1, %s5
  %s8 = scalar_select 0, %s7, %s5
  // Predicated region
  $region2: #{discriminator_forward.12} parent=0 // pred_check
    _
  $region3: #{discriminator_forward.12} parent=0 // pred_check_branch
    %10 = sbr.rel (0) target = $region5
  $region4: #{discriminator_forward.12} parent=0 // pred_region
    _
  $region5: #{discriminator_forward.12} parent=0 // pred_fallthru
    _
  // Predicated region
  $region6: #{discriminator_forward.12} parent=0 // pred_check
    _
  $region7: #{discriminator_forward.12} parent=0 // pred_check_branch
    %12 = sbr.rel (0) target = $region9
  $region8: #{discriminator_forward.12} parent=0 // pred_region
    _
  $region9: #{discriminator_forward.12} parent=0 // pred_fallthru
    _
  %v13 = vld [vmem:[%s0] sm:$0xff]
  %v14 = vld [vmem:[%s0 + $0x8] sm:$0xff]
  %v15 = vld [vmem:[%s0 + $0x10] sm:$0xff]
  %v16 = vld [vmem:[%s0 + $0x18] sm:$0xff]
  %v17 = vld [vmem:[%s0 + $0x20] sm:$0xff]
  %v18 = vld [vmem:[%s0 + $0x28] sm:$0xff]
  %v19 = vld [vmem:[%s0 + $0x30] sm:$0xff]
  %v20 = vld [vmem:[%s0 + $0x38] sm:$0xff]
  %v21 = vld [vmem:[%s1] sm:$0xf]
  %v22 = vld [vmem:[%s1 + $0x4] sm:$0xf]
  %v23 = vld [vmem:[%s1 + $0x8] sm:$0xf]
  %v24 = vld [vmem:[%s1 + $0xc] sm:$0xf]
  %v25 = vld [vmem:[%s1 + $0x10] sm:$0xf]
  %v26 = vld [vmem:[%s1 + $0x14] sm:$0xf]
  %v27 = vld [vmem:[%s1 + $0x18] sm:$0xf]
  %v28 = vld [vmem:[%s1 + $0x1c] sm:$0xf]
  %v29 = vld [vmem:[%s1 + $0x20] sm:$0xf]
  %v30 = vld [vmem:[%s1 + $0x24] sm:$0xf]
  %v31 = vld [vmem:[%s1 + $0x28] sm:$0xf]
  %v32 = vld [vmem:[%s1 + $0x2c] sm:$0xf]
  %v33 = vld [vmem:[%s1 + $0x30] sm:$0xf]
  %v34 = vld [vmem:[%s1 + $0x34] sm:$0xf]
  %v35 = vld [vmem:[%s1 + $0x38] sm:$0xf]
  %v36 = vld [vmem:[%s1 + $0x3c] sm:$0xf]
  %v37 = vld [vmem:[%s1 + $0x40] sm:$0xf]
  %v38 = vld [vmem:[%s1 + $0x44] sm:$0xf]
  %v39 = vld [vmem:[%s1 + $0x48] sm:$0xf]
  %v40 = vld [vmem:[%s1 + $0x4c] sm:$0xf]
  %v41 = vld [vmem:[%s1 + $0x50] sm:$0xf]
  %v42 = vld [vmem:[%s1 + $0x54] sm:$0xf]
  %v43 = vld [vmem:[%s1 + $0x58] sm:$0xf]
  %v44 = vld [vmem:[%s1 + $0x5c] sm:$0xf]
  %v45 = vld [vmem:[%s1 + $0x60] sm:$0xf]
  %v46 = vld [vmem:[%s1 + $0x64] sm:$0xf]
  %v47 = vld [vmem:[%s1 + $0x68] sm:$0xf]
  %v48 = vld [vmem:[%s1 + $0x6c] sm:$0xf]
  %v49 = vld [vmem:[%s1 + $0x70] sm:$0xf]
  %v50 = vld [vmem:[%s1 + $0x74] sm:$0xf]
  %v51 = vld [vmem:[%s1 + $0x78] sm:$0xf]
  %v52 = vld [vmem:[%s1 + $0x7c] sm:$0xf]
  %v53 = vld [vmem:[%s1 + $0x80] sm:$0xf]
  %v54 = vld [vmem:[%s1 + $0x84] sm:$0xf]
  %v55 = vld [vmem:[%s1 + $0x88] sm:$0xf]
  %v56 = vld [vmem:[%s1 + $0x8c] sm:$0xf]
  %v57 = vld [vmem:[%s1 + $0x90] sm:$0xf]
  %v58 = vld [vmem:[%s1 + $0x94] sm:$0xf]
  %v59 = vld [vmem:[%s1 + $0x98] sm:$0xf]
  %v60 = vld [vmem:[%s1 + $0x9c] sm:$0xf]
  %v61 = vld [vmem:[%s1 + $0xa0] sm:$0xf]
  %v62 = vld [vmem:[%s1 + $0xa4] sm:$0xf]
  %v63 = vld [vmem:[%s1 + $0xa8] sm:$0xf]
  %v64 = vld [vmem:[%s1 + $0xac] sm:$0xf]
  %v65 = vld [vmem:[%s1 + $0xb0] sm:$0xf]
  %v66 = vld [vmem:[%s1 + $0xb4] sm:$0xf]
  %v67 = vld [vmem:[%s1 + $0xb8] sm:$0xf]
  %v68 = vld [vmem:[%s1 + $0xbc] sm:$0xf]
  %v69 = vld [vmem:[%s1 + $0xc0] sm:$0xf]
  %v70 = vld [vmem:[%s1 + $0xc4] sm:$0xf]
  %v71 = vld [vmem:[%s1 + $0xc8] sm:$0xf]
  %v72 = vld [vmem:[%s1 + $0xcc] sm:$0xf]
  %v73 = vld [vmem:[%s1 + $0xd0] sm:$0xf]
  %v74 = vld [vmem:[%s1 + $0xd4] sm:$0xf]
  %v75 = vld [vmem:[%s1 + $0xd8] sm:$0xf]
  %v76 = vld [vmem:[%s1 + $0xdc] sm:$0xf]
  %v77 = vld [vmem:[%s1 + $0xe0] sm:$0xf]
  %v78 = vld [vmem:[%s1 + $0xe4] sm:$0xf]
  %v79 = vld [vmem:[%s1 + $0xe8] sm:$0xf]
  %v80 = vld [vmem:[%s1 + $0xec] sm:$0xf]
  %v81 = vld [vmem:[%s1 + $0xf0] sm:$0xf]
  %v82 = vld [vmem:[%s1 + $0xf4] sm:$0xf]
  %v83 = vld [vmem:[%s1 + $0xf8] sm:$0xf]
  %v84 = vld [vmem:[%s1 + $0xfc] sm:$0xf]
  %v93 = vunpack.c.l.b16 %v13
  %v94 = vunpack.c.h.b16 %v13
  %v95 = vunpack.c.l.b16 %v14
  %v96 = vunpack.c.h.b16 %v14
  %v97 = vunpack.c.l.b16 %v15
  %v98 = vunpack.c.h.b16 %v15
  %v99 = vunpack.c.l.b16 %v16
  %v100 = vunpack.c.h.b16 %v16
  %v101 = vunpack.c.l.b16 %v17
  %v102 = vunpack.c.h.b16 %v17
  %v103 = vunpack.c.l.b16 %v18
  %v104 = vunpack.c.h.b16 %v18
  %v105 = vunpack.c.l.b16 %v19
  %v106 = vunpack.c.h.b16 %v19
  %v107 = vunpack.c.l.b16 %v20
  %v108 = vunpack.c.h.b16 %v20
  %v109 = vpack.c.b16 %v97, %v93
  %v110 = vpack.c.b16 %v98, %v94
  %v111 = vpack.c.b16 %v99, %v95
  %v112 = vpack.c.b16 %v100, %v96
  %v113 = vpack.c.b16 %v105, %v101
  %v114 = vpack.c.b16 %v106, %v102
  %v115 = vpack.c.b16 %v107, %v103
  %v116 = vpack.c.b16 %v108, %v104
  %v189 = vunpack.c.l.b16 %v21
  %v190 = vunpack.c.l.b16 %v22
  %v191 = vunpack.c.l.b16 %v23
  %v192 = vunpack.c.l.b16 %v24
  %v193 = vunpack.c.l.b16 %v25
  %v194 = vunpack.c.l.b16 %v26
  %v195 = vunpack.c.l.b16 %v27
  %v196 = vunpack.c.l.b16 %v28
  %v197 = vunpack.c.l.b16 %v29
  %v198 = vunpack.c.l.b16 %v30
  %v199 = vunpack.c.l.b16 %v31
  %v200 = vunpack.c.l.b16 %v32
  %v201 = vunpack.c.l.b16 %v33
  %v202 = vunpack.c.l.b16 %v34
  %v203 = vunpack.c.l.b16 %v35
  %v204 = vunpack.c.l.b16 %v36
  %v205 = vunpack.c.l.b16 %v37
  %v206 = vunpack.c.l.b16 %v38
  %v207 = vunpack.c.l.b16 %v39
  %v208 = vunpack.c.l.b16 %v40
  %v209 = vunpack.c.l.b16 %v41
  %v210 = vunpack.c.l.b16 %v42
  %v211 = vunpack.c.l.b16 %v43
  %v212 = vunpack.c.l.b16 %v44
  %v213 = vunpack.c.l.b16 %v45
  %v214 = vunpack.c.l.b16 %v46
  %v215 = vunpack.c.l.b16 %v47
  %v216 = vunpack.c.l.b16 %v48
  %v217 = vunpack.c.l.b16 %v49
  %v218 = vunpack.c.l.b16 %v50
  %v219 = vunpack.c.l.b16 %v51
  %v220 = vunpack.c.l.b16 %v52
  %v221 = vunpack.c.l.b16 %v53
  %v222 = vunpack.c.l.b16 %v54
  %v223 = vunpack.c.l.b16 %v55
  %v224 = vunpack.c.l.b16 %v56
  %v225 = vunpack.c.l.b16 %v57
  %v226 = vunpack.c.l.b16 %v58
  %v227 = vunpack.c.l.b16 %v59
  %v228 = vunpack.c.l.b16 %v60
  %v229 = vunpack.c.l.b16 %v61
  %v230 = vunpack.c.l.b16 %v62
  %v231 = vunpack.c.l.b16 %v63
  %v232 = vunpack.c.l.b16 %v64
  %v233 = vunpack.c.l.b16 %v65
  %v234 = vunpack.c.l.b16 %v66
  %v235 = vunpack.c.l.b16 %v67
  %v236 = vunpack.c.l.b16 %v68
  %v237 = vunpack.c.l.b16 %v69
  %v238 = vunpack.c.l.b16 %v70
  %v239 = vunpack.c.l.b16 %v71
  %v240 = vunpack.c.l.b16 %v72
  %v241 = vunpack.c.l.b16 %v73
  %v242 = vunpack.c.l.b16 %v74
  %v243 = vunpack.c.l.b16 %v75
  %v244 = vunpack.c.l.b16 %v76
  %v245 = vunpack.c.l.b16 %v77
  %v246 = vunpack.c.l.b16 %v78
  %v247 = vunpack.c.l.b16 %v79
  %v248 = vunpack.c.l.b16 %v80
  %v249 = vunpack.c.l.b16 %v81
  %v250 = vunpack.c.l.b16 %v82
  %v251 = vunpack.c.l.b16 %v83
  %v252 = vunpack.c.l.b16 %v84
  %v253 = vpack.c.b16 %v190, %v189
  %v254 = vpack.c.b16 %v192, %v191
  %v255 = vpack.c.b16 %v194, %v193
  %v256 = vpack.c.b16 %v196, %v195
  %v257 = vpack.c.b16 %v198, %v197
  %v258 = vpack.c.b16 %v200, %v199
  %v259 = vpack.c.b16 %v202, %v201
  %v260 = vpack.c.b16 %v204, %v203
  %v261 = vpack.c.b16 %v206, %v205
  %v262 = vpack.c.b16 %v208, %v207
  %v263 = vpack.c.b16 %v210, %v209
  %v264 = vpack.c.b16 %v212, %v211
  %v265 = vpack.c.b16 %v214, %v213
  %v266 = vpack.c.b16 %v216, %v215
  %v267 = vpack.c.b16 %v218, %v217
  %v268 = vpack.c.b16 %v220, %v219
  %v269 = vpack.c.b16 %v222, %v221
  %v270 = vpack.c.b16 %v224, %v223
  %v271 = vpack.c.b16 %v226, %v225
  %v272 = vpack.c.b16 %v228, %v227
  %v273 = vpack.c.b16 %v230, %v229
  %v274 = vpack.c.b16 %v232, %v231
  %v275 = vpack.c.b16 %v234, %v233
  %v276 = vpack.c.b16 %v236, %v235
  %v277 = vpack.c.b16 %v238, %v237
  %v278 = vpack.c.b16 %v240, %v239
  %v279 = vpack.c.b16 %v242, %v241
  %v280 = vpack.c.b16 %v244, %v243
  %v281 = vpack.c.b16 %v246, %v245
  %v282 = vpack.c.b16 %v248, %v247
  %v283 = vpack.c.b16 %v250, %v249
  %v284 = vpack.c.b16 %v252, %v251
  %317 = vmatpush.bf16.msra.mxu0 %v260
  %318 = vmatpush.bf16.msra.mxu0 %v259
  %319 = vmatpush.bf16.msra.mxu0 %v258
  %320 = vmatpush.bf16.msra.mxu0 %v257
  %321 = vmatpush.bf16.msra.mxu0 %v256
  %322 = vmatpush.bf16.msra.mxu0 %v255
  %323 = vmatpush.bf16.msra.mxu0 %v254
  %324 = vmatpush.bf16.msra.mxu0 %v253
  %325 = vmatmul.bf16.gmra.mxu0 %v109
  %v326 = vpop.f32.mrf.mxu0
  %v327 = vadd.f32 0.0, %v326
  %v328 = vpop.f32.mrf.mxu0
  %v329 = vadd.f32 0.0, %v328
  %330 = vmatmul.bf16.gmra.mxu0 %v113
  %v331 = vpop.f32.mrf.mxu0
  %v332 = vadd.f32 0.0, %v331
  %v333 = vpop.f32.mrf.mxu0
  %v334 = vadd.f32 0.0, %v333
  %335 = vdwg.mxu0
  %336 = vmatpush.bf16.msra.mxu0 %v268
  %337 = vmatpush.bf16.msra.mxu0 %v267
  %338 = vmatpush.bf16.msra.mxu0 %v266
  %339 = vmatpush.bf16.msra.mxu0 %v265
  %340 = vmatpush.bf16.msra.mxu0 %v264
  %341 = vmatpush.bf16.msra.mxu0 %v263
  %342 = vmatpush.bf16.msra.mxu0 %v262
  %343 = vmatpush.bf16.msra.mxu0 %v261
  %344 = vmatmul.bf16.gmra.mxu0 %v110
  %v345 = vpop.f32.mrf.mxu0
  %v346 = vadd.f32 %v327, %v345
  %v347 = vpop.f32.mrf.mxu0
  %v348 = vadd.f32 %v329, %v347
  %349 = vmatmul.bf16.gmra.mxu0 %v114
  %v350 = vpop.f32.mrf.mxu0
  %v351 = vadd.f32 %v332, %v350
  %v352 = vpop.f32.mrf.mxu0
  %v353 = vadd.f32 %v334, %v352
  %354 = vdwg.mxu0
  %355 = vmatpush.bf16.msra.mxu0 %v276
  %356 = vmatpush.bf16.msra.mxu0 %v275
  %357 = vmatpush.bf16.msra.mxu0 %v274
  %358 = vmatpush.bf16.msra.mxu0 %v273
  %359 = vmatpush.bf16.msra.mxu0 %v272
  %360 = vmatpush.bf16.msra.mxu0 %v271
  %361 = vmatpush.bf16.msra.mxu0 %v270
  %362 = vmatpush.bf16.msra.mxu0 %v269
  %363 = vmatmul.bf16.gmra.mxu0 %v111
  %v364 = vpop.f32.mrf.mxu0
  %v365 = vadd.f32 %v346, %v364
  %v366 = vpop.f32.mrf.mxu0
  %v367 = vadd.f32 %v348, %v366
  %368 = vmatmul.bf16.gmra.mxu0 %v115
  %v369 = vpop.f32.mrf.mxu0
  %v370 = vadd.f32 %v351, %v369
  %v371 = vpop.f32.mrf.mxu0
  %v372 = vadd.f32 %v353, %v371
  %373 = vdwg.mxu0
  %374 = vmatpush.bf16.msra.mxu0 %v284
  %375 = vmatpush.bf16.msra.mxu0 %v283
  %376 = vmatpush.bf16.msra.mxu0 %v282
  %377 = vmatpush.bf16.msra.mxu0 %v281
  %378 = vmatpush.bf16.msra.mxu0 %v280
  %379 = vmatpush.bf16.msra.mxu0 %v279
  %380 = vmatpush.bf16.msra.mxu0 %v278
  %381 = vmatpush.bf16.msra.mxu0 %v277
  %382 = vmatmul.bf16.gmra.mxu0 %v112
  %v383 = vpop.f32.mrf.mxu0
  %v384 = vadd.f32 %v365, %v383
  %v385 = vpop.f32.mrf.mxu0
  %v386 = vadd.f32 %v367, %v385
  %387 = vmatmul.bf16.gmra.mxu0 %v116
  %v388 = vpop.f32.mrf.mxu0
  %v389 = vadd.f32 %v370, %v388
  %v390 = vpop.f32.mrf.mxu0
  %v391 = vadd.f32 %v372, %v390
  %392 = vdwg.mxu0
  %v393 = vpack.c.bf16 %v384, %v384
  %v394 = vpack.c.bf16 %v386, %v386
  %v395 = vpack.c.bf16 %v389, %v389
  %v396 = vpack.c.bf16 %v391, %v391
  %397 = vst [vmem:[%s2] sm:$0xf] %v393
  %398 = vst [vmem:[%s2 + $0x4] sm:$0xf] %v394
  %399 = vst [vmem:[%s2 + $0x8] sm:$0xf] %v395
  %400 = vst [vmem:[%s2 + $0xc] sm:$0xf] %v396
  %v401 = vadd.f32 %v384, %v386
  %v402 = vadd.f32 %v401, %v389
  %v403 = vadd.f32 %v402, %v391
  %v404 = vrot.slane %v403, 4
  %v405 = vadd.f32 %v403, %v404
  %v406 = vrot.slane %v405, 2
  %v407 = vadd.f32 %v405, %v406
  %v408 = vrot.slane %v407, 1
  %v409 = vadd.f32 %v407, %v408
  %410 = vst [vmem:[%s3] sm:$0x1] %v409
  %v411 = vmul.f32 %v384, %v384
  %v412 = vmul.f32 %v386, %v386
  %v413 = vmul.f32 %v389, %v389
  %v414 = vmul.f32 %v391, %v391
  %v415 = vadd.f32 %v411, %v412
  %v416 = vadd.f32 %v415, %v413
  %v417 = vadd.f32 %v416, %v414
  %v418 = vrot.slane %v417, 4
  %v419 = vadd.f32 %v417, %v418
  %v420 = vrot.slane %v419, 2
  %v421 = vadd.f32 %v419, %v420
  %v422 = vrot.slane %v421, 1
  %v423 = vadd.f32 %v421, %v422
  %424 = vst [vmem:[%s3 + $0x1] sm:$0x1] %v423
  // Predicated region
  $region10: #{discriminator_forward.12} parent=0 // pred_check
    _
  $region11: #{discriminator_forward.12} parent=0 // pred_check_branch
    %426 = sbr.rel (0) target = $region13
  $region12: #{discriminator_forward.12} parent=0 // pred_region
    _
  $region13: #{discriminator_forward.12} parent=0 // pred_fallthru
    _
  // Predicated region
  $region14: #{discriminator_forward.12} parent=0 // pred_check
    _
  $region15: #{discriminator_forward.12} parent=0 // pred_check_branch
    %428 = sbr.rel (0) target = $region17
  $region16: #{discriminator_forward.12} parent=0 // pred_region
    _
  $region17: #{discriminator_forward.12} parent=0 // pred_fallthru
    _
  // Predicated region
  $region18: #{discriminator_forward.12} parent=0 // pred_check
    _
  $region19: #{discriminator_forward.12} parent=0 // pred_check_branch
    %430 = sbr.rel (0) target = $region21
  $region20: #{discriminator_forward.12} parent=0 // pred_region
    _
  $region21: #{discriminator_forward.12} parent=0 // pred_fallthru
    _
  // Predicated region
  $region22: #{discriminator_forward.12} parent=0 // pred_check
    _
  $region23: #{discriminator_forward.12} parent=0 // pred_check_branch
    %432 = sbr.rel (0) target = $region25
  $region24: #{discriminator_forward.12} parent=0 // pred_region
    _
  $region25: #{discriminator_forward.12} parent=0 // pred_fallthru
    _

</llo_original>
